<compile_context>
chip_gen: v5e
topology: v5e:2x2
jax: 0.10.0
libtpu: 0.0.40
codegen_flags: <defaults>
</compile_context>

<pallas_src>
import functools

import jax
import jax.numpy as jnp
from jax.experimental import pallas as pl
from jax.experimental.pallas import tpu as pltpu


# ---------------------------------------------------------------------------
# The single fused kernel.
# ---------------------------------------------------------------------------
def _fused_lstm_classifier_kernel(
    x2d_ref,        # (T*BP, D)   time-major input, batch rows padded to BP
    m2d_ref,        # (T*BP, H)   1.0 where t < length[b] else 0.0
    wih1_ref,       # (D, 8H)     columns = [fwd: i f g o | bwd: i f g o]
    whh1_ref,       # (2H, 8H)    block-diagonal [fwd | bwd]
    b1_ref,         # (1, 8H)
    lng_ref,        # (1, 2H)     LayerNorm gamma
    lnb_ref,        # (1, 2H)     LayerNorm beta
    wih2_ref,       # (2H, 8H)
    whh2_ref,       # (2H, 8H)
    b2_ref,         # (1, 8H)
    w1_ref,         # (4H, F1)    fc1 with eval-mode BN folded in
    bb1_ref,        # (1, F1)
    w2_ref,         # (F1, O)
    bb2_ref,        # (1, O)
    o_ref,          # out: (B, O)
    h_ref,          # out: (B, F1)
    gx_scr,         # scratch: (T*BP, 8H) f32 hoisted gate projections
    out1_scr,       # scratch: (T*BP, 2H) f32 per-step outputs of layer 1
    *, B, BP, T, H,
):
    H2 = 2 * H
    H4 = 4 * H

    def bilstm(whh_ref, write_out):
        """Fused fwd+bwd recurrence over the hoisted gates in gx_scr."""
        hf = jnp.zeros((BP, H), jnp.float32)
        hb = jnp.zeros((BP, H), jnp.float32)
        cf = jnp.zeros((BP, H), jnp.float32)
        cb = jnp.zeros((BP, H), jnp.float32)

        # Fully unrolled: straight-line serial chain, one 256-wide MXU push/step.
        for s in range(T):
            tb = T - 1 - s                                       # backward time index
            h_cat = jnp.concatenate([hf, hb], axis=-1)           # (BP, 2H)
            hh = jnp.dot(h_cat, whh_ref[...],
                         preferred_element_type=jnp.float32)     # (BP, 8H)

            g_f = gx_scr[s * BP:(s + 1) * BP, 0:H4] + hh[:, 0:H4]
            g_b = gx_scr[tb * BP:(tb + 1) * BP, H4:2 * H4] + hh[:, H4:2 * H4]
            mf = m2d_ref[s * BP:(s + 1) * BP, :] > 0.5           # (BP, H) bool
            mb = m2d_ref[tb * BP:(tb + 1) * BP, :] > 0.5

            def gate_math(g, c):
                i = jax.nn.sigmoid(g[:, 0:H])
                f = jax.nn.sigmoid(g[:, H:2 * H])
                gg = jnp.tanh(g[:, 2 * H:3 * H])
                o = jax.nn.sigmoid(g[:, 3 * H:4 * H])
                c_new = f * c + i * gg
                h_new = o * jnp.tanh(c_new)
                return c_new, h_new

            cf_new, hf_new = gate_math(g_f, cf)
            cb_new, hb_new = gate_math(g_b, cb)

            # NaN-safe packed-sequence semantics: freeze state past length.
            hf = jnp.where(mf, hf_new, hf)
            cf = jnp.where(mf, cf_new, cf)
            hb = jnp.where(mb, hb_new, hb)
            cb = jnp.where(mb, cb_new, cb)

            if write_out:
                # Zero output past length (matches pad_packed_sequence).
                out1_scr[s * BP:(s + 1) * BP, 0:H] = jnp.where(mf, hf_new, 0.0)
                out1_scr[tb * BP:(tb + 1) * BP, H:H2] = jnp.where(mb, hb_new, 0.0)

        return hf, hb

    # ---- layer 1: hoisted input projection (one GEMM), then the recurrence ----
    x2d = x2d_ref[...].astype(jnp.float32)
    gx_scr[...] = (jnp.dot(x2d, wih1_ref[...], preferred_element_type=jnp.float32)
                   + b1_ref[...])
    h1f, h1b = bilstm(whh1_ref, write_out=True)

    # ---- LayerNorm over the 2H features of the rnn1 output (fused, in VMEM) ----
    y = out1_scr[...]
    mu = jnp.mean(y, axis=-1, keepdims=True)
    var = jnp.mean(jnp.square(y - mu), axis=-1, keepdims=True)
    normed = (y - mu) * jax.lax.rsqrt(var + 1e-5) * lng_ref[...] + lnb_ref[...]

    # ---- layer 2: hoisted projection + recurrence (only final states needed) ----
    gx_scr[...] = (jnp.dot(normed, wih2_ref[...], preferred_element_type=jnp.float32)
                   + b2_ref[...])
    h2f, h2b = bilstm(whh2_ref, write_out=False)

    # ---- classifier head: [h1_f | h2_f | h1_b | h2_b] -> fc1(+BN) -> ReLU -> fc2 ----
    hcat = jnp.concatenate([h1f, h2f, h1b, h2b], axis=-1)        # (BP, 4H)
    z1 = jnp.dot(hcat, w1_ref[...], preferred_element_type=jnp.float32) + bb1_ref[...]
    hr = jnp.maximum(z1, 0.0)                                    # dropout = identity (eval)
    z2 = jnp.dot(hr, w2_ref[...], preferred_element_type=jnp.float32) + bb2_ref[...]

    h_ref[...] = hr[0:B, :].astype(h_ref.dtype)
    o_ref[...] = z2[0:B, :].astype(o_ref.dtype)


# ---------------------------------------------------------------------------
# Wrapper (mirrors LSTMClassifier.forward)
# ---------------------------------------------------------------------------
def lstm_classifier_forward(params, x, mask):
    B, T, D = x.shape
    H = params["rnn1"]["w_hh_f"].shape[0]
    F1 = params["head"]["w1"].shape[1]
    O = params["head"]["w2"].shape[1]
    BP = ((B + 7) // 8) * 8          # pad batch rows to the f32 sublane tile

    # mask2length: lengths[b] = sum_t floor(mean_feat(mask[b, t, :]))
    lengths = jnp.sum(jnp.mean(mask, axis=-1).astype(jnp.int32), axis=-1)
    step_mask = (jnp.arange(T)[None, :] < lengths[:, None]).astype(jnp.float32)  # (B, T)

    # Time-major, batch padded to BP, flattened to 2-D (aligned 8-row blocks per step).
    x_tm = jnp.transpose(x, (1, 0, 2)).astype(jnp.float32)                        # (T, B, D)
    x_p = jnp.zeros((T, BP, D), jnp.float32).at[:, :B, :].set(x_tm)
    x2d = x_p.reshape(T * BP, D)
    m_tm = jnp.transpose(step_mask)                                               # (T, B)
    m_p = jnp.zeros((T, BP), jnp.float32).at[:, :B].set(m_tm)
    m2d = jnp.broadcast_to(m_p[:, :, None], (T, BP, H)).reshape(T * BP, H)

    # Direction-fused weights: columns [fwd i f g o | bwd i f g o]; W_hh block-diag.
    def pack(p):
        wih = jnp.concatenate([p["w_ih_f"], p["w_ih_b"]], axis=1)                 # (Din, 8H)
        z = jnp.zeros((H, 4 * H), jnp.float32)
        whh = jnp.concatenate(
            [jnp.concatenate([p["w_hh_f"], z], axis=1),
             jnp.concatenate([z, p["w_hh_b"]], axis=1)], axis=0)                  # (2H, 8H)
        b = jnp.concatenate([p["b_f"], p["b_b"]]).reshape(1, 8 * H)
        return wih, whh, b

    wih1, whh1, b1 = pack(params["rnn1"])
    wih2, whh2, b2 = pack(params["rnn2"])

    # Fold eval-mode BatchNorm1d into fc1.
    hp = params["head"]
    bn_scale = hp["bn_gamma"] * jax.lax.rsqrt(hp["bn_var"] + 1e-5)
    bn_bias = hp["bn_beta"] - hp["bn_mean"] * bn_scale
    w1f = bn_scale[:, None] * hp["w1"]
    b1f = (bn_bias @ hp["w1"] + hp["b1"]).reshape(1, F1)
    w2f = hp["w2"]
    b2f = hp["b2"].reshape(1, O)

    kernel = functools.partial(_fused_lstm_classifier_kernel, B=B, BP=BP, T=T, H=H)
    o, h = pl.pallas_call(
        kernel,
        out_shape=[jax.ShapeDtypeStruct((B, O), jnp.float32),
                   jax.ShapeDtypeStruct((B, F1), jnp.float32)],
        scratch_shapes=[pltpu.VMEM((T * BP, 8 * H), jnp.float32),   # hoisted gates
                        pltpu.VMEM((T * BP, 2 * H), jnp.float32)],  # layer-1 outputs
    )(x2d, m2d,
      wih1, whh1, b1,
      params["ln_gamma"].reshape(1, 2 * H), params["ln_beta"].reshape(1, 2 * H),
      wih2, whh2, b2,
      w1f, b1f, w2f, b2f)
    return o, h


# ---------------------------------------------------------------------------
# Pure-JAX reference (lax.scan) for correctness checking
# ---------------------------------------------------------------------------
def _reverse_padded(x_bt, lengths):
    """(reference only) reverse each sequence's valid prefix and zero the padding."""
    T = x_bt.shape[1]
    t_idx = jnp.arange(T)[None, :]
    valid = t_idx < lengths[:, None]
    rev_idx = jnp.clip(lengths[:, None] - 1 - t_idx, 0, T - 1)
    gathered = jnp.take_along_axis(x_bt, rev_idx[:, :, None], axis=1)
    return jnp.where(valid[:, :, None], gathered, jnp.zeros((), x_bt.dtype))


def _ref_lstm_direction(x_bt, step_mask, w_ih, w_hh, b):
    B, T, _ = x_bt.shape
    H = w_hh.shape[0]

    def step(carry, inp):
        h, c = carry
        x_t, m_t = inp
        gates = x_t @ w_ih + h @ w_hh + b
        i = jax.nn.sigmoid(gates[:, :H])
        f = jax.nn.sigmoid(gates[:, H:2 * H])
        g = jnp.tanh(gates[:, 2 * H:3 * H])
        o = jax.nn.sigmoid(gates[:, 3 * H:])
        c_new = f * c + i * g
        h_new = o * jnp.tanh(c_new)
        keep = m_t > 0.5
        return (jnp.where(keep, h_new, h), jnp.where(keep, c_new, c)), \
               jnp.where(keep, h_new, 0.0)

    x_tm = jnp.transpose(x_bt, (1, 0, 2))
    m_tm = jnp.transpose(step_mask)[:, :, None]
    (hN, _), outs = jax.lax.scan(
        step, (jnp.zeros((B, H), x_bt.dtype), jnp.zeros((B, H), x_bt.dtype)),
        (x_tm, m_tm))
    return jnp.transpose(outs, (1, 0, 2)), hN


def _ref_forward(params, x, mask):
    lengths = jnp.sum(jnp.mean(mask, axis=-1).astype(jnp.int32), axis=-1)
    B, T, _ = x.shape
    step_mask = (jnp.arange(T)[None, :] < lengths[:, None]).astype(x.dtype)

    def bidir(x_bt, p):
        of, hf = _ref_lstm_direction(x_bt, step_mask, p["w_ih_f"], p["w_hh_f"], p["b_f"])
        xr = _reverse_padded(x_bt, lengths)
        orr, hb = _ref_lstm_direction(xr, step_mask, p["w_ih_b"], p["w_hh_b"], p["b_b"])
        ob = _reverse_padded(orr, lengths)
        return jnp.concatenate([of, ob], -1), hf, hb

    out1, h1f, h1b = bidir(x, params["rnn1"])
    mu = jnp.mean(out1, -1, keepdims=True)
    var = jnp.mean(jnp.square(out1 - mu), -1, keepdims=True)
    normed = (out1 - mu) * jax.lax.rsqrt(var + 1e-5) * params["ln_gamma"] + params["ln_beta"]
    _, h2f, h2b = bidir(normed, params["rnn2"])
    h_cat = jnp.concatenate([h1f, h2f, h1b, h2b], -1)
    hp = params["head"]
    bn_scale = hp["bn_gamma"] / jnp.sqrt(hp["bn_var"] + 1e-5)
    bn_bias = hp["bn_beta"] - hp["bn_mean"] * bn_scale
    hbn = h_cat * bn_scale + bn_bias
    hr = jnp.maximum(hbn @ hp["w1"] + hp["b1"], 0.0)
    o = hr @ hp["w2"] + hp["b2"]
    return o, hr


# ---------------------------------------------------------------------------
# Parameter init (PyTorch-style uniform bounds; BN stats randomized to test fold)
# ---------------------------------------------------------------------------
def _init_lstm_dir(key, d_in, H):
    k1, k2, k3 = jax.random.split(key, 3)
    bound = float(H) ** -0.5
    u = lambda k, s: jax.random.uniform(k, s, jnp.float32, -bound, bound)
    return u(k1, (d_in, 4 * H)), u(k2, (H, 4 * H)), u(k3, (4 * H,))


def init_params(key, input_size, H, fc1_size, output_size):
    ks = jax.random.split(key, 10)

    def lstm_params(k, d_in):
        kf, kb = jax.random.split(k)
        wf, wb = _init_lstm_dir(kf, d_in, H), _init_lstm_dir(kb, d_in, H)
        return {"w_ih_f": wf[0], "w_hh_f": wf[1], "b_f": wf[2],
                "w_ih_b": wb[0], "w_hh_b": wb[1], "b_b": wb[2]}

    b1 = float(4 * H) ** -0.5
    b2 = float(fc1_size) ** -0.5
    return {
        "rnn1": lstm_params(ks[0], input_size),
        "rnn2": lstm_params(ks[1], 2 * H),
        "ln_gamma": jnp.ones((2 * H,), jnp.float32),
        "ln_beta": jnp.zeros((2 * H,), jnp.float32),
        "head": {
            "bn_gamma": 1.0 + 0.1 * jax.random.normal(ks[2], (4 * H,), jnp.float32),
            "bn_beta": 0.1 * jax.random.normal(ks[3], (4 * H,), jnp.float32),
            "bn_mean": 0.1 * jax.random.normal(ks[4], (4 * H,), jnp.float32),
            "bn_var": 1.0 + 0.1 * jax.random.uniform(ks[5], (4 * H,), jnp.float32),
            "w1": jax.random.uniform(ks[6], (4 * H, fc1_size), jnp.float32, -b1, b1),
            "b1": jax.random.uniform(ks[7], (fc1_size,), jnp.float32, -b1, b1),
            "w2": jax.random.uniform(ks[8], (fc1_size, output_size), jnp.float32, -b2, b2),
            "b2": jax.random.uniform(ks[9], (output_size,), jnp.float32, -b2, b2),
        },
    }


if __name__ == "__main__":
    key = jax.random.PRNGKey(0)
    B, T = 2, 8
    input_size, hidden_size, fc1_size, output_size = 16, 32, 64, 8
    dropout_rate = 0.3  # inference-mode: unused

    kp, kx = jax.random.split(key)
    params = init_params(kp, input_size, hidden_size, fc1_size, output_size)

    x = jax.random.normal(kx, (B, T, input_size), dtype=jnp.float32)
    lengths = jnp.array([8, 5], dtype=jnp.int32)
    valid = (jnp.arange(T)[None, :] < lengths[:, None]).astype(jnp.float32)
    mask = jnp.broadcast_to(valid[:, :, None], (B, T, input_size))

    o, h = jax.jit(lstm_classifier_forward)(params, x, mask)
    jax.block_until_ready((o, h))

    o_ref, h_ref = _ref_forward(params, x, mask)

    assert o.shape == (B, output_size) and h.shape == (B, fc1_size)
    assert bool(jnp.all(jnp.isfinite(o))) and bool(jnp.all(jnp.isfinite(h)))
    assert bool(jnp.allclose(o, o_ref, rtol=1e-3, atol=1e-3))
    assert bool(jnp.allclose(h, h_ref, rtol=1e-3, atol=1e-3))
    print("KERNEL_OK")
</pallas_src>

<mosaic_0001>
module attributes {stable_mosaic.version = 11 : i64} {
  func.func @_fused_lstm_classifier_kernel(%arg0: memref<64x16xf32, #tpu.memory_space<vmem>>, %arg1: memref<64x32xf32, #tpu.memory_space<vmem>>, %arg2: memref<16x256xf32, #tpu.memory_space<vmem>>, %arg3: memref<64x256xf32, #tpu.memory_space<vmem>>, %arg4: memref<1x256xf32, #tpu.memory_space<vmem>>, %arg5: memref<1x64xf32, #tpu.memory_space<vmem>>, %arg6: memref<1x64xf32, #tpu.memory_space<vmem>>, %arg7: memref<64x256xf32, #tpu.memory_space<vmem>>, %arg8: memref<64x256xf32, #tpu.memory_space<vmem>>, %arg9: memref<1x256xf32, #tpu.memory_space<vmem>>, %arg10: memref<128x64xf32, #tpu.memory_space<vmem>>, %arg11: memref<1x64xf32, #tpu.memory_space<vmem>>, %arg12: memref<64x8xf32, #tpu.memory_space<vmem>>, %arg13: memref<1x8xf32, #tpu.memory_space<vmem>>, %arg14: memref<2x8xf32, #tpu.memory_space<vmem>>, %arg15: memref<2x64xf32, #tpu.memory_space<vmem>>, %arg16: memref<64x256xf32, #tpu.memory_space<vmem>>, %arg17: memref<64x64xf32, #tpu.memory_space<vmem>>) attributes {dimension_semantics = [], scalar_prefetch = 0 : i64, scratch_operands = 2 : i64, tpu.core_type = #tpu.core_type<tc>} {
    %c0 = arith.constant 0 : index
    %c0_0 = arith.constant 0 : index
    %0 = vector.load %arg0[%c0, %c0_0] : memref<64x16xf32, #tpu.memory_space<vmem>>, vector<64x16xf32>
    %c0_1 = arith.constant 0 : index
    %c0_2 = arith.constant 0 : index
    %1 = vector.load %arg2[%c0_1, %c0_2] : memref<16x256xf32, #tpu.memory_space<vmem>>, vector<16x256xf32>
    %cst = arith.constant dense<0.000000e+00> : vector<64x256xf32>
    %2 = tpu.matmul %0, %1, %cst {dimension_numbers = #tpu.dot_dimension_numbers<[1], [0], [0], [1], [0, 0, 1, 1], [], []>} : vector<64x16xf32>, vector<16x256xf32>, vector<64x256xf32> -> vector<64x256xf32>
    %c0_3 = arith.constant 0 : index
    %c0_4 = arith.constant 0 : index
    %3 = vector.load %arg4[%c0_3, %c0_4] : memref<1x256xf32, #tpu.memory_space<vmem>>, vector<1x256xf32>
    %4 = vector.broadcast %3 : vector<1x256xf32> to vector<64x256xf32>
    %5 = arith.addf %2, %4 : vector<64x256xf32>
    %c0_5 = arith.constant 0 : index
    %c0_6 = arith.constant 0 : index
    %6 = vector.load %arg16[%c0_5, %c0_6] : memref<64x256xf32, #tpu.memory_space<vmem>>, vector<64x256xf32>
    tpu.vector_store %arg16[%c0_5, %c0_6], %5 {strides = array<i32>} : memref<64x256xf32, #tpu.memory_space<vmem>>, vector<64x256xf32>,
    %cst_7 = arith.constant 0.000000e+00 : f32
    %7 = vector.broadcast %cst_7 : f32 to vector<8x32xf32>
    %cst_8 = arith.constant 0.000000e+00 : f32
    %8 = vector.broadcast %cst_8 : f32 to vector<8x32xf32>
    %cst_9 = arith.constant 0.000000e+00 : f32
    %9 = vector.broadcast %cst_9 : f32 to vector<8x32xf32>
    %cst_10 = arith.constant 0.000000e+00 : f32
    %10 = vector.broadcast %cst_10 : f32 to vector<8x32xf32>
    %11 = tpu.concatenate %7, %8 in 1 : vector<8x32xf32>, vector<8x32xf32> -> vector<8x64xf32>
    %c0_11 = arith.constant 0 : index
    %c0_12 = arith.constant 0 : index
    %12 = vector.load %arg3[%c0_11, %c0_12] : memref<64x256xf32, #tpu.memory_space<vmem>>, vector<64x256xf32>
    %cst_13 = arith.constant dense<0.000000e+00> : vector<8x256xf32>
    %13 = tpu.matmul %11, %12, %cst_13 {dimension_numbers = #tpu.dot_dimension_numbers<[1], [0], [0], [1], [0, 0, 1, 1], [], []>} : vector<8x64xf32>, vector<64x256xf32>, vector<8x256xf32> -> vector<8x256xf32>
    %c0_14 = arith.constant 0 : index
    %c0_15 = arith.constant 0 : index
    %14 = vector.load %arg16[%c0_14, %c0_15] : memref<64x256xf32, #tpu.memory_space<vmem>>, vector<8x128xf32>
    %15 = vector.extract_strided_slice %13 {offsets = [0, 0], sizes = [8, 128], strides = [1, 1]} : vector<8x256xf32> to vector<8x128xf32>
    %16 = arith.addf %14, %15 : vector<8x128xf32>
    %c56 = arith.constant 56 : index
    %c128 = arith.constant 128 : index
    %17 = vector.load %arg16[%c56, %c128] : memref<64x256xf32, #tpu.memory_space<vmem>>, vector<8x128xf32>
    %18 = vector.extract_strided_slice %13 {offsets = [0, 128], sizes = [8, 128], strides = [1, 1]} : vector<8x256xf32> to vector<8x128xf32>
    %19 = arith.addf %17, %18 : vector<8x128xf32>
    %c0_16 = arith.constant 0 : index
    %c0_17 = arith.constant 0 : index
    %20 = vector.load %arg1[%c0_16, %c0_17] : memref<64x32xf32, #tpu.memory_space<vmem>>, vector<8x32xf32>
    %cst_18 = arith.constant 5.000000e-01 : f32
    %21 = vector.broadcast %cst_18 : f32 to vector<8x32xf32>
    %22 = arith.cmpf ogt, %20, %21 : vector<8x32xf32>
    %c56_19 = arith.constant 56 : index
    %c0_20 = arith.constant 0 : index
    %23 = vector.load %arg1[%c56_19, %c0_20] : memref<64x32xf32, #tpu.memory_space<vmem>>, vector<8x32xf32>
    %cst_21 = arith.constant 5.000000e-01 : f32
    %24 = vector.broadcast %cst_21 : f32 to vector<8x32xf32>
    %25 = arith.cmpf ogt, %23, %24 : vector<8x32xf32>
    %26 = vector.extract_strided_slice %16 {offsets = [0, 0], sizes = [8, 32], strides = [1, 1]} : vector<8x128xf32> to vector<8x32xf32>
    %27 = arith.negf %26 : vector<8x32xf32>
    %28 = math.exp %27 : vector<8x32xf32>
    %cst_22 = arith.constant 1.000000e+00 : f32
    %29 = vector.broadcast %cst_22 : f32 to vector<8x32xf32>
    %30 = arith.addf %29, %28 : vector<8x32xf32>
    %31 = arith.divf %29, %30 : vector<8x32xf32>
    %32 = vector.extract_strided_slice %16 {offsets = [0, 32], sizes = [8, 32], strides = [1, 1]} : vector<8x128xf32> to vector<8x32xf32>
    %33 = arith.negf %32 : vector<8x32xf32>
    %34 = math.exp %33 : vector<8x32xf32>
    %cst_23 = arith.constant 1.000000e+00 : f32
    %35 = vector.broadcast %cst_23 : f32 to vector<8x32xf32>
    %36 = arith.addf %35, %34 : vector<8x32xf32>
    %37 = arith.divf %35, %36 : vector<8x32xf32>
    %38 = vector.extract_strided_slice %16 {offsets = [0, 64], sizes = [8, 32], strides = [1, 1]} : vector<8x128xf32> to vector<8x32xf32>
    %39 = math.tanh %38 : vector<8x32xf32>
    %40 = vector.extract_strided_slice %16 {offsets = [0, 96], sizes = [8, 32], strides = [1, 1]} : vector<8x128xf32> to vector<8x32xf32>
    %41 = arith.negf %40 : vector<8x32xf32>
    %42 = math.exp %41 : vector<8x32xf32>
    %cst_24 = arith.constant 1.000000e+00 : f32
    %43 = vector.broadcast %cst_24 : f32 to vector<8x32xf32>
    %44 = arith.addf %43, %42 : vector<8x32xf32>
    %45 = arith.divf %43, %44 : vector<8x32xf32>
    %46 = arith.mulf %37, %9 : vector<8x32xf32>
    %47 = arith.mulf %31, %39 : vector<8x32xf32>
    %48 = arith.addf %46, %47 : vector<8x32xf32>
    %49 = math.tanh %48 : vector<8x32xf32>
    %50 = arith.mulf %45, %49 : vector<8x32xf32>
    %51 = vector.extract_strided_slice %19 {offsets = [0, 0], sizes = [8, 32], strides = [1, 1]} : vector<8x128xf32> to vector<8x32xf32>
    %52 = arith.negf %51 : vector<8x32xf32>
    %53 = math.exp %52 : vector<8x32xf32>
    %cst_25 = arith.constant 1.000000e+00 : f32
    %54 = vector.broadcast %cst_25 : f32 to vector<8x32xf32>
    %55 = arith.addf %54, %53 : vector<8x32xf32>
    %56 = arith.divf %54, %55 : vector<8x32xf32>
    %57 = vector.extract_strided_slice %19 {offsets = [0, 32], sizes = [8, 32], strides = [1, 1]} : vector<8x128xf32> to vector<8x32xf32>
    %58 = arith.negf %57 : vector<8x32xf32>
    %59 = math.exp %58 : vector<8x32xf32>
    %cst_26 = arith.constant 1.000000e+00 : f32
    %60 = vector.broadcast %cst_26 : f32 to vector<8x32xf32>
    %61 = arith.addf %60, %59 : vector<8x32xf32>
    %62 = arith.divf %60, %61 : vector<8x32xf32>
    %63 = vector.extract_strided_slice %19 {offsets = [0, 64], sizes = [8, 32], strides = [1, 1]} : vector<8x128xf32> to vector<8x32xf32>
    %64 = math.tanh %63 : vector<8x32xf32>
    %65 = vector.extract_strided_slice %19 {offsets = [0, 96], sizes = [8, 32], strides = [1, 1]} : vector<8x128xf32> to vector<8x32xf32>
    %66 = arith.negf %65 : vector<8x32xf32>
    %67 = math.exp %66 : vector<8x32xf32>
    %cst_27 = arith.constant 1.000000e+00 : f32
    %68 = vector.broadcast %cst_27 : f32 to vector<8x32xf32>
    %69 = arith.addf %68, %67 : vector<8x32xf32>
    %70 = arith.divf %68, %69 : vector<8x32xf32>
    %71 = arith.mulf %62, %10 : vector<8x32xf32>
    %72 = arith.mulf %56, %64 : vector<8x32xf32>
    %73 = arith.addf %71, %72 : vector<8x32xf32>
    %74 = math.tanh %73 : vector<8x32xf32>
    %75 = arith.mulf %70, %74 : vector<8x32xf32>
    %76 = arith.select %22, %50, %7 : vector<8x32xi1>, vector<8x32xf32>
    %77 = arith.select %22, %48, %9 : vector<8x32xi1>, vector<8x32xf32>
    %78 = arith.select %25, %75, %8 : vector<8x32xi1>, vector<8x32xf32>
    %79 = arith.select %25, %73, %10 : vector<8x32xi1>, vector<8x32xf32>
    %cst_28 = arith.constant 0.000000e+00 : f32
    %80 = vector.broadcast %cst_28 : f32 to vector<8x32xf32>
    %81 = arith.select %22, %50, %80 : vector<8x32xi1>, vector<8x32xf32>
    %c0_29 = arith.constant 0 : index
    %c0_30 = arith.constant 0 : index
    %82 = vector.load %arg17[%c0_29, %c0_30] : memref<64x64xf32, #tpu.memory_space<vmem>>, vector<8x32xf32>
    tpu.vector_store %arg17[%c0_29, %c0_30], %81 {strides = array<i32>} : memref<64x64xf32, #tpu.memory_space<vmem>>, vector<8x32xf32>,
    %cst_31 = arith.constant 0.000000e+00 : f32
    %83 = vector.broadcast %cst_31 : f32 to vector<8x32xf32>
    %84 = arith.select %25, %75, %83 : vector<8x32xi1>, vector<8x32xf32>
    %c56_32 = arith.constant 56 : index
    %c32 = arith.constant 32 : index
    %85 = vector.load %arg17[%c56_32, %c32] : memref<64x64xf32, #tpu.memory_space<vmem>>, vector<8x32xf32>
    tpu.vector_store %arg17[%c56_32, %c32], %84 {strides = array<i32>} : memref<64x64xf32, #tpu.memory_space<vmem>>, vector<8x32xf32>,
    %86 = tpu.concatenate %76, %78 in 1 : vector<8x32xf32>, vector<8x32xf32> -> vector<8x64xf32>
    %c0_33 = arith.constant 0 : index
    %c0_34 = arith.constant 0 : index
    %87 = vector.load %arg3[%c0_33, %c0_34] : memref<64x256xf32, #tpu.memory_space<vmem>>, vector<64x256xf32>
    %cst_35 = arith.constant dense<0.000000e+00> : vector<8x256xf32>
    %88 = tpu.matmul %86, %87, %cst_35 {dimension_numbers = #tpu.dot_dimension_numbers<[1], [0], [0], [1], [0, 0, 1, 1], [], []>} : vector<8x64xf32>, vector<64x256xf32>, vector<8x256xf32> -> vector<8x256xf32>
    %c8 = arith.constant 8 : index
    %c0_36 = arith.constant 0 : index
    %89 = vector.load %arg16[%c8, %c0_36] : memref<64x256xf32, #tpu.memory_space<vmem>>, vector<8x128xf32>
    %90 = vector.extract_strided_slice %88 {offsets = [0, 0], sizes = [8, 128], strides = [1, 1]} : vector<8x256xf32> to vector<8x128xf32>
    %91 = arith.addf %89, %90 : vector<8x128xf32>
    %c48 = arith.constant 48 : index
    %c128_37 = arith.constant 128 : index
    %92 = vector.load %arg16[%c48, %c128_37] : memref<64x256xf32, #tpu.memory_space<vmem>>, vector<8x128xf32>
    %93 = vector.extract_strided_slice %88 {offsets = [0, 128], sizes = [8, 128], strides = [1, 1]} : vector<8x256xf32> to vector<8x128xf32>
    %94 = arith.addf %92, %93 : vector<8x128xf32>
    %c8_38 = arith.constant 8 : index
    %c0_39 = arith.constant 0 : index
    %95 = vector.load %arg1[%c8_38, %c0_39] : memref<64x32xf32, #tpu.memory_space<vmem>>, vector<8x32xf32>
    %cst_40 = arith.constant 5.000000e-01 : f32
    %96 = vector.broadcast %cst_40 : f32 to vector<8x32xf32>
    %97 = arith.cmpf ogt, %95, %96 : vector<8x32xf32>
    %c48_41 = arith.constant 48 : index
    %c0_42 = arith.constant 0 : index
    %98 = vector.load %arg1[%c48_41, %c0_42] : memref<64x32xf32, #tpu.memory_space<vmem>>, vector<8x32xf32>
    %cst_43 = arith.constant 5.000000e-01 : f32
    %99 = vector.broadcast %cst_43 : f32 to vector<8x32xf32>
    %100 = arith.cmpf ogt, %98, %99 : vector<8x32xf32>
    %101 = vector.extract_strided_slice %91 {offsets = [0, 0], sizes = [8, 32], strides = [1, 1]} : vector<8x128xf32> to vector<8x32xf32>
    %102 = arith.negf %101 : vector<8x32xf32>
    %103 = math.exp %102 : vector<8x32xf32>
    %cst_44 = arith.constant 1.000000e+00 : f32
    %104 = vector.broadcast %cst_44 : f32 to vector<8x32xf32>
    %105 = arith.addf %104, %103 : vector<8x32xf32>
    %106 = arith.divf %104, %105 : vector<8x32xf32>
    %107 = vector.extract_strided_slice %91 {offsets = [0, 32], sizes = [8, 32], strides = [1, 1]} : vector<8x128xf32> to vector<8x32xf32>
    %108 = arith.negf %107 : vector<8x32xf32>
    %109 = math.exp %108 : vector<8x32xf32>
    %cst_45 = arith.constant 1.000000e+00 : f32
    %110 = vector.broadcast %cst_45 : f32 to vector<8x32xf32>
    %111 = arith.addf %110, %109 : vector<8x32xf32>
    %112 = arith.divf %110, %111 : vector<8x32xf32>
    %113 = vector.extract_strided_slice %91 {offsets = [0, 64], sizes = [8, 32], strides = [1, 1]} : vector<8x128xf32> to vector<8x32xf32>
    %114 = math.tanh %113 : vector<8x32xf32>
    %115 = vector.extract_strided_slice %91 {offsets = [0, 96], sizes = [8, 32], strides = [1, 1]} : vector<8x128xf32> to vector<8x32xf32>
    %116 = arith.negf %115 : vector<8x32xf32>
    %117 = math.exp %116 : vector<8x32xf32>
    %cst_46 = arith.constant 1.000000e+00 : f32
    %118 = vector.broadcast %cst_46 : f32 to vector<8x32xf32>
    %119 = arith.addf %118, %117 : vector<8x32xf32>
    %120 = arith.divf %118, %119 : vector<8x32xf32>
    %121 = arith.mulf %112, %77 : vector<8x32xf32>
    %122 = arith.mulf %106, %114 : vector<8x32xf32>
    %123 = arith.addf %121, %122 : vector<8x32xf32>
    %124 = math.tanh %123 : vector<8x32xf32>
    %125 = arith.mulf %120, %124 : vector<8x32xf32>
    %126 = vector.extract_strided_slice %94 {offsets = [0, 0], sizes = [8, 32], strides = [1, 1]} : vector<8x128xf32> to vector<8x32xf32>
    %127 = arith.negf %126 : vector<8x32xf32>
    %128 = math.exp %127 : vector<8x32xf32>
    %cst_47 = arith.constant 1.000000e+00 : f32
    %129 = vector.broadcast %cst_47 : f32 to vector<8x32xf32>
    %130 = arith.addf %129, %128 : vector<8x32xf32>
    %131 = arith.divf %129, %130 : vector<8x32xf32>
    %132 = vector.extract_strided_slice %94 {offsets = [0, 32], sizes = [8, 32], strides = [1, 1]} : vector<8x128xf32> to vector<8x32xf32>
    %133 = arith.negf %132 : vector<8x32xf32>
    %134 = math.exp %133 : vector<8x32xf32>
    %cst_48 = arith.constant 1.000000e+00 : f32
    %135 = vector.broadcast %cst_48 : f32 to vector<8x32xf32>
    %136 = arith.addf %135, %134 : vector<8x32xf32>
    %137 = arith.divf %135, %136 : vector<8x32xf32>
    %138 = vector.extract_strided_slice %94 {offsets = [0, 64], sizes = [8, 32], strides = [1, 1]} : vector<8x128xf32> to vector<8x32xf32>
    %139 = math.tanh %138 : vector<8x32xf32>
    %140 = vector.extract_strided_slice %94 {offsets = [0, 96], sizes = [8, 32], strides = [1, 1]} : vector<8x128xf32> to vector<8x32xf32>
    %141 = arith.negf %140 : vector<8x32xf32>
    %142 = math.exp %141 : vector<8x32xf32>
    %cst_49 = arith.constant 1.000000e+00 : f32
    %143 = vector.broadcast %cst_49 : f32 to vector<8x32xf32>
    %144 = arith.addf %143, %142 : vector<8x32xf32>
    %145 = arith.divf %143, %144 : vector<8x32xf32>
    %146 = arith.mulf %137, %79 : vector<8x32xf32>
    %147 = arith.mulf %131, %139 : vector<8x32xf32>
    %148 = arith.addf %146, %147 : vector<8x32xf32>
    %149 = math.tanh %148 : vector<8x32xf32>
    %150 = arith.mulf %145, %149 : vector<8x32xf32>
    %151 = arith.select %97, %125, %76 : vector<8x32xi1>, vector<8x32xf32>
    %152 = arith.select %97, %123, %77 : vector<8x32xi1>, vector<8x32xf32>
    %153 = arith.select %100, %150, %78 : vector<8x32xi1>, vector<8x32xf32>
    %154 = arith.select %100, %148, %79 : vector<8x32xi1>, vector<8x32xf32>
    %cst_50 = arith.constant 0.000000e+00 : f32
    %155 = vector.broadcast %cst_50 : f32 to vector<8x32xf32>
    %156 = arith.select %97, %125, %155 : vector<8x32xi1>, vector<8x32xf32>
    %c8_51 = arith.constant 8 : index
    %c0_52 = arith.constant 0 : index
    %157 = vector.load %arg17[%c8_51, %c0_52] : memref<64x64xf32, #tpu.memory_space<vmem>>, vector<8x32xf32>
    tpu.vector_store %arg17[%c8_51, %c0_52], %156 {strides = array<i32>} : memref<64x64xf32, #tpu.memory_space<vmem>>, vector<8x32xf32>,
    %cst_53 = arith.constant 0.000000e+00 : f32
    %158 = vector.broadcast %cst_53 : f32 to vector<8x32xf32>
    %159 = arith.select %100, %150, %158 : vector<8x32xi1>, vector<8x32xf32>
    %c48_54 = arith.constant 48 : index
    %c32_55 = arith.constant 32 : index
    %160 = vector.load %arg17[%c48_54, %c32_55] : memref<64x64xf32, #tpu.memory_space<vmem>>, vector<8x32xf32>
    tpu.vector_store %arg17[%c48_54, %c32_55], %159 {strides = array<i32>} : memref<64x64xf32, #tpu.memory_space<vmem>>, vector<8x32xf32>,
    %161 = tpu.concatenate %151, %153 in 1 : vector<8x32xf32>, vector<8x32xf32> -> vector<8x64xf32>
    %c0_56 = arith.constant 0 : index
    %c0_57 = arith.constant 0 : index
    %162 = vector.load %arg3[%c0_56, %c0_57] : memref<64x256xf32, #tpu.memory_space<vmem>>, vector<64x256xf32>
    %cst_58 = arith.constant dense<0.000000e+00> : vector<8x256xf32>
    %163 = tpu.matmul %161, %162, %cst_58 {dimension_numbers = #tpu.dot_dimension_numbers<[1], [0], [0], [1], [0, 0, 1, 1], [], []>} : vector<8x64xf32>, vector<64x256xf32>, vector<8x256xf32> -> vector<8x256xf32>
    %c16 = arith.constant 16 : index
    %c0_59 = arith.constant 0 : index
    %164 = vector.load %arg16[%c16, %c0_59] : memref<64x256xf32, #tpu.memory_space<vmem>>, vector<8x128xf32>
    %165 = vector.extract_strided_slice %163 {offsets = [0, 0], sizes = [8, 128], strides = [1, 1]} : vector<8x256xf32> to vector<8x128xf32>
    %166 = arith.addf %164, %165 : vector<8x128xf32>
    %c40 = arith.constant 40 : index
    %c128_60 = arith.constant 128 : index
    %167 = vector.load %arg16[%c40, %c128_60] : memref<64x256xf32, #tpu.memory_space<vmem>>, vector<8x128xf32>
    %168 = vector.extract_strided_slice %163 {offsets = [0, 128], sizes = [8, 128], strides = [1, 1]} : vector<8x256xf32> to vector<8x128xf32>
    %169 = arith.addf %167, %168 : vector<8x128xf32>
    %c16_61 = arith.constant 16 : index
    %c0_62 = arith.constant 0 : index
    %170 = vector.load %arg1[%c16_61, %c0_62] : memref<64x32xf32, #tpu.memory_space<vmem>>, vector<8x32xf32>
    %cst_63 = arith.constant 5.000000e-01 : f32
    %171 = vector.broadcast %cst_63 : f32 to vector<8x32xf32>
    %172 = arith.cmpf ogt, %170, %171 : vector<8x32xf32>
    %c40_64 = arith.constant 40 : index
    %c0_65 = arith.constant 0 : index
    %173 = vector.load %arg1[%c40_64, %c0_65] : memref<64x32xf32, #tpu.memory_space<vmem>>, vector<8x32xf32>
    %cst_66 = arith.constant 5.000000e-01 : f32
    %174 = vector.broadcast %cst_66 : f32 to vector<8x32xf32>
    %175 = arith.cmpf ogt, %173, %174 : vector<8x32xf32>
    %176 = vector.extract_strided_slice %166 {offsets = [0, 0], sizes = [8, 32], strides = [1, 1]} : vector<8x128xf32> to vector<8x32xf32>
    %177 = arith.negf %176 : vector<8x32xf32>
    %178 = math.exp %177 : vector<8x32xf32>
    %cst_67 = arith.constant 1.000000e+00 : f32
    %179 = vector.broadcast %cst_67 : f32 to vector<8x32xf32>
    %180 = arith.addf %179, %178 : vector<8x32xf32>
    %181 = arith.divf %179, %180 : vector<8x32xf32>
    %182 = vector.extract_strided_slice %166 {offsets = [0, 32], sizes = [8, 32], strides = [1, 1]} : vector<8x128xf32> to vector<8x32xf32>
    %183 = arith.negf %182 : vector<8x32xf32>
    %184 = math.exp %183 : vector<8x32xf32>
    %cst_68 = arith.constant 1.000000e+00 : f32
    %185 = vector.broadcast %cst_68 : f32 to vector<8x32xf32>
    %186 = arith.addf %185, %184 : vector<8x32xf32>
    %187 = arith.divf %185, %186 : vector<8x32xf32>
    %188 = vector.extract_strided_slice %166 {offsets = [0, 64], sizes = [8, 32], strides = [1, 1]} : vector<8x128xf32> to vector<8x32xf32>
    %189 = math.tanh %188 : vector<8x32xf32>
    %190 = vector.extract_strided_slice %166 {offsets = [0, 96], sizes = [8, 32], strides = [1, 1]} : vector<8x128xf32> to vector<8x32xf32>
    %191 = arith.negf %190 : vector<8x32xf32>
    %192 = math.exp %191 : vector<8x32xf32>
    %cst_69 = arith.constant 1.000000e+00 : f32
    %193 = vector.broadcast %cst_69 : f32 to vector<8x32xf32>
    %194 = arith.addf %193, %192 : vector<8x32xf32>
    %195 = arith.divf %193, %194 : vector<8x32xf32>
    %196 = arith.mulf %187, %152 : vector<8x32xf32>
    %197 = arith.mulf %181, %189 : vector<8x32xf32>
    %198 = arith.addf %196, %197 : vector<8x32xf32>
    %199 = math.tanh %198 : vector<8x32xf32>
    %200 = arith.mulf %195, %199 : vector<8x32xf32>
    %201 = vector.extract_strided_slice %169 {offsets = [0, 0], sizes = [8, 32], strides = [1, 1]} : vector<8x128xf32> to vector<8x32xf32>
    %202 = arith.negf %201 : vector<8x32xf32>
    %203 = math.exp %202 : vector<8x32xf32>
    %cst_70 = arith.constant 1.000000e+00 : f32
    %204 = vector.broadcast %cst_70 : f32 to vector<8x32xf32>
    %205 = arith.addf %204, %203 : vector<8x32xf32>
    %206 = arith.divf %204, %205 : vector<8x32xf32>
    %207 = vector.extract_strided_slice %169 {offsets = [0, 32], sizes = [8, 32], strides = [1, 1]} : vector<8x128xf32> to vector<8x32xf32>
    %208 = arith.negf %207 : vector<8x32xf32>
    %209 = math.exp %208 : vector<8x32xf32>
    %cst_71 = arith.constant 1.000000e+00 : f32
    %210 = vector.broadcast %cst_71 : f32 to vector<8x32xf32>
    %211 = arith.addf %210, %209 : vector<8x32xf32>
    %212 = arith.divf %210, %211 : vector<8x32xf32>
    %213 = vector.extract_strided_slice %169 {offsets = [0, 64], sizes = [8, 32], strides = [1, 1]} : vector<8x128xf32> to vector<8x32xf32>
    %214 = math.tanh %213 : vector<8x32xf32>
    %215 = vector.extract_strided_slice %169 {offsets = [0, 96], sizes = [8, 32], strides = [1, 1]} : vector<8x128xf32> to vector<8x32xf32>
    %216 = arith.negf %215 : vector<8x32xf32>
    %217 = math.exp %216 : vector<8x32xf32>
    %cst_72 = arith.constant 1.000000e+00 : f32
    %218 = vector.broadcast %cst_72 : f32 to vector<8x32xf32>
    %219 = arith.addf %218, %217 : vector<8x32xf32>
    %220 = arith.divf %218, %219 : vector<8x32xf32>
    %221 = arith.mulf %212, %154 : vector<8x32xf32>
    %222 = arith.mulf %206, %214 : vector<8x32xf32>
    %223 = arith.addf %221, %222 : vector<8x32xf32>
    %224 = math.tanh %223 : vector<8x32xf32>
    %225 = arith.mulf %220, %224 : vector<8x32xf32>
    %226 = arith.select %172, %200, %151 : vector<8x32xi1>, vector<8x32xf32>
    %227 = arith.select %172, %198, %152 : vector<8x32xi1>, vector<8x32xf32>
    %228 = arith.select %175, %225, %153 : vector<8x32xi1>, vector<8x32xf32>
    %229 = arith.select %175, %223, %154 : vector<8x32xi1>, vector<8x32xf32>
    %cst_73 = arith.constant 0.000000e+00 : f32
    %230 = vector.broadcast %cst_73 : f32 to vector<8x32xf32>
    %231 = arith.select %172, %200, %230 : vector<8x32xi1>, vector<8x32xf32>
    %c16_74 = arith.constant 16 : index
    %c0_75 = arith.constant 0 : index
    %232 = vector.load %arg17[%c16_74, %c0_75] : memref<64x64xf32, #tpu.memory_space<vmem>>, vector<8x32xf32>
    tpu.vector_store %arg17[%c16_74, %c0_75], %231 {strides = array<i32>} : memref<64x64xf32, #tpu.memory_space<vmem>>, vector<8x32xf32>,
    %cst_76 = arith.constant 0.000000e+00 : f32
    %233 = vector.broadcast %cst_76 : f32 to vector<8x32xf32>
    %234 = arith.select %175, %225, %233 : vector<8x32xi1>, vector<8x32xf32>
    %c40_77 = arith.constant 40 : index
    %c32_78 = arith.constant 32 : index
    %235 = vector.load %arg17[%c40_77, %c32_78] : memref<64x64xf32, #tpu.memory_space<vmem>>, vector<8x32xf32>
    tpu.vector_store %arg17[%c40_77, %c32_78], %234 {strides = array<i32>} : memref<64x64xf32, #tpu.memory_space<vmem>>, vector<8x32xf32>,
    %236 = tpu.concatenate %226, %228 in 1 : vector<8x32xf32>, vector<8x32xf32> -> vector<8x64xf32>
    %c0_79 = arith.constant 0 : index
    %c0_80 = arith.constant 0 : index
    %237 = vector.load %arg3[%c0_79, %c0_80] : memref<64x256xf32, #tpu.memory_space<vmem>>, vector<64x256xf32>
    %cst_81 = arith.constant dense<0.000000e+00> : vector<8x256xf32>
    %238 = tpu.matmul %236, %237, %cst_81 {dimension_numbers = #tpu.dot_dimension_numbers<[1], [0], [0], [1], [0, 0, 1, 1], [], []>} : vector<8x64xf32>, vector<64x256xf32>, vector<8x256xf32> -> vector<8x256xf32>
    %c24 = arith.constant 24 : index
    %c0_82 = arith.constant 0 : index
    %239 = vector.load %arg16[%c24, %c0_82] : memref<64x256xf32, #tpu.memory_space<vmem>>, vector<8x128xf32>
    %240 = vector.extract_strided_slice %238 {offsets = [0, 0], sizes = [8, 128], strides = [1, 1]} : vector<8x256xf32> to vector<8x128xf32>
    %241 = arith.addf %239, %240 : vector<8x128xf32>
    %c32_83 = arith.constant 32 : index
    %c128_84 = arith.constant 128 : index
    %242 = vector.load %arg16[%c32_83, %c128_84] : memref<64x256xf32, #tpu.memory_space<vmem>>, vector<8x128xf32>
    %243 = vector.extract_strided_slice %238 {offsets = [0, 128], sizes = [8, 128], strides = [1, 1]} : vector<8x256xf32> to vector<8x128xf32>
    %244 = arith.addf %242, %243 : vector<8x128xf32>
    %c24_85 = arith.constant 24 : index
    %c0_86 = arith.constant 0 : index
    %245 = vector.load %arg1[%c24_85, %c0_86] : memref<64x32xf32, #tpu.memory_space<vmem>>, vector<8x32xf32>
    %cst_87 = arith.constant 5.000000e-01 : f32
    %246 = vector.broadcast %cst_87 : f32 to vector<8x32xf32>
    %247 = arith.cmpf ogt, %245, %246 : vector<8x32xf32>
    %c32_88 = arith.constant 32 : index
    %c0_89 = arith.constant 0 : index
    %248 = vector.load %arg1[%c32_88, %c0_89] : memref<64x32xf32, #tpu.memory_space<vmem>>, vector<8x32xf32>
    %cst_90 = arith.constant 5.000000e-01 : f32
    %249 = vector.broadcast %cst_90 : f32 to vector<8x32xf32>
    %250 = arith.cmpf ogt, %248, %249 : vector<8x32xf32>
    %251 = vector.extract_strided_slice %241 {offsets = [0, 0], sizes = [8, 32], strides = [1, 1]} : vector<8x128xf32> to vector<8x32xf32>
    %252 = arith.negf %251 : vector<8x32xf32>
    %253 = math.exp %252 : vector<8x32xf32>
    %cst_91 = arith.constant 1.000000e+00 : f32
    %254 = vector.broadcast %cst_91 : f32 to vector<8x32xf32>
    %255 = arith.addf %254, %253 : vector<8x32xf32>
    %256 = arith.divf %254, %255 : vector<8x32xf32>
    %257 = vector.extract_strided_slice %241 {offsets = [0, 32], sizes = [8, 32], strides = [1, 1]} : vector<8x128xf32> to vector<8x32xf32>
    %258 = arith.negf %257 : vector<8x32xf32>
    %259 = math.exp %258 : vector<8x32xf32>
    %cst_92 = arith.constant 1.000000e+00 : f32
    %260 = vector.broadcast %cst_92 : f32 to vector<8x32xf32>
    %261 = arith.addf %260, %259 : vector<8x32xf32>
    %262 = arith.divf %260, %261 : vector<8x32xf32>
    %263 = vector.extract_strided_slice %241 {offsets = [0, 64], sizes = [8, 32], strides = [1, 1]} : vector<8x128xf32> to vector<8x32xf32>
    %264 = math.tanh %263 : vector<8x32xf32>
    %265 = vector.extract_strided_slice %241 {offsets = [0, 96], sizes = [8, 32], strides = [1, 1]} : vector<8x128xf32> to vector<8x32xf32>
    %266 = arith.negf %265 : vector<8x32xf32>
    %267 = math.exp %266 : vector<8x32xf32>
    %cst_93 = arith.constant 1.000000e+00 : f32
    %268 = vector.broadcast %cst_93 : f32 to vector<8x32xf32>
    %269 = arith.addf %268, %267 : vector<8x32xf32>
    %270 = arith.divf %268, %269 : vector<8x32xf32>
    %271 = arith.mulf %262, %227 : vector<8x32xf32>
    %272 = arith.mulf %256, %264 : vector<8x32xf32>
    %273 = arith.addf %271, %272 : vector<8x32xf32>
    %274 = math.tanh %273 : vector<8x32xf32>
    %275 = arith.mulf %270, %274 : vector<8x32xf32>
    %276 = vector.extract_strided_slice %244 {offsets = [0, 0], sizes = [8, 32], strides = [1, 1]} : vector<8x128xf32> to vector<8x32xf32>
    %277 = arith.negf %276 : vector<8x32xf32>
    %278 = math.exp %277 : vector<8x32xf32>
    %cst_94 = arith.constant 1.000000e+00 : f32
    %279 = vector.broadcast %cst_94 : f32 to vector<8x32xf32>
    %280 = arith.addf %279, %278 : vector<8x32xf32>
    %281 = arith.divf %279, %280 : vector<8x32xf32>
    %282 = vector.extract_strided_slice %244 {offsets = [0, 32], sizes = [8, 32], strides = [1, 1]} : vector<8x128xf32> to vector<8x32xf32>
    %283 = arith.negf %282 : vector<8x32xf32>
    %284 = math.exp %283 : vector<8x32xf32>
    %cst_95 = arith.constant 1.000000e+00 : f32
    %285 = vector.broadcast %cst_95 : f32 to vector<8x32xf32>
    %286 = arith.addf %285, %284 : vector<8x32xf32>
    %287 = arith.divf %285, %286 : vector<8x32xf32>
    %288 = vector.extract_strided_slice %244 {offsets = [0, 64], sizes = [8, 32], strides = [1, 1]} : vector<8x128xf32> to vector<8x32xf32>
    %289 = math.tanh %288 : vector<8x32xf32>
    %290 = vector.extract_strided_slice %244 {offsets = [0, 96], sizes = [8, 32], strides = [1, 1]} : vector<8x128xf32> to vector<8x32xf32>
    %291 = arith.negf %290 : vector<8x32xf32>
    %292 = math.exp %291 : vector<8x32xf32>
    %cst_96 = arith.constant 1.000000e+00 : f32
    %293 = vector.broadcast %cst_96 : f32 to vector<8x32xf32>
    %294 = arith.addf %293, %292 : vector<8x32xf32>
    %295 = arith.divf %293, %294 : vector<8x32xf32>
    %296 = arith.mulf %287, %229 : vector<8x32xf32>
    %297 = arith.mulf %281, %289 : vector<8x32xf32>
    %298 = arith.addf %296, %297 : vector<8x32xf32>
    %299 = math.tanh %298 : vector<8x32xf32>
    %300 = arith.mulf %295, %299 : vector<8x32xf32>
    %301 = arith.select %247, %275, %226 : vector<8x32xi1>, vector<8x32xf32>
    %302 = arith.select %247, %273, %227 : vector<8x32xi1>, vector<8x32xf32>
    %303 = arith.select %250, %300, %228 : vector<8x32xi1>, vector<8x32xf32>
    %304 = arith.select %250, %298, %229 : vector<8x32xi1>, vector<8x32xf32>
    %cst_97 = arith.constant 0.000000e+00 : f32
    %305 = vector.broadcast %cst_97 : f32 to vector<8x32xf32>
    %306 = arith.select %247, %275, %305 : vector<8x32xi1>, vector<8x32xf32>
    %c24_98 = arith.constant 24 : index
    %c0_99 = arith.constant 0 : index
    %307 = vector.load %arg17[%c24_98, %c0_99] : memref<64x64xf32, #tpu.memory_space<vmem>>, vector<8x32xf32>
    tpu.vector_store %arg17[%c24_98, %c0_99], %306 {strides = array<i32>} : memref<64x64xf32, #tpu.memory_space<vmem>>, vector<8x32xf32>,
    %cst_100 = arith.constant 0.000000e+00 : f32
    %308 = vector.broadcast %cst_100 : f32 to vector<8x32xf32>
    %309 = arith.select %250, %300, %308 : vector<8x32xi1>, vector<8x32xf32>
    %c32_101 = arith.constant 32 : index
    %c32_102 = arith.constant 32 : index
    %310 = vector.load %arg17[%c32_101, %c32_102] : memref<64x64xf32, #tpu.memory_space<vmem>>, vector<8x32xf32>
    tpu.vector_store %arg17[%c32_101, %c32_102], %309 {strides = array<i32>} : memref<64x64xf32, #tpu.memory_space<vmem>>, vector<8x32xf32>,
    %311 = tpu.concatenate %301, %303 in 1 : vector<8x32xf32>, vector<8x32xf32> -> vector<8x64xf32>
    %c0_103 = arith.constant 0 : index
    %c0_104 = arith.constant 0 : index
    %312 = vector.load %arg3[%c0_103, %c0_104] : memref<64x256xf32, #tpu.memory_space<vmem>>, vector<64x256xf32>
    %cst_105 = arith.constant dense<0.000000e+00> : vector<8x256xf32>
    %313 = tpu.matmul %311, %312, %cst_105 {dimension_numbers = #tpu.dot_dimension_numbers<[1], [0], [0], [1], [0, 0, 1, 1], [], []>} : vector<8x64xf32>, vector<64x256xf32>, vector<8x256xf32> -> vector<8x256xf32>
    %c32_106 = arith.constant 32 : index
    %c0_107 = arith.constant 0 : index
    %314 = vector.load %arg16[%c32_106, %c0_107] : memref<64x256xf32, #tpu.memory_space<vmem>>, vector<8x128xf32>
    %315 = vector.extract_strided_slice %313 {offsets = [0, 0], sizes = [8, 128], strides = [1, 1]} : vector<8x256xf32> to vector<8x128xf32>
    %316 = arith.addf %314, %315 : vector<8x128xf32>
    %c24_108 = arith.constant 24 : index
    %c128_109 = arith.constant 128 : index
    %317 = vector.load %arg16[%c24_108, %c128_109] : memref<64x256xf32, #tpu.memory_space<vmem>>, vector<8x128xf32>
    %318 = vector.extract_strided_slice %313 {offsets = [0, 128], sizes = [8, 128], strides = [1, 1]} : vector<8x256xf32> to vector<8x128xf32>
    %319 = arith.addf %317, %318 : vector<8x128xf32>
    %c32_110 = arith.constant 32 : index
    %c0_111 = arith.constant 0 : index
    %320 = vector.load %arg1[%c32_110, %c0_111] : memref<64x32xf32, #tpu.memory_space<vmem>>, vector<8x32xf32>
    %cst_112 = arith.constant 5.000000e-01 : f32
    %321 = vector.broadcast %cst_112 : f32 to vector<8x32xf32>
    %322 = arith.cmpf ogt, %320, %321 : vector<8x32xf32>
    %c24_113 = arith.constant 24 : index
    %c0_114 = arith.constant 0 : index
    %323 = vector.load %arg1[%c24_113, %c0_114] : memref<64x32xf32, #tpu.memory_space<vmem>>, vector<8x32xf32>
    %cst_115 = arith.constant 5.000000e-01 : f32
    %324 = vector.broadcast %cst_115 : f32 to vector<8x32xf32>
    %325 = arith.cmpf ogt, %323, %324 : vector<8x32xf32>
    %326 = vector.extract_strided_slice %316 {offsets = [0, 0], sizes = [8, 32], strides = [1, 1]} : vector<8x128xf32> to vector<8x32xf32>
    %327 = arith.negf %326 : vector<8x32xf32>
    %328 = math.exp %327 : vector<8x32xf32>
    %cst_116 = arith.constant 1.000000e+00 : f32
    %329 = vector.broadcast %cst_116 : f32 to vector<8x32xf32>
    %330 = arith.addf %329, %328 : vector<8x32xf32>
    %331 = arith.divf %329, %330 : vector<8x32xf32>
    %332 = vector.extract_strided_slice %316 {offsets = [0, 32], sizes = [8, 32], strides = [1, 1]} : vector<8x128xf32> to vector<8x32xf32>
    %333 = arith.negf %332 : vector<8x32xf32>
    %334 = math.exp %333 : vector<8x32xf32>
    %cst_117 = arith.constant 1.000000e+00 : f32
    %335 = vector.broadcast %cst_117 : f32 to vector<8x32xf32>
    %336 = arith.addf %335, %334 : vector<8x32xf32>
    %337 = arith.divf %335, %336 : vector<8x32xf32>
    %338 = vector.extract_strided_slice %316 {offsets = [0, 64], sizes = [8, 32], strides = [1, 1]} : vector<8x128xf32> to vector<8x32xf32>
    %339 = math.tanh %338 : vector<8x32xf32>
    %340 = vector.extract_strided_slice %316 {offsets = [0, 96], sizes = [8, 32], strides = [1, 1]} : vector<8x128xf32> to vector<8x32xf32>
    %341 = arith.negf %340 : vector<8x32xf32>
    %342 = math.exp %341 : vector<8x32xf32>
    %cst_118 = arith.constant 1.000000e+00 : f32
    %343 = vector.broadcast %cst_118 : f32 to vector<8x32xf32>
    %344 = arith.addf %343, %342 : vector<8x32xf32>
    %345 = arith.divf %343, %344 : vector<8x32xf32>
    %346 = arith.mulf %337, %302 : vector<8x32xf32>
    %347 = arith.mulf %331, %339 : vector<8x32xf32>
    %348 = arith.addf %346, %347 : vector<8x32xf32>
    %349 = math.tanh %348 : vector<8x32xf32>
    %350 = arith.mulf %345, %349 : vector<8x32xf32>
    %351 = vector.extract_strided_slice %319 {offsets = [0, 0], sizes = [8, 32], strides = [1, 1]} : vector<8x128xf32> to vector<8x32xf32>
    %352 = arith.negf %351 : vector<8x32xf32>
    %353 = math.exp %352 : vector<8x32xf32>
    %cst_119 = arith.constant 1.000000e+00 : f32
    %354 = vector.broadcast %cst_119 : f32 to vector<8x32xf32>
    %355 = arith.addf %354, %353 : vector<8x32xf32>
    %356 = arith.divf %354, %355 : vector<8x32xf32>
    %357 = vector.extract_strided_slice %319 {offsets = [0, 32], sizes = [8, 32], strides = [1, 1]} : vector<8x128xf32> to vector<8x32xf32>
    %358 = arith.negf %357 : vector<8x32xf32>
    %359 = math.exp %358 : vector<8x32xf32>
    %cst_120 = arith.constant 1.000000e+00 : f32
    %360 = vector.broadcast %cst_120 : f32 to vector<8x32xf32>
    %361 = arith.addf %360, %359 : vector<8x32xf32>
    %362 = arith.divf %360, %361 : vector<8x32xf32>
    %363 = vector.extract_strided_slice %319 {offsets = [0, 64], sizes = [8, 32], strides = [1, 1]} : vector<8x128xf32> to vector<8x32xf32>
    %364 = math.tanh %363 : vector<8x32xf32>
    %365 = vector.extract_strided_slice %319 {offsets = [0, 96], sizes = [8, 32], strides = [1, 1]} : vector<8x128xf32> to vector<8x32xf32>
    %366 = arith.negf %365 : vector<8x32xf32>
    %367 = math.exp %366 : vector<8x32xf32>
    %cst_121 = arith.constant 1.000000e+00 : f32
    %368 = vector.broadcast %cst_121 : f32 to vector<8x32xf32>
    %369 = arith.addf %368, %367 : vector<8x32xf32>
    %370 = arith.divf %368, %369 : vector<8x32xf32>
    %371 = arith.mulf %362, %304 : vector<8x32xf32>
    %372 = arith.mulf %356, %364 : vector<8x32xf32>
    %373 = arith.addf %371, %372 : vector<8x32xf32>
    %374 = math.tanh %373 : vector<8x32xf32>
    %375 = arith.mulf %370, %374 : vector<8x32xf32>
    %376 = arith.select %322, %350, %301 : vector<8x32xi1>, vector<8x32xf32>
    %377 = arith.select %322, %348, %302 : vector<8x32xi1>, vector<8x32xf32>
    %378 = arith.select %325, %375, %303 : vector<8x32xi1>, vector<8x32xf32>
    %379 = arith.select %325, %373, %304 : vector<8x32xi1>, vector<8x32xf32>
    %cst_122 = arith.constant 0.000000e+00 : f32
    %380 = vector.broadcast %cst_122 : f32 to vector<8x32xf32>
    %381 = arith.select %322, %350, %380 : vector<8x32xi1>, vector<8x32xf32>
    %c32_123 = arith.constant 32 : index
    %c0_124 = arith.constant 0 : index
    %382 = vector.load %arg17[%c32_123, %c0_124] : memref<64x64xf32, #tpu.memory_space<vmem>>, vector<8x32xf32>
    tpu.vector_store %arg17[%c32_123, %c0_124], %381 {strides = array<i32>} : memref<64x64xf32, #tpu.memory_space<vmem>>, vector<8x32xf32>,
    %cst_125 = arith.constant 0.000000e+00 : f32
    %383 = vector.broadcast %cst_125 : f32 to vector<8x32xf32>
    %384 = arith.select %325, %375, %383 : vector<8x32xi1>, vector<8x32xf32>
    %c24_126 = arith.constant 24 : index
    %c32_127 = arith.constant 32 : index
    %385 = vector.load %arg17[%c24_126, %c32_127] : memref<64x64xf32, #tpu.memory_space<vmem>>, vector<8x32xf32>
    tpu.vector_store %arg17[%c24_126, %c32_127], %384 {strides = array<i32>} : memref<64x64xf32, #tpu.memory_space<vmem>>, vector<8x32xf32>,
    %386 = tpu.concatenate %376, %378 in 1 : vector<8x32xf32>, vector<8x32xf32> -> vector<8x64xf32>
    %c0_128 = arith.constant 0 : index
    %c0_129 = arith.constant 0 : index
    %387 = vector.load %arg3[%c0_128, %c0_129] : memref<64x256xf32, #tpu.memory_space<vmem>>, vector<64x256xf32>
    %cst_130 = arith.constant dense<0.000000e+00> : vector<8x256xf32>
    %388 = tpu.matmul %386, %387, %cst_130 {dimension_numbers = #tpu.dot_dimension_numbers<[1], [0], [0], [1], [0, 0, 1, 1], [], []>} : vector<8x64xf32>, vector<64x256xf32>, vector<8x256xf32> -> vector<8x256xf32>
    %c40_131 = arith.constant 40 : index
    %c0_132 = arith.constant 0 : index
    %389 = vector.load %arg16[%c40_131, %c0_132] : memref<64x256xf32, #tpu.memory_space<vmem>>, vector<8x128xf32>
    %390 = vector.extract_strided_slice %388 {offsets = [0, 0], sizes = [8, 128], strides = [1, 1]} : vector<8x256xf32> to vector<8x128xf32>
    %391 = arith.addf %389, %390 : vector<8x128xf32>
    %c16_133 = arith.constant 16 : index
    %c128_134 = arith.constant 128 : index
    %392 = vector.load %arg16[%c16_133, %c128_134] : memref<64x256xf32, #tpu.memory_space<vmem>>, vector<8x128xf32>
    %393 = vector.extract_strided_slice %388 {offsets = [0, 128], sizes = [8, 128], strides = [1, 1]} : vector<8x256xf32> to vector<8x128xf32>
    %394 = arith.addf %392, %393 : vector<8x128xf32>
    %c40_135 = arith.constant 40 : index
    %c0_136 = arith.constant 0 : index
    %395 = vector.load %arg1[%c40_135, %c0_136] : memref<64x32xf32, #tpu.memory_space<vmem>>, vector<8x32xf32>
    %cst_137 = arith.constant 5.000000e-01 : f32
    %396 = vector.broadcast %cst_137 : f32 to vector<8x32xf32>
    %397 = arith.cmpf ogt, %395, %396 : vector<8x32xf32>
    %c16_138 = arith.constant 16 : index
    %c0_139 = arith.constant 0 : index
    %398 = vector.load %arg1[%c16_138, %c0_139] : memref<64x32xf32, #tpu.memory_space<vmem>>, vector<8x32xf32>
    %cst_140 = arith.constant 5.000000e-01 : f32
    %399 = vector.broadcast %cst_140 : f32 to vector<8x32xf32>
    %400 = arith.cmpf ogt, %398, %399 : vector<8x32xf32>
    %401 = vector.extract_strided_slice %391 {offsets = [0, 0], sizes = [8, 32], strides = [1, 1]} : vector<8x128xf32> to vector<8x32xf32>
    %402 = arith.negf %401 : vector<8x32xf32>
    %403 = math.exp %402 : vector<8x32xf32>
    %cst_141 = arith.constant 1.000000e+00 : f32
    %404 = vector.broadcast %cst_141 : f32 to vector<8x32xf32>
    %405 = arith.addf %404, %403 : vector<8x32xf32>
    %406 = arith.divf %404, %405 : vector<8x32xf32>
    %407 = vector.extract_strided_slice %391 {offsets = [0, 32], sizes = [8, 32], strides = [1, 1]} : vector<8x128xf32> to vector<8x32xf32>
    %408 = arith.negf %407 : vector<8x32xf32>
    %409 = math.exp %408 : vector<8x32xf32>
    %cst_142 = arith.constant 1.000000e+00 : f32
    %410 = vector.broadcast %cst_142 : f32 to vector<8x32xf32>
    %411 = arith.addf %410, %409 : vector<8x32xf32>
    %412 = arith.divf %410, %411 : vector<8x32xf32>
    %413 = vector.extract_strided_slice %391 {offsets = [0, 64], sizes = [8, 32], strides = [1, 1]} : vector<8x128xf32> to vector<8x32xf32>
    %414 = math.tanh %413 : vector<8x32xf32>
    %415 = vector.extract_strided_slice %391 {offsets = [0, 96], sizes = [8, 32], strides = [1, 1]} : vector<8x128xf32> to vector<8x32xf32>
    %416 = arith.negf %415 : vector<8x32xf32>
    %417 = math.exp %416 : vector<8x32xf32>
    %cst_143 = arith.constant 1.000000e+00 : f32
    %418 = vector.broadcast %cst_143 : f32 to vector<8x32xf32>
    %419 = arith.addf %418, %417 : vector<8x32xf32>
    %420 = arith.divf %418, %419 : vector<8x32xf32>
    %421 = arith.mulf %412, %377 : vector<8x32xf32>
    %422 = arith.mulf %406, %414 : vector<8x32xf32>
    %423 = arith.addf %421, %422 : vector<8x32xf32>
    %424 = math.tanh %423 : vector<8x32xf32>
    %425 = arith.mulf %420, %424 : vector<8x32xf32>
    %426 = vector.extract_strided_slice %394 {offsets = [0, 0], sizes = [8, 32], strides = [1, 1]} : vector<8x128xf32> to vector<8x32xf32>
    %427 = arith.negf %426 : vector<8x32xf32>
    %428 = math.exp %427 : vector<8x32xf32>
    %cst_144 = arith.constant 1.000000e+00 : f32
    %429 = vector.broadcast %cst_144 : f32 to vector<8x32xf32>
    %430 = arith.addf %429, %428 : vector<8x32xf32>
    %431 = arith.divf %429, %430 : vector<8x32xf32>
    %432 = vector.extract_strided_slice %394 {offsets = [0, 32], sizes = [8, 32], strides = [1, 1]} : vector<8x128xf32> to vector<8x32xf32>
    %433 = arith.negf %432 : vector<8x32xf32>
    %434 = math.exp %433 : vector<8x32xf32>
    %cst_145 = arith.constant 1.000000e+00 : f32
    %435 = vector.broadcast %cst_145 : f32 to vector<8x32xf32>
    %436 = arith.addf %435, %434 : vector<8x32xf32>
    %437 = arith.divf %435, %436 : vector<8x32xf32>
    %438 = vector.extract_strided_slice %394 {offsets = [0, 64], sizes = [8, 32], strides = [1, 1]} : vector<8x128xf32> to vector<8x32xf32>
    %439 = math.tanh %438 : vector<8x32xf32>
    %440 = vector.extract_strided_slice %394 {offsets = [0, 96], sizes = [8, 32], strides = [1, 1]} : vector<8x128xf32> to vector<8x32xf32>
    %441 = arith.negf %440 : vector<8x32xf32>
    %442 = math.exp %441 : vector<8x32xf32>
    %cst_146 = arith.constant 1.000000e+00 : f32
    %443 = vector.broadcast %cst_146 : f32 to vector<8x32xf32>
    %444 = arith.addf %443, %442 : vector<8x32xf32>
    %445 = arith.divf %443, %444 : vector<8x32xf32>
    %446 = arith.mulf %437, %379 : vector<8x32xf32>
    %447 = arith.mulf %431, %439 : vector<8x32xf32>
    %448 = arith.addf %446, %447 : vector<8x32xf32>
    %449 = math.tanh %448 : vector<8x32xf32>
    %450 = arith.mulf %445, %449 : vector<8x32xf32>
    %451 = arith.select %397, %425, %376 : vector<8x32xi1>, vector<8x32xf32>
    %452 = arith.select %397, %423, %377 : vector<8x32xi1>, vector<8x32xf32>
    %453 = arith.select %400, %450, %378 : vector<8x32xi1>, vector<8x32xf32>
    %454 = arith.select %400, %448, %379 : vector<8x32xi1>, vector<8x32xf32>
    %cst_147 = arith.constant 0.000000e+00 : f32
    %455 = vector.broadcast %cst_147 : f32 to vector<8x32xf32>
    %456 = arith.select %397, %425, %455 : vector<8x32xi1>, vector<8x32xf32>
    %c40_148 = arith.constant 40 : index
    %c0_149 = arith.constant 0 : index
    %457 = vector.load %arg17[%c40_148, %c0_149] : memref<64x64xf32, #tpu.memory_space<vmem>>, vector<8x32xf32>
    tpu.vector_store %arg17[%c40_148, %c0_149], %456 {strides = array<i32>} : memref<64x64xf32, #tpu.memory_space<vmem>>, vector<8x32xf32>,
    %cst_150 = arith.constant 0.000000e+00 : f32
    %458 = vector.broadcast %cst_150 : f32 to vector<8x32xf32>
    %459 = arith.select %400, %450, %458 : vector<8x32xi1>, vector<8x32xf32>
    %c16_151 = arith.constant 16 : index
    %c32_152 = arith.constant 32 : index
    %460 = vector.load %arg17[%c16_151, %c32_152] : memref<64x64xf32, #tpu.memory_space<vmem>>, vector<8x32xf32>
    tpu.vector_store %arg17[%c16_151, %c32_152], %459 {strides = array<i32>} : memref<64x64xf32, #tpu.memory_space<vmem>>, vector<8x32xf32>,
    %461 = tpu.concatenate %451, %453 in 1 : vector<8x32xf32>, vector<8x32xf32> -> vector<8x64xf32>
    %c0_153 = arith.constant 0 : index
    %c0_154 = arith.constant 0 : index
    %462 = vector.load %arg3[%c0_153, %c0_154] : memref<64x256xf32, #tpu.memory_space<vmem>>, vector<64x256xf32>
    %cst_155 = arith.constant dense<0.000000e+00> : vector<8x256xf32>
    %463 = tpu.matmul %461, %462, %cst_155 {dimension_numbers = #tpu.dot_dimension_numbers<[1], [0], [0], [1], [0, 0, 1, 1], [], []>} : vector<8x64xf32>, vector<64x256xf32>, vector<8x256xf32> -> vector<8x256xf32>
    %c48_156 = arith.constant 48 : index
    %c0_157 = arith.constant 0 : index
    %464 = vector.load %arg16[%c48_156, %c0_157] : memref<64x256xf32, #tpu.memory_space<vmem>>, vector<8x128xf32>
    %465 = vector.extract_strided_slice %463 {offsets = [0, 0], sizes = [8, 128], strides = [1, 1]} : vector<8x256xf32> to vector<8x128xf32>
    %466 = arith.addf %464, %465 : vector<8x128xf32>
    %c8_158 = arith.constant 8 : index
    %c128_159 = arith.constant 128 : index
    %467 = vector.load %arg16[%c8_158, %c128_159] : memref<64x256xf32, #tpu.memory_space<vmem>>, vector<8x128xf32>
    %468 = vector.extract_strided_slice %463 {offsets = [0, 128], sizes = [8, 128], strides = [1, 1]} : vector<8x256xf32> to vector<8x128xf32>
    %469 = arith.addf %467, %468 : vector<8x128xf32>
    %c48_160 = arith.constant 48 : index
    %c0_161 = arith.constant 0 : index
    %470 = vector.load %arg1[%c48_160, %c0_161] : memref<64x32xf32, #tpu.memory_space<vmem>>, vector<8x32xf32>
    %cst_162 = arith.constant 5.000000e-01 : f32
    %471 = vector.broadcast %cst_162 : f32 to vector<8x32xf32>
    %472 = arith.cmpf ogt, %470, %471 : vector<8x32xf32>
    %c8_163 = arith.constant 8 : index
    %c0_164 = arith.constant 0 : index
    %473 = vector.load %arg1[%c8_163, %c0_164] : memref<64x32xf32, #tpu.memory_space<vmem>>, vector<8x32xf32>
    %cst_165 = arith.constant 5.000000e-01 : f32
    %474 = vector.broadcast %cst_165 : f32 to vector<8x32xf32>
    %475 = arith.cmpf ogt, %473, %474 : vector<8x32xf32>
    %476 = vector.extract_strided_slice %466 {offsets = [0, 0], sizes = [8, 32], strides = [1, 1]} : vector<8x128xf32> to vector<8x32xf32>
    %477 = arith.negf %476 : vector<8x32xf32>
    %478 = math.exp %477 : vector<8x32xf32>
    %cst_166 = arith.constant 1.000000e+00 : f32
    %479 = vector.broadcast %cst_166 : f32 to vector<8x32xf32>
    %480 = arith.addf %479, %478 : vector<8x32xf32>
    %481 = arith.divf %479, %480 : vector<8x32xf32>
    %482 = vector.extract_strided_slice %466 {offsets = [0, 32], sizes = [8, 32], strides = [1, 1]} : vector<8x128xf32> to vector<8x32xf32>
    %483 = arith.negf %482 : vector<8x32xf32>
    %484 = math.exp %483 : vector<8x32xf32>
    %cst_167 = arith.constant 1.000000e+00 : f32
    %485 = vector.broadcast %cst_167 : f32 to vector<8x32xf32>
    %486 = arith.addf %485, %484 : vector<8x32xf32>
    %487 = arith.divf %485, %486 : vector<8x32xf32>
    %488 = vector.extract_strided_slice %466 {offsets = [0, 64], sizes = [8, 32], strides = [1, 1]} : vector<8x128xf32> to vector<8x32xf32>
    %489 = math.tanh %488 : vector<8x32xf32>
    %490 = vector.extract_strided_slice %466 {offsets = [0, 96], sizes = [8, 32], strides = [1, 1]} : vector<8x128xf32> to vector<8x32xf32>
    %491 = arith.negf %490 : vector<8x32xf32>
    %492 = math.exp %491 : vector<8x32xf32>
    %cst_168 = arith.constant 1.000000e+00 : f32
    %493 = vector.broadcast %cst_168 : f32 to vector<8x32xf32>
    %494 = arith.addf %493, %492 : vector<8x32xf32>
    %495 = arith.divf %493, %494 : vector<8x32xf32>
    %496 = arith.mulf %487, %452 : vector<8x32xf32>
    %497 = arith.mulf %481, %489 : vector<8x32xf32>
    %498 = arith.addf %496, %497 : vector<8x32xf32>
    %499 = math.tanh %498 : vector<8x32xf32>
    %500 = arith.mulf %495, %499 : vector<8x32xf32>
    %501 = vector.extract_strided_slice %469 {offsets = [0, 0], sizes = [8, 32], strides = [1, 1]} : vector<8x128xf32> to vector<8x32xf32>
    %502 = arith.negf %501 : vector<8x32xf32>
    %503 = math.exp %502 : vector<8x32xf32>
    %cst_169 = arith.constant 1.000000e+00 : f32
    %504 = vector.broadcast %cst_169 : f32 to vector<8x32xf32>
    %505 = arith.addf %504, %503 : vector<8x32xf32>
    %506 = arith.divf %504, %505 : vector<8x32xf32>
    %507 = vector.extract_strided_slice %469 {offsets = [0, 32], sizes = [8, 32], strides = [1, 1]} : vector<8x128xf32> to vector<8x32xf32>
    %508 = arith.negf %507 : vector<8x32xf32>
    %509 = math.exp %508 : vector<8x32xf32>
    %cst_170 = arith.constant 1.000000e+00 : f32
    %510 = vector.broadcast %cst_170 : f32 to vector<8x32xf32>
    %511 = arith.addf %510, %509 : vector<8x32xf32>
    %512 = arith.divf %510, %511 : vector<8x32xf32>
    %513 = vector.extract_strided_slice %469 {offsets = [0, 64], sizes = [8, 32], strides = [1, 1]} : vector<8x128xf32> to vector<8x32xf32>
    %514 = math.tanh %513 : vector<8x32xf32>
    %515 = vector.extract_strided_slice %469 {offsets = [0, 96], sizes = [8, 32], strides = [1, 1]} : vector<8x128xf32> to vector<8x32xf32>
    %516 = arith.negf %515 : vector<8x32xf32>
    %517 = math.exp %516 : vector<8x32xf32>
    %cst_171 = arith.constant 1.000000e+00 : f32
    %518 = vector.broadcast %cst_171 : f32 to vector<8x32xf32>
    %519 = arith.addf %518, %517 : vector<8x32xf32>
    %520 = arith.divf %518, %519 : vector<8x32xf32>
    %521 = arith.mulf %512, %454 : vector<8x32xf32>
    %522 = arith.mulf %506, %514 : vector<8x32xf32>
    %523 = arith.addf %521, %522 : vector<8x32xf32>
    %524 = math.tanh %523 : vector<8x32xf32>
    %525 = arith.mulf %520, %524 : vector<8x32xf32>
    %526 = arith.select %472, %500, %451 : vector<8x32xi1>, vector<8x32xf32>
    %527 = arith.select %472, %498, %452 : vector<8x32xi1>, vector<8x32xf32>
    %528 = arith.select %475, %525, %453 : vector<8x32xi1>, vector<8x32xf32>
    %529 = arith.select %475, %523, %454 : vector<8x32xi1>, vector<8x32xf32>
    %cst_172 = arith.constant 0.000000e+00 : f32
    %530 = vector.broadcast %cst_172 : f32 to vector<8x32xf32>
    %531 = arith.select %472, %500, %530 : vector<8x32xi1>, vector<8x32xf32>
    %c48_173 = arith.constant 48 : index
    %c0_174 = arith.constant 0 : index
    %532 = vector.load %arg17[%c48_173, %c0_174] : memref<64x64xf32, #tpu.memory_space<vmem>>, vector<8x32xf32>
    tpu.vector_store %arg17[%c48_173, %c0_174], %531 {strides = array<i32>} : memref<64x64xf32, #tpu.memory_space<vmem>>, vector<8x32xf32>,
    %cst_175 = arith.constant 0.000000e+00 : f32
    %533 = vector.broadcast %cst_175 : f32 to vector<8x32xf32>
    %534 = arith.select %475, %525, %533 : vector<8x32xi1>, vector<8x32xf32>
    %c8_176 = arith.constant 8 : index
    %c32_177 = arith.constant 32 : index
    %535 = vector.load %arg17[%c8_176, %c32_177] : memref<64x64xf32, #tpu.memory_space<vmem>>, vector<8x32xf32>
    tpu.vector_store %arg17[%c8_176, %c32_177], %534 {strides = array<i32>} : memref<64x64xf32, #tpu.memory_space<vmem>>, vector<8x32xf32>,
    %536 = tpu.concatenate %526, %528 in 1 : vector<8x32xf32>, vector<8x32xf32> -> vector<8x64xf32>
    %c0_178 = arith.constant 0 : index
    %c0_179 = arith.constant 0 : index
    %537 = vector.load %arg3[%c0_178, %c0_179] : memref<64x256xf32, #tpu.memory_space<vmem>>, vector<64x256xf32>
    %cst_180 = arith.constant dense<0.000000e+00> : vector<8x256xf32>
    %538 = tpu.matmul %536, %537, %cst_180 {dimension_numbers = #tpu.dot_dimension_numbers<[1], [0], [0], [1], [0, 0, 1, 1], [], []>} : vector<8x64xf32>, vector<64x256xf32>, vector<8x256xf32> -> vector<8x256xf32>
    %c56_181 = arith.constant 56 : index
    %c0_182 = arith.constant 0 : index
    %539 = vector.load %arg16[%c56_181, %c0_182] : memref<64x256xf32, #tpu.memory_space<vmem>>, vector<8x128xf32>
    %540 = vector.extract_strided_slice %538 {offsets = [0, 0], sizes = [8, 128], strides = [1, 1]} : vector<8x256xf32> to vector<8x128xf32>
    %541 = arith.addf %539, %540 : vector<8x128xf32>
    %c0_183 = arith.constant 0 : index
    %c128_184 = arith.constant 128 : index
    %542 = vector.load %arg16[%c0_183, %c128_184] : memref<64x256xf32, #tpu.memory_space<vmem>>, vector<8x128xf32>
    %543 = vector.extract_strided_slice %538 {offsets = [0, 128], sizes = [8, 128], strides = [1, 1]} : vector<8x256xf32> to vector<8x128xf32>
    %544 = arith.addf %542, %543 : vector<8x128xf32>
    %c56_185 = arith.constant 56 : index
    %c0_186 = arith.constant 0 : index
    %545 = vector.load %arg1[%c56_185, %c0_186] : memref<64x32xf32, #tpu.memory_space<vmem>>, vector<8x32xf32>
    %cst_187 = arith.constant 5.000000e-01 : f32
    %546 = vector.broadcast %cst_187 : f32 to vector<8x32xf32>
    %547 = arith.cmpf ogt, %545, %546 : vector<8x32xf32>
    %c0_188 = arith.constant 0 : index
    %c0_189 = arith.constant 0 : index
    %548 = vector.load %arg1[%c0_188, %c0_189] : memref<64x32xf32, #tpu.memory_space<vmem>>, vector<8x32xf32>
    %cst_190 = arith.constant 5.000000e-01 : f32
    %549 = vector.broadcast %cst_190 : f32 to vector<8x32xf32>
    %550 = arith.cmpf ogt, %548, %549 : vector<8x32xf32>
    %551 = vector.extract_strided_slice %541 {offsets = [0, 0], sizes = [8, 32], strides = [1, 1]} : vector<8x128xf32> to vector<8x32xf32>
    %552 = arith.negf %551 : vector<8x32xf32>
    %553 = math.exp %552 : vector<8x32xf32>
    %cst_191 = arith.constant 1.000000e+00 : f32
    %554 = vector.broadcast %cst_191 : f32 to vector<8x32xf32>
    %555 = arith.addf %554, %553 : vector<8x32xf32>
    %556 = arith.divf %554, %555 : vector<8x32xf32>
    %557 = vector.extract_strided_slice %541 {offsets = [0, 32], sizes = [8, 32], strides = [1, 1]} : vector<8x128xf32> to vector<8x32xf32>
    %558 = arith.negf %557 : vector<8x32xf32>
    %559 = math.exp %558 : vector<8x32xf32>
    %cst_192 = arith.constant 1.000000e+00 : f32
    %560 = vector.broadcast %cst_192 : f32 to vector<8x32xf32>
    %561 = arith.addf %560, %559 : vector<8x32xf32>
    %562 = arith.divf %560, %561 : vector<8x32xf32>
    %563 = vector.extract_strided_slice %541 {offsets = [0, 64], sizes = [8, 32], strides = [1, 1]} : vector<8x128xf32> to vector<8x32xf32>
    %564 = math.tanh %563 : vector<8x32xf32>
    %565 = vector.extract_strided_slice %541 {offsets = [0, 96], sizes = [8, 32], strides = [1, 1]} : vector<8x128xf32> to vector<8x32xf32>
    %566 = arith.negf %565 : vector<8x32xf32>
    %567 = math.exp %566 : vector<8x32xf32>
    %cst_193 = arith.constant 1.000000e+00 : f32
    %568 = vector.broadcast %cst_193 : f32 to vector<8x32xf32>
    %569 = arith.addf %568, %567 : vector<8x32xf32>
    %570 = arith.divf %568, %569 : vector<8x32xf32>
    %571 = arith.mulf %562, %527 : vector<8x32xf32>
    %572 = arith.mulf %556, %564 : vector<8x32xf32>
    %573 = arith.addf %571, %572 : vector<8x32xf32>
    %574 = math.tanh %573 : vector<8x32xf32>
    %575 = arith.mulf %570, %574 : vector<8x32xf32>
    %576 = vector.extract_strided_slice %544 {offsets = [0, 0], sizes = [8, 32], strides = [1, 1]} : vector<8x128xf32> to vector<8x32xf32>
    %577 = arith.negf %576 : vector<8x32xf32>
    %578 = math.exp %577 : vector<8x32xf32>
    %cst_194 = arith.constant 1.000000e+00 : f32
    %579 = vector.broadcast %cst_194 : f32 to vector<8x32xf32>
    %580 = arith.addf %579, %578 : vector<8x32xf32>
    %581 = arith.divf %579, %580 : vector<8x32xf32>
    %582 = vector.extract_strided_slice %544 {offsets = [0, 32], sizes = [8, 32], strides = [1, 1]} : vector<8x128xf32> to vector<8x32xf32>
    %583 = arith.negf %582 : vector<8x32xf32>
    %584 = math.exp %583 : vector<8x32xf32>
    %cst_195 = arith.constant 1.000000e+00 : f32
    %585 = vector.broadcast %cst_195 : f32 to vector<8x32xf32>
    %586 = arith.addf %585, %584 : vector<8x32xf32>
    %587 = arith.divf %585, %586 : vector<8x32xf32>
    %588 = vector.extract_strided_slice %544 {offsets = [0, 64], sizes = [8, 32], strides = [1, 1]} : vector<8x128xf32> to vector<8x32xf32>
    %589 = math.tanh %588 : vector<8x32xf32>
    %590 = vector.extract_strided_slice %544 {offsets = [0, 96], sizes = [8, 32], strides = [1, 1]} : vector<8x128xf32> to vector<8x32xf32>
    %591 = arith.negf %590 : vector<8x32xf32>
    %592 = math.exp %591 : vector<8x32xf32>
    %cst_196 = arith.constant 1.000000e+00 : f32
    %593 = vector.broadcast %cst_196 : f32 to vector<8x32xf32>
    %594 = arith.addf %593, %592 : vector<8x32xf32>
    %595 = arith.divf %593, %594 : vector<8x32xf32>
    %596 = arith.mulf %587, %529 : vector<8x32xf32>
    %597 = arith.mulf %581, %589 : vector<8x32xf32>
    %598 = arith.addf %596, %597 : vector<8x32xf32>
    %599 = math.tanh %598 : vector<8x32xf32>
    %600 = arith.mulf %595, %599 : vector<8x32xf32>
    %601 = arith.select %547, %575, %526 : vector<8x32xi1>, vector<8x32xf32>
    %602 = arith.select %550, %600, %528 : vector<8x32xi1>, vector<8x32xf32>
    %cst_197 = arith.constant 0.000000e+00 : f32
    %603 = vector.broadcast %cst_197 : f32 to vector<8x32xf32>
    %604 = arith.select %547, %575, %603 : vector<8x32xi1>, vector<8x32xf32>
    %c56_198 = arith.constant 56 : index
    %c0_199 = arith.constant 0 : index
    %605 = vector.load %arg17[%c56_198, %c0_199] : memref<64x64xf32, #tpu.memory_space<vmem>>, vector<8x32xf32>
    tpu.vector_store %arg17[%c56_198, %c0_199], %604 {strides = array<i32>} : memref<64x64xf32, #tpu.memory_space<vmem>>, vector<8x32xf32>,
    %cst_200 = arith.constant 0.000000e+00 : f32
    %606 = vector.broadcast %cst_200 : f32 to vector<8x32xf32>
    %607 = arith.select %550, %600, %606 : vector<8x32xi1>, vector<8x32xf32>
    %c0_201 = arith.constant 0 : index
    %c32_202 = arith.constant 32 : index
    %608 = vector.load %arg17[%c0_201, %c32_202] : memref<64x64xf32, #tpu.memory_space<vmem>>, vector<8x32xf32>
    tpu.vector_store %arg17[%c0_201, %c32_202], %607 {strides = array<i32>} : memref<64x64xf32, #tpu.memory_space<vmem>>, vector<8x32xf32>,
    %c0_203 = arith.constant 0 : index
    %c0_204 = arith.constant 0 : index
    %609 = vector.load %arg17[%c0_203, %c0_204] : memref<64x64xf32, #tpu.memory_space<vmem>>, vector<64x64xf32>
    %cst_205 = arith.constant dense<0.000000e+00> : vector<64xf32>
    %610 = vector.multi_reduction <add>, %609, %cst_205 [1] : vector<64x64xf32> to vector<64xf32>
    %611 = vector.shape_cast %610 : vector<64xf32> to vector<64x1xf32>
    %cst_206 = arith.constant 6.400000e+01 : f32
    %612 = vector.broadcast %cst_206 : f32 to vector<64x1xf32>
    %613 = arith.divf %611, %612 : vector<64x1xf32>
    %614 = vector.broadcast %613 : vector<64x1xf32> to vector<64x64xf32>
    %615 = arith.subf %609, %614 : vector<64x64xf32>
    %616 = arith.mulf %615, %615 : vector<64x64xf32>
    %cst_207 = arith.constant dense<0.000000e+00> : vector<64xf32>
    %617 = vector.multi_reduction <add>, %616, %cst_207 [1] : vector<64x64xf32> to vector<64xf32>
    %618 = vector.shape_cast %617 : vector<64xf32> to vector<64x1xf32>
    %cst_208 = arith.constant 6.400000e+01 : f32
    %619 = vector.broadcast %cst_208 : f32 to vector<64x1xf32>
    %620 = arith.divf %618, %619 : vector<64x1xf32>
    %621 = vector.broadcast %613 : vector<64x1xf32> to vector<64x64xf32>
    %622 = arith.subf %609, %621 : vector<64x64xf32>
    %cst_209 = arith.constant 9.99999974E-6 : f32
    %623 = vector.broadcast %cst_209 : f32 to vector<64x1xf32>
    %624 = arith.addf %620, %623 : vector<64x1xf32>
    %625 = math.rsqrt %624 : vector<64x1xf32>
    %626 = vector.broadcast %625 : vector<64x1xf32> to vector<64x64xf32>
    %627 = arith.mulf %622, %626 : vector<64x64xf32>
    %c0_210 = arith.constant 0 : index
    %c0_211 = arith.constant 0 : index
    %628 = vector.load %arg5[%c0_210, %c0_211] : memref<1x64xf32, #tpu.memory_space<vmem>>, vector<1x64xf32>
    %629 = vector.broadcast %628 : vector<1x64xf32> to vector<64x64xf32>
    %630 = arith.mulf %627, %629 : vector<64x64xf32>
    %c0_212 = arith.constant 0 : index
    %c0_213 = arith.constant 0 : index
    %631 = vector.load %arg6[%c0_212, %c0_213] : memref<1x64xf32, #tpu.memory_space<vmem>>, vector<1x64xf32>
    %632 = vector.broadcast %631 : vector<1x64xf32> to vector<64x64xf32>
    %633 = arith.addf %630, %632 : vector<64x64xf32>
    %c0_214 = arith.constant 0 : index
    %c0_215 = arith.constant 0 : index
    %634 = vector.load %arg7[%c0_214, %c0_215] : memref<64x256xf32, #tpu.memory_space<vmem>>, vector<64x256xf32>
    %cst_216 = arith.constant dense<0.000000e+00> : vector<64x256xf32>
    %635 = tpu.matmul %633, %634, %cst_216 {dimension_numbers = #tpu.dot_dimension_numbers<[1], [0], [0], [1], [0, 0, 1, 1], [], []>} : vector<64x64xf32>, vector<64x256xf32>, vector<64x256xf32> -> vector<64x256xf32>
    %c0_217 = arith.constant 0 : index
    %c0_218 = arith.constant 0 : index
    %636 = vector.load %arg9[%c0_217, %c0_218] : memref<1x256xf32, #tpu.memory_space<vmem>>, vector<1x256xf32>
    %637 = vector.broadcast %636 : vector<1x256xf32> to vector<64x256xf32>
    %638 = arith.addf %635, %637 : vector<64x256xf32>
    %c0_219 = arith.constant 0 : index
    %c0_220 = arith.constant 0 : index
    %639 = vector.load %arg16[%c0_219, %c0_220] : memref<64x256xf32, #tpu.memory_space<vmem>>, vector<64x256xf32>
    tpu.vector_store %arg16[%c0_219, %c0_220], %638 {strides = array<i32>} : memref<64x256xf32, #tpu.memory_space<vmem>>, vector<64x256xf32>,
    %cst_221 = arith.constant 0.000000e+00 : f32
    %640 = vector.broadcast %cst_221 : f32 to vector<8x32xf32>
    %cst_222 = arith.constant 0.000000e+00 : f32
    %641 = vector.broadcast %cst_222 : f32 to vector<8x32xf32>
    %cst_223 = arith.constant 0.000000e+00 : f32
    %642 = vector.broadcast %cst_223 : f32 to vector<8x32xf32>
    %cst_224 = arith.constant 0.000000e+00 : f32
    %643 = vector.broadcast %cst_224 : f32 to vector<8x32xf32>
    %644 = tpu.concatenate %640, %641 in 1 : vector<8x32xf32>, vector<8x32xf32> -> vector<8x64xf32>
    %c0_225 = arith.constant 0 : index
    %c0_226 = arith.constant 0 : index
    %645 = vector.load %arg8[%c0_225, %c0_226] : memref<64x256xf32, #tpu.memory_space<vmem>>, vector<64x256xf32>
    %cst_227 = arith.constant dense<0.000000e+00> : vector<8x256xf32>
    %646 = tpu.matmul %644, %645, %cst_227 {dimension_numbers = #tpu.dot_dimension_numbers<[1], [0], [0], [1], [0, 0, 1, 1], [], []>} : vector<8x64xf32>, vector<64x256xf32>, vector<8x256xf32> -> vector<8x256xf32>
    %c0_228 = arith.constant 0 : index
    %c0_229 = arith.constant 0 : index
    %647 = vector.load %arg16[%c0_228, %c0_229] : memref<64x256xf32, #tpu.memory_space<vmem>>, vector<8x128xf32>
    %648 = vector.extract_strided_slice %646 {offsets = [0, 0], sizes = [8, 128], strides = [1, 1]} : vector<8x256xf32> to vector<8x128xf32>
    %649 = arith.addf %647, %648 : vector<8x128xf32>
    %c56_230 = arith.constant 56 : index
    %c128_231 = arith.constant 128 : index
    %650 = vector.load %arg16[%c56_230, %c128_231] : memref<64x256xf32, #tpu.memory_space<vmem>>, vector<8x128xf32>
    %651 = vector.extract_strided_slice %646 {offsets = [0, 128], sizes = [8, 128], strides = [1, 1]} : vector<8x256xf32> to vector<8x128xf32>
    %652 = arith.addf %650, %651 : vector<8x128xf32>
    %c0_232 = arith.constant 0 : index
    %c0_233 = arith.constant 0 : index
    %653 = vector.load %arg1[%c0_232, %c0_233] : memref<64x32xf32, #tpu.memory_space<vmem>>, vector<8x32xf32>
    %cst_234 = arith.constant 5.000000e-01 : f32
    %654 = vector.broadcast %cst_234 : f32 to vector<8x32xf32>
    %655 = arith.cmpf ogt, %653, %654 : vector<8x32xf32>
    %c56_235 = arith.constant 56 : index
    %c0_236 = arith.constant 0 : index
    %656 = vector.load %arg1[%c56_235, %c0_236] : memref<64x32xf32, #tpu.memory_space<vmem>>, vector<8x32xf32>
    %cst_237 = arith.constant 5.000000e-01 : f32
    %657 = vector.broadcast %cst_237 : f32 to vector<8x32xf32>
    %658 = arith.cmpf ogt, %656, %657 : vector<8x32xf32>
    %659 = vector.extract_strided_slice %649 {offsets = [0, 0], sizes = [8, 32], strides = [1, 1]} : vector<8x128xf32> to vector<8x32xf32>
    %660 = arith.negf %659 : vector<8x32xf32>
    %661 = math.exp %660 : vector<8x32xf32>
    %cst_238 = arith.constant 1.000000e+00 : f32
    %662 = vector.broadcast %cst_238 : f32 to vector<8x32xf32>
    %663 = arith.addf %662, %661 : vector<8x32xf32>
    %664 = arith.divf %662, %663 : vector<8x32xf32>
    %665 = vector.extract_strided_slice %649 {offsets = [0, 32], sizes = [8, 32], strides = [1, 1]} : vector<8x128xf32> to vector<8x32xf32>
    %666 = arith.negf %665 : vector<8x32xf32>
    %667 = math.exp %666 : vector<8x32xf32>
    %cst_239 = arith.constant 1.000000e+00 : f32
    %668 = vector.broadcast %cst_239 : f32 to vector<8x32xf32>
    %669 = arith.addf %668, %667 : vector<8x32xf32>
    %670 = arith.divf %668, %669 : vector<8x32xf32>
    %671 = vector.extract_strided_slice %649 {offsets = [0, 64], sizes = [8, 32], strides = [1, 1]} : vector<8x128xf32> to vector<8x32xf32>
    %672 = math.tanh %671 : vector<8x32xf32>
    %673 = vector.extract_strided_slice %649 {offsets = [0, 96], sizes = [8, 32], strides = [1, 1]} : vector<8x128xf32> to vector<8x32xf32>
    %674 = arith.negf %673 : vector<8x32xf32>
    %675 = math.exp %674 : vector<8x32xf32>
    %cst_240 = arith.constant 1.000000e+00 : f32
    %676 = vector.broadcast %cst_240 : f32 to vector<8x32xf32>
    %677 = arith.addf %676, %675 : vector<8x32xf32>
    %678 = arith.divf %676, %677 : vector<8x32xf32>
    %679 = arith.mulf %670, %642 : vector<8x32xf32>
    %680 = arith.mulf %664, %672 : vector<8x32xf32>
    %681 = arith.addf %679, %680 : vector<8x32xf32>
    %682 = math.tanh %681 : vector<8x32xf32>
    %683 = arith.mulf %678, %682 : vector<8x32xf32>
    %684 = vector.extract_strided_slice %652 {offsets = [0, 0], sizes = [8, 32], strides = [1, 1]} : vector<8x128xf32> to vector<8x32xf32>
    %685 = arith.negf %684 : vector<8x32xf32>
    %686 = math.exp %685 : vector<8x32xf32>
    %cst_241 = arith.constant 1.000000e+00 : f32
    %687 = vector.broadcast %cst_241 : f32 to vector<8x32xf32>
    %688 = arith.addf %687, %686 : vector<8x32xf32>
    %689 = arith.divf %687, %688 : vector<8x32xf32>
    %690 = vector.extract_strided_slice %652 {offsets = [0, 32], sizes = [8, 32], strides = [1, 1]} : vector<8x128xf32> to vector<8x32xf32>
    %691 = arith.negf %690 : vector<8x32xf32>
    %692 = math.exp %691 : vector<8x32xf32>
    %cst_242 = arith.constant 1.000000e+00 : f32
    %693 = vector.broadcast %cst_242 : f32 to vector<8x32xf32>
    %694 = arith.addf %693, %692 : vector<8x32xf32>
    %695 = arith.divf %693, %694 : vector<8x32xf32>
    %696 = vector.extract_strided_slice %652 {offsets = [0, 64], sizes = [8, 32], strides = [1, 1]} : vector<8x128xf32> to vector<8x32xf32>
    %697 = math.tanh %696 : vector<8x32xf32>
    %698 = vector.extract_strided_slice %652 {offsets = [0, 96], sizes = [8, 32], strides = [1, 1]} : vector<8x128xf32> to vector<8x32xf32>
    %699 = arith.negf %698 : vector<8x32xf32>
    %700 = math.exp %699 : vector<8x32xf32>
    %cst_243 = arith.constant 1.000000e+00 : f32
    %701 = vector.broadcast %cst_243 : f32 to vector<8x32xf32>
    %702 = arith.addf %701, %700 : vector<8x32xf32>
    %703 = arith.divf %701, %702 : vector<8x32xf32>
    %704 = arith.mulf %695, %643 : vector<8x32xf32>
    %705 = arith.mulf %689, %697 : vector<8x32xf32>
    %706 = arith.addf %704, %705 : vector<8x32xf32>
    %707 = math.tanh %706 : vector<8x32xf32>
    %708 = arith.mulf %703, %707 : vector<8x32xf32>
    %709 = arith.select %655, %683, %640 : vector<8x32xi1>, vector<8x32xf32>
    %710 = arith.select %655, %681, %642 : vector<8x32xi1>, vector<8x32xf32>
    %711 = arith.select %658, %708, %641 : vector<8x32xi1>, vector<8x32xf32>
    %712 = arith.select %658, %706, %643 : vector<8x32xi1>, vector<8x32xf32>
    %713 = tpu.concatenate %709, %711 in 1 : vector<8x32xf32>, vector<8x32xf32> -> vector<8x64xf32>
    %c0_244 = arith.constant 0 : index
    %c0_245 = arith.constant 0 : index
    %714 = vector.load %arg8[%c0_244, %c0_245] : memref<64x256xf32, #tpu.memory_space<vmem>>, vector<64x256xf32>
    %cst_246 = arith.constant dense<0.000000e+00> : vector<8x256xf32>
    %715 = tpu.matmul %713, %714, %cst_246 {dimension_numbers = #tpu.dot_dimension_numbers<[1], [0], [0], [1], [0, 0, 1, 1], [], []>} : vector<8x64xf32>, vector<64x256xf32>, vector<8x256xf32> -> vector<8x256xf32>
    %c8_247 = arith.constant 8 : index
    %c0_248 = arith.constant 0 : index
    %716 = vector.load %arg16[%c8_247, %c0_248] : memref<64x256xf32, #tpu.memory_space<vmem>>, vector<8x128xf32>
    %717 = vector.extract_strided_slice %715 {offsets = [0, 0], sizes = [8, 128], strides = [1, 1]} : vector<8x256xf32> to vector<8x128xf32>
    %718 = arith.addf %716, %717 : vector<8x128xf32>
    %c48_249 = arith.constant 48 : index
    %c128_250 = arith.constant 128 : index
    %719 = vector.load %arg16[%c48_249, %c128_250] : memref<64x256xf32, #tpu.memory_space<vmem>>, vector<8x128xf32>
    %720 = vector.extract_strided_slice %715 {offsets = [0, 128], sizes = [8, 128], strides = [1, 1]} : vector<8x256xf32> to vector<8x128xf32>
    %721 = arith.addf %719, %720 : vector<8x128xf32>
    %c8_251 = arith.constant 8 : index
    %c0_252 = arith.constant 0 : index
    %722 = vector.load %arg1[%c8_251, %c0_252] : memref<64x32xf32, #tpu.memory_space<vmem>>, vector<8x32xf32>
    %cst_253 = arith.constant 5.000000e-01 : f32
    %723 = vector.broadcast %cst_253 : f32 to vector<8x32xf32>
    %724 = arith.cmpf ogt, %722, %723 : vector<8x32xf32>
    %c48_254 = arith.constant 48 : index
    %c0_255 = arith.constant 0 : index
    %725 = vector.load %arg1[%c48_254, %c0_255] : memref<64x32xf32, #tpu.memory_space<vmem>>, vector<8x32xf32>
    %cst_256 = arith.constant 5.000000e-01 : f32
    %726 = vector.broadcast %cst_256 : f32 to vector<8x32xf32>
    %727 = arith.cmpf ogt, %725, %726 : vector<8x32xf32>
    %728 = vector.extract_strided_slice %718 {offsets = [0, 0], sizes = [8, 32], strides = [1, 1]} : vector<8x128xf32> to vector<8x32xf32>
    %729 = arith.negf %728 : vector<8x32xf32>
    %730 = math.exp %729 : vector<8x32xf32>
    %cst_257 = arith.constant 1.000000e+00 : f32
    %731 = vector.broadcast %cst_257 : f32 to vector<8x32xf32>
    %732 = arith.addf %731, %730 : vector<8x32xf32>
    %733 = arith.divf %731, %732 : vector<8x32xf32>
    %734 = vector.extract_strided_slice %718 {offsets = [0, 32], sizes = [8, 32], strides = [1, 1]} : vector<8x128xf32> to vector<8x32xf32>
    %735 = arith.negf %734 : vector<8x32xf32>
    %736 = math.exp %735 : vector<8x32xf32>
    %cst_258 = arith.constant 1.000000e+00 : f32
    %737 = vector.broadcast %cst_258 : f32 to vector<8x32xf32>
    %738 = arith.addf %737, %736 : vector<8x32xf32>
    %739 = arith.divf %737, %738 : vector<8x32xf32>
    %740 = vector.extract_strided_slice %718 {offsets = [0, 64], sizes = [8, 32], strides = [1, 1]} : vector<8x128xf32> to vector<8x32xf32>
    %741 = math.tanh %740 : vector<8x32xf32>
    %742 = vector.extract_strided_slice %718 {offsets = [0, 96], sizes = [8, 32], strides = [1, 1]} : vector<8x128xf32> to vector<8x32xf32>
    %743 = arith.negf %742 : vector<8x32xf32>
    %744 = math.exp %743 : vector<8x32xf32>
    %cst_259 = arith.constant 1.000000e+00 : f32
    %745 = vector.broadcast %cst_259 : f32 to vector<8x32xf32>
    %746 = arith.addf %745, %744 : vector<8x32xf32>
    %747 = arith.divf %745, %746 : vector<8x32xf32>
    %748 = arith.mulf %739, %710 : vector<8x32xf32>
    %749 = arith.mulf %733, %741 : vector<8x32xf32>
    %750 = arith.addf %748, %749 : vector<8x32xf32>
    %751 = math.tanh %750 : vector<8x32xf32>
    %752 = arith.mulf %747, %751 : vector<8x32xf32>
    %753 = vector.extract_strided_slice %721 {offsets = [0, 0], sizes = [8, 32], strides = [1, 1]} : vector<8x128xf32> to vector<8x32xf32>
    %754 = arith.negf %753 : vector<8x32xf32>
    %755 = math.exp %754 : vector<8x32xf32>
    %cst_260 = arith.constant 1.000000e+00 : f32
    %756 = vector.broadcast %cst_260 : f32 to vector<8x32xf32>
    %757 = arith.addf %756, %755 : vector<8x32xf32>
    %758 = arith.divf %756, %757 : vector<8x32xf32>
    %759 = vector.extract_strided_slice %721 {offsets = [0, 32], sizes = [8, 32], strides = [1, 1]} : vector<8x128xf32> to vector<8x32xf32>
    %760 = arith.negf %759 : vector<8x32xf32>
    %761 = math.exp %760 : vector<8x32xf32>
    %cst_261 = arith.constant 1.000000e+00 : f32
    %762 = vector.broadcast %cst_261 : f32 to vector<8x32xf32>
    %763 = arith.addf %762, %761 : vector<8x32xf32>
    %764 = arith.divf %762, %763 : vector<8x32xf32>
    %765 = vector.extract_strided_slice %721 {offsets = [0, 64], sizes = [8, 32], strides = [1, 1]} : vector<8x128xf32> to vector<8x32xf32>
    %766 = math.tanh %765 : vector<8x32xf32>
    %767 = vector.extract_strided_slice %721 {offsets = [0, 96], sizes = [8, 32], strides = [1, 1]} : vector<8x128xf32> to vector<8x32xf32>
    %768 = arith.negf %767 : vector<8x32xf32>
    %769 = math.exp %768 : vector<8x32xf32>
    %cst_262 = arith.constant 1.000000e+00 : f32
    %770 = vector.broadcast %cst_262 : f32 to vector<8x32xf32>
    %771 = arith.addf %770, %769 : vector<8x32xf32>
    %772 = arith.divf %770, %771 : vector<8x32xf32>
    %773 = arith.mulf %764, %712 : vector<8x32xf32>
    %774 = arith.mulf %758, %766 : vector<8x32xf32>
    %775 = arith.addf %773, %774 : vector<8x32xf32>
    %776 = math.tanh %775 : vector<8x32xf32>
    %777 = arith.mulf %772, %776 : vector<8x32xf32>
    %778 = arith.select %724, %752, %709 : vector<8x32xi1>, vector<8x32xf32>
    %779 = arith.select %724, %750, %710 : vector<8x32xi1>, vector<8x32xf32>
    %780 = arith.select %727, %777, %711 : vector<8x32xi1>, vector<8x32xf32>
    %781 = arith.select %727, %775, %712 : vector<8x32xi1>, vector<8x32xf32>
    %782 = tpu.concatenate %778, %780 in 1 : vector<8x32xf32>, vector<8x32xf32> -> vector<8x64xf32>
    %c0_263 = arith.constant 0 : index
    %c0_264 = arith.constant 0 : index
    %783 = vector.load %arg8[%c0_263, %c0_264] : memref<64x256xf32, #tpu.memory_space<vmem>>, vector<64x256xf32>
    %cst_265 = arith.constant dense<0.000000e+00> : vector<8x256xf32>
    %784 = tpu.matmul %782, %783, %cst_265 {dimension_numbers = #tpu.dot_dimension_numbers<[1], [0], [0], [1], [0, 0, 1, 1], [], []>} : vector<8x64xf32>, vector<64x256xf32>, vector<8x256xf32> -> vector<8x256xf32>
    %c16_266 = arith.constant 16 : index
    %c0_267 = arith.constant 0 : index
    %785 = vector.load %arg16[%c16_266, %c0_267] : memref<64x256xf32, #tpu.memory_space<vmem>>, vector<8x128xf32>
    %786 = vector.extract_strided_slice %784 {offsets = [0, 0], sizes = [8, 128], strides = [1, 1]} : vector<8x256xf32> to vector<8x128xf32>
    %787 = arith.addf %785, %786 : vector<8x128xf32>
    %c40_268 = arith.constant 40 : index
    %c128_269 = arith.constant 128 : index
    %788 = vector.load %arg16[%c40_268, %c128_269] : memref<64x256xf32, #tpu.memory_space<vmem>>, vector<8x128xf32>
    %789 = vector.extract_strided_slice %784 {offsets = [0, 128], sizes = [8, 128], strides = [1, 1]} : vector<8x256xf32> to vector<8x128xf32>
    %790 = arith.addf %788, %789 : vector<8x128xf32>
    %c16_270 = arith.constant 16 : index
    %c0_271 = arith.constant 0 : index
    %791 = vector.load %arg1[%c16_270, %c0_271] : memref<64x32xf32, #tpu.memory_space<vmem>>, vector<8x32xf32>
    %cst_272 = arith.constant 5.000000e-01 : f32
    %792 = vector.broadcast %cst_272 : f32 to vector<8x32xf32>
    %793 = arith.cmpf ogt, %791, %792 : vector<8x32xf32>
    %c40_273 = arith.constant 40 : index
    %c0_274 = arith.constant 0 : index
    %794 = vector.load %arg1[%c40_273, %c0_274] : memref<64x32xf32, #tpu.memory_space<vmem>>, vector<8x32xf32>
    %cst_275 = arith.constant 5.000000e-01 : f32
    %795 = vector.broadcast %cst_275 : f32 to vector<8x32xf32>
    %796 = arith.cmpf ogt, %794, %795 : vector<8x32xf32>
    %797 = vector.extract_strided_slice %787 {offsets = [0, 0], sizes = [8, 32], strides = [1, 1]} : vector<8x128xf32> to vector<8x32xf32>
    %798 = arith.negf %797 : vector<8x32xf32>
    %799 = math.exp %798 : vector<8x32xf32>
    %cst_276 = arith.constant 1.000000e+00 : f32
    %800 = vector.broadcast %cst_276 : f32 to vector<8x32xf32>
    %801 = arith.addf %800, %799 : vector<8x32xf32>
    %802 = arith.divf %800, %801 : vector<8x32xf32>
    %803 = vector.extract_strided_slice %787 {offsets = [0, 32], sizes = [8, 32], strides = [1, 1]} : vector<8x128xf32> to vector<8x32xf32>
    %804 = arith.negf %803 : vector<8x32xf32>
    %805 = math.exp %804 : vector<8x32xf32>
    %cst_277 = arith.constant 1.000000e+00 : f32
    %806 = vector.broadcast %cst_277 : f32 to vector<8x32xf32>
    %807 = arith.addf %806, %805 : vector<8x32xf32>
    %808 = arith.divf %806, %807 : vector<8x32xf32>
    %809 = vector.extract_strided_slice %787 {offsets = [0, 64], sizes = [8, 32], strides = [1, 1]} : vector<8x128xf32> to vector<8x32xf32>
    %810 = math.tanh %809 : vector<8x32xf32>
    %811 = vector.extract_strided_slice %787 {offsets = [0, 96], sizes = [8, 32], strides = [1, 1]} : vector<8x128xf32> to vector<8x32xf32>
    %812 = arith.negf %811 : vector<8x32xf32>
    %813 = math.exp %812 : vector<8x32xf32>
    %cst_278 = arith.constant 1.000000e+00 : f32
    %814 = vector.broadcast %cst_278 : f32 to vector<8x32xf32>
    %815 = arith.addf %814, %813 : vector<8x32xf32>
    %816 = arith.divf %814, %815 : vector<8x32xf32>
    %817 = arith.mulf %808, %779 : vector<8x32xf32>
    %818 = arith.mulf %802, %810 : vector<8x32xf32>
    %819 = arith.addf %817, %818 : vector<8x32xf32>
    %820 = math.tanh %819 : vector<8x32xf32>
    %821 = arith.mulf %816, %820 : vector<8x32xf32>
    %822 = vector.extract_strided_slice %790 {offsets = [0, 0], sizes = [8, 32], strides = [1, 1]} : vector<8x128xf32> to vector<8x32xf32>
    %823 = arith.negf %822 : vector<8x32xf32>
    %824 = math.exp %823 : vector<8x32xf32>
    %cst_279 = arith.constant 1.000000e+00 : f32
    %825 = vector.broadcast %cst_279 : f32 to vector<8x32xf32>
    %826 = arith.addf %825, %824 : vector<8x32xf32>
    %827 = arith.divf %825, %826 : vector<8x32xf32>
    %828 = vector.extract_strided_slice %790 {offsets = [0, 32], sizes = [8, 32], strides = [1, 1]} : vector<8x128xf32> to vector<8x32xf32>
    %829 = arith.negf %828 : vector<8x32xf32>
    %830 = math.exp %829 : vector<8x32xf32>
    %cst_280 = arith.constant 1.000000e+00 : f32
    %831 = vector.broadcast %cst_280 : f32 to vector<8x32xf32>
    %832 = arith.addf %831, %830 : vector<8x32xf32>
    %833 = arith.divf %831, %832 : vector<8x32xf32>
    %834 = vector.extract_strided_slice %790 {offsets = [0, 64], sizes = [8, 32], strides = [1, 1]} : vector<8x128xf32> to vector<8x32xf32>
    %835 = math.tanh %834 : vector<8x32xf32>
    %836 = vector.extract_strided_slice %790 {offsets = [0, 96], sizes = [8, 32], strides = [1, 1]} : vector<8x128xf32> to vector<8x32xf32>
    %837 = arith.negf %836 : vector<8x32xf32>
    %838 = math.exp %837 : vector<8x32xf32>
    %cst_281 = arith.constant 1.000000e+00 : f32
    %839 = vector.broadcast %cst_281 : f32 to vector<8x32xf32>
    %840 = arith.addf %839, %838 : vector<8x32xf32>
    %841 = arith.divf %839, %840 : vector<8x32xf32>
    %842 = arith.mulf %833, %781 : vector<8x32xf32>
    %843 = arith.mulf %827, %835 : vector<8x32xf32>
    %844 = arith.addf %842, %843 : vector<8x32xf32>
    %845 = math.tanh %844 : vector<8x32xf32>
    %846 = arith.mulf %841, %845 : vector<8x32xf32>
    %847 = arith.select %793, %821, %778 : vector<8x32xi1>, vector<8x32xf32>
    %848 = arith.select %793, %819, %779 : vector<8x32xi1>, vector<8x32xf32>
    %849 = arith.select %796, %846, %780 : vector<8x32xi1>, vector<8x32xf32>
    %850 = arith.select %796, %844, %781 : vector<8x32xi1>, vector<8x32xf32>
    %851 = tpu.concatenate %847, %849 in 1 : vector<8x32xf32>, vector<8x32xf32> -> vector<8x64xf32>
    %c0_282 = arith.constant 0 : index
    %c0_283 = arith.constant 0 : index
    %852 = vector.load %arg8[%c0_282, %c0_283] : memref<64x256xf32, #tpu.memory_space<vmem>>, vector<64x256xf32>
    %cst_284 = arith.constant dense<0.000000e+00> : vector<8x256xf32>
    %853 = tpu.matmul %851, %852, %cst_284 {dimension_numbers = #tpu.dot_dimension_numbers<[1], [0], [0], [1], [0, 0, 1, 1], [], []>} : vector<8x64xf32>, vector<64x256xf32>, vector<8x256xf32> -> vector<8x256xf32>
    %c24_285 = arith.constant 24 : index
    %c0_286 = arith.constant 0 : index
    %854 = vector.load %arg16[%c24_285, %c0_286] : memref<64x256xf32, #tpu.memory_space<vmem>>, vector<8x128xf32>
    %855 = vector.extract_strided_slice %853 {offsets = [0, 0], sizes = [8, 128], strides = [1, 1]} : vector<8x256xf32> to vector<8x128xf32>
    %856 = arith.addf %854, %855 : vector<8x128xf32>
    %c32_287 = arith.constant 32 : index
    %c128_288 = arith.constant 128 : index
    %857 = vector.load %arg16[%c32_287, %c128_288] : memref<64x256xf32, #tpu.memory_space<vmem>>, vector<8x128xf32>
    %858 = vector.extract_strided_slice %853 {offsets = [0, 128], sizes = [8, 128], strides = [1, 1]} : vector<8x256xf32> to vector<8x128xf32>
    %859 = arith.addf %857, %858 : vector<8x128xf32>
    %c24_289 = arith.constant 24 : index
    %c0_290 = arith.constant 0 : index
    %860 = vector.load %arg1[%c24_289, %c0_290] : memref<64x32xf32, #tpu.memory_space<vmem>>, vector<8x32xf32>
    %cst_291 = arith.constant 5.000000e-01 : f32
    %861 = vector.broadcast %cst_291 : f32 to vector<8x32xf32>
    %862 = arith.cmpf ogt, %860, %861 : vector<8x32xf32>
    %c32_292 = arith.constant 32 : index
    %c0_293 = arith.constant 0 : index
    %863 = vector.load %arg1[%c32_292, %c0_293] : memref<64x32xf32, #tpu.memory_space<vmem>>, vector<8x32xf32>
    %cst_294 = arith.constant 5.000000e-01 : f32
    %864 = vector.broadcast %cst_294 : f32 to vector<8x32xf32>
    %865 = arith.cmpf ogt, %863, %864 : vector<8x32xf32>
    %866 = vector.extract_strided_slice %856 {offsets = [0, 0], sizes = [8, 32], strides = [1, 1]} : vector<8x128xf32> to vector<8x32xf32>
    %867 = arith.negf %866 : vector<8x32xf32>
    %868 = math.exp %867 : vector<8x32xf32>
    %cst_295 = arith.constant 1.000000e+00 : f32
    %869 = vector.broadcast %cst_295 : f32 to vector<8x32xf32>
    %870 = arith.addf %869, %868 : vector<8x32xf32>
    %871 = arith.divf %869, %870 : vector<8x32xf32>
    %872 = vector.extract_strided_slice %856 {offsets = [0, 32], sizes = [8, 32], strides = [1, 1]} : vector<8x128xf32> to vector<8x32xf32>
    %873 = arith.negf %872 : vector<8x32xf32>
    %874 = math.exp %873 : vector<8x32xf32>
    %cst_296 = arith.constant 1.000000e+00 : f32
    %875 = vector.broadcast %cst_296 : f32 to vector<8x32xf32>
    %876 = arith.addf %875, %874 : vector<8x32xf32>
    %877 = arith.divf %875, %876 : vector<8x32xf32>
    %878 = vector.extract_strided_slice %856 {offsets = [0, 64], sizes = [8, 32], strides = [1, 1]} : vector<8x128xf32> to vector<8x32xf32>
    %879 = math.tanh %878 : vector<8x32xf32>
    %880 = vector.extract_strided_slice %856 {offsets = [0, 96], sizes = [8, 32], strides = [1, 1]} : vector<8x128xf32> to vector<8x32xf32>
    %881 = arith.negf %880 : vector<8x32xf32>
    %882 = math.exp %881 : vector<8x32xf32>
    %cst_297 = arith.constant 1.000000e+00 : f32
    %883 = vector.broadcast %cst_297 : f32 to vector<8x32xf32>
    %884 = arith.addf %883, %882 : vector<8x32xf32>
    %885 = arith.divf %883, %884 : vector<8x32xf32>
    %886 = arith.mulf %877, %848 : vector<8x32xf32>
    %887 = arith.mulf %871, %879 : vector<8x32xf32>
    %888 = arith.addf %886, %887 : vector<8x32xf32>
    %889 = math.tanh %888 : vector<8x32xf32>
    %890 = arith.mulf %885, %889 : vector<8x32xf32>
    %891 = vector.extract_strided_slice %859 {offsets = [0, 0], sizes = [8, 32], strides = [1, 1]} : vector<8x128xf32> to vector<8x32xf32>
    %892 = arith.negf %891 : vector<8x32xf32>
    %893 = math.exp %892 : vector<8x32xf32>
    %cst_298 = arith.constant 1.000000e+00 : f32
    %894 = vector.broadcast %cst_298 : f32 to vector<8x32xf32>
    %895 = arith.addf %894, %893 : vector<8x32xf32>
    %896 = arith.divf %894, %895 : vector<8x32xf32>
    %897 = vector.extract_strided_slice %859 {offsets = [0, 32], sizes = [8, 32], strides = [1, 1]} : vector<8x128xf32> to vector<8x32xf32>
    %898 = arith.negf %897 : vector<8x32xf32>
    %899 = math.exp %898 : vector<8x32xf32>
    %cst_299 = arith.constant 1.000000e+00 : f32
    %900 = vector.broadcast %cst_299 : f32 to vector<8x32xf32>
    %901 = arith.addf %900, %899 : vector<8x32xf32>
    %902 = arith.divf %900, %901 : vector<8x32xf32>
    %903 = vector.extract_strided_slice %859 {offsets = [0, 64], sizes = [8, 32], strides = [1, 1]} : vector<8x128xf32> to vector<8x32xf32>
    %904 = math.tanh %903 : vector<8x32xf32>
    %905 = vector.extract_strided_slice %859 {offsets = [0, 96], sizes = [8, 32], strides = [1, 1]} : vector<8x128xf32> to vector<8x32xf32>
    %906 = arith.negf %905 : vector<8x32xf32>
    %907 = math.exp %906 : vector<8x32xf32>
    %cst_300 = arith.constant 1.000000e+00 : f32
    %908 = vector.broadcast %cst_300 : f32 to vector<8x32xf32>
    %909 = arith.addf %908, %907 : vector<8x32xf32>
    %910 = arith.divf %908, %909 : vector<8x32xf32>
    %911 = arith.mulf %902, %850 : vector<8x32xf32>
    %912 = arith.mulf %896, %904 : vector<8x32xf32>
    %913 = arith.addf %911, %912 : vector<8x32xf32>
    %914 = math.tanh %913 : vector<8x32xf32>
    %915 = arith.mulf %910, %914 : vector<8x32xf32>
    %916 = arith.select %862, %890, %847 : vector<8x32xi1>, vector<8x32xf32>
    %917 = arith.select %862, %888, %848 : vector<8x32xi1>, vector<8x32xf32>
    %918 = arith.select %865, %915, %849 : vector<8x32xi1>, vector<8x32xf32>
    %919 = arith.select %865, %913, %850 : vector<8x32xi1>, vector<8x32xf32>
    %920 = tpu.concatenate %916, %918 in 1 : vector<8x32xf32>, vector<8x32xf32> -> vector<8x64xf32>
    %c0_301 = arith.constant 0 : index
    %c0_302 = arith.constant 0 : index
    %921 = vector.load %arg8[%c0_301, %c0_302] : memref<64x256xf32, #tpu.memory_space<vmem>>, vector<64x256xf32>
    %cst_303 = arith.constant dense<0.000000e+00> : vector<8x256xf32>
    %922 = tpu.matmul %920, %921, %cst_303 {dimension_numbers = #tpu.dot_dimension_numbers<[1], [0], [0], [1], [0, 0, 1, 1], [], []>} : vector<8x64xf32>, vector<64x256xf32>, vector<8x256xf32> -> vector<8x256xf32>
    %c32_304 = arith.constant 32 : index
    %c0_305 = arith.constant 0 : index
    %923 = vector.load %arg16[%c32_304, %c0_305] : memref<64x256xf32, #tpu.memory_space<vmem>>, vector<8x128xf32>
    %924 = vector.extract_strided_slice %922 {offsets = [0, 0], sizes = [8, 128], strides = [1, 1]} : vector<8x256xf32> to vector<8x128xf32>
    %925 = arith.addf %923, %924 : vector<8x128xf32>
    %c24_306 = arith.constant 24 : index
    %c128_307 = arith.constant 128 : index
    %926 = vector.load %arg16[%c24_306, %c128_307] : memref<64x256xf32, #tpu.memory_space<vmem>>, vector<8x128xf32>
    %927 = vector.extract_strided_slice %922 {offsets = [0, 128], sizes = [8, 128], strides = [1, 1]} : vector<8x256xf32> to vector<8x128xf32>
    %928 = arith.addf %926, %927 : vector<8x128xf32>
    %c32_308 = arith.constant 32 : index
    %c0_309 = arith.constant 0 : index
    %929 = vector.load %arg1[%c32_308, %c0_309] : memref<64x32xf32, #tpu.memory_space<vmem>>, vector<8x32xf32>
    %cst_310 = arith.constant 5.000000e-01 : f32
    %930 = vector.broadcast %cst_310 : f32 to vector<8x32xf32>
    %931 = arith.cmpf ogt, %929, %930 : vector<8x32xf32>
    %c24_311 = arith.constant 24 : index
    %c0_312 = arith.constant 0 : index
    %932 = vector.load %arg1[%c24_311, %c0_312] : memref<64x32xf32, #tpu.memory_space<vmem>>, vector<8x32xf32>
    %cst_313 = arith.constant 5.000000e-01 : f32
    %933 = vector.broadcast %cst_313 : f32 to vector<8x32xf32>
    %934 = arith.cmpf ogt, %932, %933 : vector<8x32xf32>
    %935 = vector.extract_strided_slice %925 {offsets = [0, 0], sizes = [8, 32], strides = [1, 1]} : vector<8x128xf32> to vector<8x32xf32>
    %936 = arith.negf %935 : vector<8x32xf32>
    %937 = math.exp %936 : vector<8x32xf32>
    %cst_314 = arith.constant 1.000000e+00 : f32
    %938 = vector.broadcast %cst_314 : f32 to vector<8x32xf32>
    %939 = arith.addf %938, %937 : vector<8x32xf32>
    %940 = arith.divf %938, %939 : vector<8x32xf32>
    %941 = vector.extract_strided_slice %925 {offsets = [0, 32], sizes = [8, 32], strides = [1, 1]} : vector<8x128xf32> to vector<8x32xf32>
    %942 = arith.negf %941 : vector<8x32xf32>
    %943 = math.exp %942 : vector<8x32xf32>
    %cst_315 = arith.constant 1.000000e+00 : f32
    %944 = vector.broadcast %cst_315 : f32 to vector<8x32xf32>
    %945 = arith.addf %944, %943 : vector<8x32xf32>
    %946 = arith.divf %944, %945 : vector<8x32xf32>
    %947 = vector.extract_strided_slice %925 {offsets = [0, 64], sizes = [8, 32], strides = [1, 1]} : vector<8x128xf32> to vector<8x32xf32>
    %948 = math.tanh %947 : vector<8x32xf32>
    %949 = vector.extract_strided_slice %925 {offsets = [0, 96], sizes = [8, 32], strides = [1, 1]} : vector<8x128xf32> to vector<8x32xf32>
    %950 = arith.negf %949 : vector<8x32xf32>
    %951 = math.exp %950 : vector<8x32xf32>
    %cst_316 = arith.constant 1.000000e+00 : f32
    %952 = vector.broadcast %cst_316 : f32 to vector<8x32xf32>
    %953 = arith.addf %952, %951 : vector<8x32xf32>
    %954 = arith.divf %952, %953 : vector<8x32xf32>
    %955 = arith.mulf %946, %917 : vector<8x32xf32>
    %956 = arith.mulf %940, %948 : vector<8x32xf32>
    %957 = arith.addf %955, %956 : vector<8x32xf32>
    %958 = math.tanh %957 : vector<8x32xf32>
    %959 = arith.mulf %954, %958 : vector<8x32xf32>
    %960 = vector.extract_strided_slice %928 {offsets = [0, 0], sizes = [8, 32], strides = [1, 1]} : vector<8x128xf32> to vector<8x32xf32>
    %961 = arith.negf %960 : vector<8x32xf32>
    %962 = math.exp %961 : vector<8x32xf32>
    %cst_317 = arith.constant 1.000000e+00 : f32
    %963 = vector.broadcast %cst_317 : f32 to vector<8x32xf32>
    %964 = arith.addf %963, %962 : vector<8x32xf32>
    %965 = arith.divf %963, %964 : vector<8x32xf32>
    %966 = vector.extract_strided_slice %928 {offsets = [0, 32], sizes = [8, 32], strides = [1, 1]} : vector<8x128xf32> to vector<8x32xf32>
    %967 = arith.negf %966 : vector<8x32xf32>
    %968 = math.exp %967 : vector<8x32xf32>
    %cst_318 = arith.constant 1.000000e+00 : f32
    %969 = vector.broadcast %cst_318 : f32 to vector<8x32xf32>
    %970 = arith.addf %969, %968 : vector<8x32xf32>
    %971 = arith.divf %969, %970 : vector<8x32xf32>
    %972 = vector.extract_strided_slice %928 {offsets = [0, 64], sizes = [8, 32], strides = [1, 1]} : vector<8x128xf32> to vector<8x32xf32>
    %973 = math.tanh %972 : vector<8x32xf32>
    %974 = vector.extract_strided_slice %928 {offsets = [0, 96], sizes = [8, 32], strides = [1, 1]} : vector<8x128xf32> to vector<8x32xf32>
    %975 = arith.negf %974 : vector<8x32xf32>
    %976 = math.exp %975 : vector<8x32xf32>
    %cst_319 = arith.constant 1.000000e+00 : f32
    %977 = vector.broadcast %cst_319 : f32 to vector<8x32xf32>
    %978 = arith.addf %977, %976 : vector<8x32xf32>
    %979 = arith.divf %977, %978 : vector<8x32xf32>
    %980 = arith.mulf %971, %919 : vector<8x32xf32>
    %981 = arith.mulf %965, %973 : vector<8x32xf32>
    %982 = arith.addf %980, %981 : vector<8x32xf32>
    %983 = math.tanh %982 : vector<8x32xf32>
    %984 = arith.mulf %979, %983 : vector<8x32xf32>
    %985 = arith.select %931, %959, %916 : vector<8x32xi1>, vector<8x32xf32>
    %986 = arith.select %931, %957, %917 : vector<8x32xi1>, vector<8x32xf32>
    %987 = arith.select %934, %984, %918 : vector<8x32xi1>, vector<8x32xf32>
    %988 = arith.select %934, %982, %919 : vector<8x32xi1>, vector<8x32xf32>
    %989 = tpu.concatenate %985, %987 in 1 : vector<8x32xf32>, vector<8x32xf32> -> vector<8x64xf32>
    %c0_320 = arith.constant 0 : index
    %c0_321 = arith.constant 0 : index
    %990 = vector.load %arg8[%c0_320, %c0_321] : memref<64x256xf32, #tpu.memory_space<vmem>>, vector<64x256xf32>
    %cst_322 = arith.constant dense<0.000000e+00> : vector<8x256xf32>
    %991 = tpu.matmul %989, %990, %cst_322 {dimension_numbers = #tpu.dot_dimension_numbers<[1], [0], [0], [1], [0, 0, 1, 1], [], []>} : vector<8x64xf32>, vector<64x256xf32>, vector<8x256xf32> -> vector<8x256xf32>
    %c40_323 = arith.constant 40 : index
    %c0_324 = arith.constant 0 : index
    %992 = vector.load %arg16[%c40_323, %c0_324] : memref<64x256xf32, #tpu.memory_space<vmem>>, vector<8x128xf32>
    %993 = vector.extract_strided_slice %991 {offsets = [0, 0], sizes = [8, 128], strides = [1, 1]} : vector<8x256xf32> to vector<8x128xf32>
    %994 = arith.addf %992, %993 : vector<8x128xf32>
    %c16_325 = arith.constant 16 : index
    %c128_326 = arith.constant 128 : index
    %995 = vector.load %arg16[%c16_325, %c128_326] : memref<64x256xf32, #tpu.memory_space<vmem>>, vector<8x128xf32>
    %996 = vector.extract_strided_slice %991 {offsets = [0, 128], sizes = [8, 128], strides = [1, 1]} : vector<8x256xf32> to vector<8x128xf32>
    %997 = arith.addf %995, %996 : vector<8x128xf32>
    %c40_327 = arith.constant 40 : index
    %c0_328 = arith.constant 0 : index
    %998 = vector.load %arg1[%c40_327, %c0_328] : memref<64x32xf32, #tpu.memory_space<vmem>>, vector<8x32xf32>
    %cst_329 = arith.constant 5.000000e-01 : f32
    %999 = vector.broadcast %cst_329 : f32 to vector<8x32xf32>
    %1000 = arith.cmpf ogt, %998, %999 : vector<8x32xf32>
    %c16_330 = arith.constant 16 : index
    %c0_331 = arith.constant 0 : index
    %1001 = vector.load %arg1[%c16_330, %c0_331] : memref<64x32xf32, #tpu.memory_space<vmem>>, vector<8x32xf32>
    %cst_332 = arith.constant 5.000000e-01 : f32
    %1002 = vector.broadcast %cst_332 : f32 to vector<8x32xf32>
    %1003 = arith.cmpf ogt, %1001, %1002 : vector<8x32xf32>
    %1004 = vector.extract_strided_slice %994 {offsets = [0, 0], sizes = [8, 32], strides = [1, 1]} : vector<8x128xf32> to vector<8x32xf32>
    %1005 = arith.negf %1004 : vector<8x32xf32>
    %1006 = math.exp %1005 : vector<8x32xf32>
    %cst_333 = arith.constant 1.000000e+00 : f32
    %1007 = vector.broadcast %cst_333 : f32 to vector<8x32xf32>
    %1008 = arith.addf %1007, %1006 : vector<8x32xf32>
    %1009 = arith.divf %1007, %1008 : vector<8x32xf32>
    %1010 = vector.extract_strided_slice %994 {offsets = [0, 32], sizes = [8, 32], strides = [1, 1]} : vector<8x128xf32> to vector<8x32xf32>
    %1011 = arith.negf %1010 : vector<8x32xf32>
    %1012 = math.exp %1011 : vector<8x32xf32>
    %cst_334 = arith.constant 1.000000e+00 : f32
    %1013 = vector.broadcast %cst_334 : f32 to vector<8x32xf32>
    %1014 = arith.addf %1013, %1012 : vector<8x32xf32>
    %1015 = arith.divf %1013, %1014 : vector<8x32xf32>
    %1016 = vector.extract_strided_slice %994 {offsets = [0, 64], sizes = [8, 32], strides = [1, 1]} : vector<8x128xf32> to vector<8x32xf32>
    %1017 = math.tanh %1016 : vector<8x32xf32>
    %1018 = vector.extract_strided_slice %994 {offsets = [0, 96], sizes = [8, 32], strides = [1, 1]} : vector<8x128xf32> to vector<8x32xf32>
    %1019 = arith.negf %1018 : vector<8x32xf32>
    %1020 = math.exp %1019 : vector<8x32xf32>
    %cst_335 = arith.constant 1.000000e+00 : f32
    %1021 = vector.broadcast %cst_335 : f32 to vector<8x32xf32>
    %1022 = arith.addf %1021, %1020 : vector<8x32xf32>
    %1023 = arith.divf %1021, %1022 : vector<8x32xf32>
    %1024 = arith.mulf %1015, %986 : vector<8x32xf32>
    %1025 = arith.mulf %1009, %1017 : vector<8x32xf32>
    %1026 = arith.addf %1024, %1025 : vector<8x32xf32>
    %1027 = math.tanh %1026 : vector<8x32xf32>
    %1028 = arith.mulf %1023, %1027 : vector<8x32xf32>
    %1029 = vector.extract_strided_slice %997 {offsets = [0, 0], sizes = [8, 32], strides = [1, 1]} : vector<8x128xf32> to vector<8x32xf32>
    %1030 = arith.negf %1029 : vector<8x32xf32>
    %1031 = math.exp %1030 : vector<8x32xf32>
    %cst_336 = arith.constant 1.000000e+00 : f32
    %1032 = vector.broadcast %cst_336 : f32 to vector<8x32xf32>
    %1033 = arith.addf %1032, %1031 : vector<8x32xf32>
    %1034 = arith.divf %1032, %1033 : vector<8x32xf32>
    %1035 = vector.extract_strided_slice %997 {offsets = [0, 32], sizes = [8, 32], strides = [1, 1]} : vector<8x128xf32> to vector<8x32xf32>
    %1036 = arith.negf %1035 : vector<8x32xf32>
    %1037 = math.exp %1036 : vector<8x32xf32>
    %cst_337 = arith.constant 1.000000e+00 : f32
    %1038 = vector.broadcast %cst_337 : f32 to vector<8x32xf32>
    %1039 = arith.addf %1038, %1037 : vector<8x32xf32>
    %1040 = arith.divf %1038, %1039 : vector<8x32xf32>
    %1041 = vector.extract_strided_slice %997 {offsets = [0, 64], sizes = [8, 32], strides = [1, 1]} : vector<8x128xf32> to vector<8x32xf32>
    %1042 = math.tanh %1041 : vector<8x32xf32>
    %1043 = vector.extract_strided_slice %997 {offsets = [0, 96], sizes = [8, 32], strides = [1, 1]} : vector<8x128xf32> to vector<8x32xf32>
    %1044 = arith.negf %1043 : vector<8x32xf32>
    %1045 = math.exp %1044 : vector<8x32xf32>
    %cst_338 = arith.constant 1.000000e+00 : f32
    %1046 = vector.broadcast %cst_338 : f32 to vector<8x32xf32>
    %1047 = arith.addf %1046, %1045 : vector<8x32xf32>
    %1048 = arith.divf %1046, %1047 : vector<8x32xf32>
    %1049 = arith.mulf %1040, %988 : vector<8x32xf32>
    %1050 = arith.mulf %1034, %1042 : vector<8x32xf32>
    %1051 = arith.addf %1049, %1050 : vector<8x32xf32>
    %1052 = math.tanh %1051 : vector<8x32xf32>
    %1053 = arith.mulf %1048, %1052 : vector<8x32xf32>
    %1054 = arith.select %1000, %1028, %985 : vector<8x32xi1>, vector<8x32xf32>
    %1055 = arith.select %1000, %1026, %986 : vector<8x32xi1>, vector<8x32xf32>
    %1056 = arith.select %1003, %1053, %987 : vector<8x32xi1>, vector<8x32xf32>
    %1057 = arith.select %1003, %1051, %988 : vector<8x32xi1>, vector<8x32xf32>
    %1058 = tpu.concatenate %1054, %1056 in 1 : vector<8x32xf32>, vector<8x32xf32> -> vector<8x64xf32>
    %c0_339 = arith.constant 0 : index
    %c0_340 = arith.constant 0 : index
    %1059 = vector.load %arg8[%c0_339, %c0_340] : memref<64x256xf32, #tpu.memory_space<vmem>>, vector<64x256xf32>
    %cst_341 = arith.constant dense<0.000000e+00> : vector<8x256xf32>
    %1060 = tpu.matmul %1058, %1059, %cst_341 {dimension_numbers = #tpu.dot_dimension_numbers<[1], [0], [0], [1], [0, 0, 1, 1], [], []>} : vector<8x64xf32>, vector<64x256xf32>, vector<8x256xf32> -> vector<8x256xf32>
    %c48_342 = arith.constant 48 : index
    %c0_343 = arith.constant 0 : index
    %1061 = vector.load %arg16[%c48_342, %c0_343] : memref<64x256xf32, #tpu.memory_space<vmem>>, vector<8x128xf32>
    %1062 = vector.extract_strided_slice %1060 {offsets = [0, 0], sizes = [8, 128], strides = [1, 1]} : vector<8x256xf32> to vector<8x128xf32>
    %1063 = arith.addf %1061, %1062 : vector<8x128xf32>
    %c8_344 = arith.constant 8 : index
    %c128_345 = arith.constant 128 : index
    %1064 = vector.load %arg16[%c8_344, %c128_345] : memref<64x256xf32, #tpu.memory_space<vmem>>, vector<8x128xf32>
    %1065 = vector.extract_strided_slice %1060 {offsets = [0, 128], sizes = [8, 128], strides = [1, 1]} : vector<8x256xf32> to vector<8x128xf32>
    %1066 = arith.addf %1064, %1065 : vector<8x128xf32>
    %c48_346 = arith.constant 48 : index
    %c0_347 = arith.constant 0 : index
    %1067 = vector.load %arg1[%c48_346, %c0_347] : memref<64x32xf32, #tpu.memory_space<vmem>>, vector<8x32xf32>
    %cst_348 = arith.constant 5.000000e-01 : f32
    %1068 = vector.broadcast %cst_348 : f32 to vector<8x32xf32>
    %1069 = arith.cmpf ogt, %1067, %1068 : vector<8x32xf32>
    %c8_349 = arith.constant 8 : index
    %c0_350 = arith.constant 0 : index
    %1070 = vector.load %arg1[%c8_349, %c0_350] : memref<64x32xf32, #tpu.memory_space<vmem>>, vector<8x32xf32>
    %cst_351 = arith.constant 5.000000e-01 : f32
    %1071 = vector.broadcast %cst_351 : f32 to vector<8x32xf32>
    %1072 = arith.cmpf ogt, %1070, %1071 : vector<8x32xf32>
    %1073 = vector.extract_strided_slice %1063 {offsets = [0, 0], sizes = [8, 32], strides = [1, 1]} : vector<8x128xf32> to vector<8x32xf32>
    %1074 = arith.negf %1073 : vector<8x32xf32>
    %1075 = math.exp %1074 : vector<8x32xf32>
    %cst_352 = arith.constant 1.000000e+00 : f32
    %1076 = vector.broadcast %cst_352 : f32 to vector<8x32xf32>
    %1077 = arith.addf %1076, %1075 : vector<8x32xf32>
    %1078 = arith.divf %1076, %1077 : vector<8x32xf32>
    %1079 = vector.extract_strided_slice %1063 {offsets = [0, 32], sizes = [8, 32], strides = [1, 1]} : vector<8x128xf32> to vector<8x32xf32>
    %1080 = arith.negf %1079 : vector<8x32xf32>
    %1081 = math.exp %1080 : vector<8x32xf32>
    %cst_353 = arith.constant 1.000000e+00 : f32
    %1082 = vector.broadcast %cst_353 : f32 to vector<8x32xf32>
    %1083 = arith.addf %1082, %1081 : vector<8x32xf32>
    %1084 = arith.divf %1082, %1083 : vector<8x32xf32>
    %1085 = vector.extract_strided_slice %1063 {offsets = [0, 64], sizes = [8, 32], strides = [1, 1]} : vector<8x128xf32> to vector<8x32xf32>
    %1086 = math.tanh %1085 : vector<8x32xf32>
    %1087 = vector.extract_strided_slice %1063 {offsets = [0, 96], sizes = [8, 32], strides = [1, 1]} : vector<8x128xf32> to vector<8x32xf32>
    %1088 = arith.negf %1087 : vector<8x32xf32>
    %1089 = math.exp %1088 : vector<8x32xf32>
    %cst_354 = arith.constant 1.000000e+00 : f32
    %1090 = vector.broadcast %cst_354 : f32 to vector<8x32xf32>
    %1091 = arith.addf %1090, %1089 : vector<8x32xf32>
    %1092 = arith.divf %1090, %1091 : vector<8x32xf32>
    %1093 = arith.mulf %1084, %1055 : vector<8x32xf32>
    %1094 = arith.mulf %1078, %1086 : vector<8x32xf32>
    %1095 = arith.addf %1093, %1094 : vector<8x32xf32>
    %1096 = math.tanh %1095 : vector<8x32xf32>
    %1097 = arith.mulf %1092, %1096 : vector<8x32xf32>
    %1098 = vector.extract_strided_slice %1066 {offsets = [0, 0], sizes = [8, 32], strides = [1, 1]} : vector<8x128xf32> to vector<8x32xf32>
    %1099 = arith.negf %1098 : vector<8x32xf32>
    %1100 = math.exp %1099 : vector<8x32xf32>
    %cst_355 = arith.constant 1.000000e+00 : f32
    %1101 = vector.broadcast %cst_355 : f32 to vector<8x32xf32>
    %1102 = arith.addf %1101, %1100 : vector<8x32xf32>
    %1103 = arith.divf %1101, %1102 : vector<8x32xf32>
    %1104 = vector.extract_strided_slice %1066 {offsets = [0, 32], sizes = [8, 32], strides = [1, 1]} : vector<8x128xf32> to vector<8x32xf32>
    %1105 = arith.negf %1104 : vector<8x32xf32>
    %1106 = math.exp %1105 : vector<8x32xf32>
    %cst_356 = arith.constant 1.000000e+00 : f32
    %1107 = vector.broadcast %cst_356 : f32 to vector<8x32xf32>
    %1108 = arith.addf %1107, %1106 : vector<8x32xf32>
    %1109 = arith.divf %1107, %1108 : vector<8x32xf32>
    %1110 = vector.extract_strided_slice %1066 {offsets = [0, 64], sizes = [8, 32], strides = [1, 1]} : vector<8x128xf32> to vector<8x32xf32>
    %1111 = math.tanh %1110 : vector<8x32xf32>
    %1112 = vector.extract_strided_slice %1066 {offsets = [0, 96], sizes = [8, 32], strides = [1, 1]} : vector<8x128xf32> to vector<8x32xf32>
    %1113 = arith.negf %1112 : vector<8x32xf32>
    %1114 = math.exp %1113 : vector<8x32xf32>
    %cst_357 = arith.constant 1.000000e+00 : f32
    %1115 = vector.broadcast %cst_357 : f32 to vector<8x32xf32>
    %1116 = arith.addf %1115, %1114 : vector<8x32xf32>
    %1117 = arith.divf %1115, %1116 : vector<8x32xf32>
    %1118 = arith.mulf %1109, %1057 : vector<8x32xf32>
    %1119 = arith.mulf %1103, %1111 : vector<8x32xf32>
    %1120 = arith.addf %1118, %1119 : vector<8x32xf32>
    %1121 = math.tanh %1120 : vector<8x32xf32>
    %1122 = arith.mulf %1117, %1121 : vector<8x32xf32>
    %1123 = arith.select %1069, %1097, %1054 : vector<8x32xi1>, vector<8x32xf32>
    %1124 = arith.select %1069, %1095, %1055 : vector<8x32xi1>, vector<8x32xf32>
    %1125 = arith.select %1072, %1122, %1056 : vector<8x32xi1>, vector<8x32xf32>
    %1126 = arith.select %1072, %1120, %1057 : vector<8x32xi1>, vector<8x32xf32>
    %1127 = tpu.concatenate %1123, %1125 in 1 : vector<8x32xf32>, vector<8x32xf32> -> vector<8x64xf32>
    %c0_358 = arith.constant 0 : index
    %c0_359 = arith.constant 0 : index
    %1128 = vector.load %arg8[%c0_358, %c0_359] : memref<64x256xf32, #tpu.memory_space<vmem>>, vector<64x256xf32>
    %cst_360 = arith.constant dense<0.000000e+00> : vector<8x256xf32>
    %1129 = tpu.matmul %1127, %1128, %cst_360 {dimension_numbers = #tpu.dot_dimension_numbers<[1], [0], [0], [1], [0, 0, 1, 1], [], []>} : vector<8x64xf32>, vector<64x256xf32>, vector<8x256xf32> -> vector<8x256xf32>
    %c56_361 = arith.constant 56 : index
    %c0_362 = arith.constant 0 : index
    %1130 = vector.load %arg16[%c56_361, %c0_362] : memref<64x256xf32, #tpu.memory_space<vmem>>, vector<8x128xf32>
    %1131 = vector.extract_strided_slice %1129 {offsets = [0, 0], sizes = [8, 128], strides = [1, 1]} : vector<8x256xf32> to vector<8x128xf32>
    %1132 = arith.addf %1130, %1131 : vector<8x128xf32>
    %c0_363 = arith.constant 0 : index
    %c128_364 = arith.constant 128 : index
    %1133 = vector.load %arg16[%c0_363, %c128_364] : memref<64x256xf32, #tpu.memory_space<vmem>>, vector<8x128xf32>
    %1134 = vector.extract_strided_slice %1129 {offsets = [0, 128], sizes = [8, 128], strides = [1, 1]} : vector<8x256xf32> to vector<8x128xf32>
    %1135 = arith.addf %1133, %1134 : vector<8x128xf32>
    %c56_365 = arith.constant 56 : index
    %c0_366 = arith.constant 0 : index
    %1136 = vector.load %arg1[%c56_365, %c0_366] : memref<64x32xf32, #tpu.memory_space<vmem>>, vector<8x32xf32>
    %cst_367 = arith.constant 5.000000e-01 : f32
    %1137 = vector.broadcast %cst_367 : f32 to vector<8x32xf32>
    %1138 = arith.cmpf ogt, %1136, %1137 : vector<8x32xf32>
    %c0_368 = arith.constant 0 : index
    %c0_369 = arith.constant 0 : index
    %1139 = vector.load %arg1[%c0_368, %c0_369] : memref<64x32xf32, #tpu.memory_space<vmem>>, vector<8x32xf32>
    %cst_370 = arith.constant 5.000000e-01 : f32
    %1140 = vector.broadcast %cst_370 : f32 to vector<8x32xf32>
    %1141 = arith.cmpf ogt, %1139, %1140 : vector<8x32xf32>
    %1142 = vector.extract_strided_slice %1132 {offsets = [0, 0], sizes = [8, 32], strides = [1, 1]} : vector<8x128xf32> to vector<8x32xf32>
    %1143 = arith.negf %1142 : vector<8x32xf32>
    %1144 = math.exp %1143 : vector<8x32xf32>
    %cst_371 = arith.constant 1.000000e+00 : f32
    %1145 = vector.broadcast %cst_371 : f32 to vector<8x32xf32>
    %1146 = arith.addf %1145, %1144 : vector<8x32xf32>
    %1147 = arith.divf %1145, %1146 : vector<8x32xf32>
    %1148 = vector.extract_strided_slice %1132 {offsets = [0, 32], sizes = [8, 32], strides = [1, 1]} : vector<8x128xf32> to vector<8x32xf32>
    %1149 = arith.negf %1148 : vector<8x32xf32>
    %1150 = math.exp %1149 : vector<8x32xf32>
    %cst_372 = arith.constant 1.000000e+00 : f32
    %1151 = vector.broadcast %cst_372 : f32 to vector<8x32xf32>
    %1152 = arith.addf %1151, %1150 : vector<8x32xf32>
    %1153 = arith.divf %1151, %1152 : vector<8x32xf32>
    %1154 = vector.extract_strided_slice %1132 {offsets = [0, 64], sizes = [8, 32], strides = [1, 1]} : vector<8x128xf32> to vector<8x32xf32>
    %1155 = math.tanh %1154 : vector<8x32xf32>
    %1156 = vector.extract_strided_slice %1132 {offsets = [0, 96], sizes = [8, 32], strides = [1, 1]} : vector<8x128xf32> to vector<8x32xf32>
    %1157 = arith.negf %1156 : vector<8x32xf32>
    %1158 = math.exp %1157 : vector<8x32xf32>
    %cst_373 = arith.constant 1.000000e+00 : f32
    %1159 = vector.broadcast %cst_373 : f32 to vector<8x32xf32>
    %1160 = arith.addf %1159, %1158 : vector<8x32xf32>
    %1161 = arith.divf %1159, %1160 : vector<8x32xf32>
    %1162 = arith.mulf %1153, %1124 : vector<8x32xf32>
    %1163 = arith.mulf %1147, %1155 : vector<8x32xf32>
    %1164 = arith.addf %1162, %1163 : vector<8x32xf32>
    %1165 = math.tanh %1164 : vector<8x32xf32>
    %1166 = arith.mulf %1161, %1165 : vector<8x32xf32>
    %1167 = vector.extract_strided_slice %1135 {offsets = [0, 0], sizes = [8, 32], strides = [1, 1]} : vector<8x128xf32> to vector<8x32xf32>
    %1168 = arith.negf %1167 : vector<8x32xf32>
    %1169 = math.exp %1168 : vector<8x32xf32>
    %cst_374 = arith.constant 1.000000e+00 : f32
    %1170 = vector.broadcast %cst_374 : f32 to vector<8x32xf32>
    %1171 = arith.addf %1170, %1169 : vector<8x32xf32>
    %1172 = arith.divf %1170, %1171 : vector<8x32xf32>
    %1173 = vector.extract_strided_slice %1135 {offsets = [0, 32], sizes = [8, 32], strides = [1, 1]} : vector<8x128xf32> to vector<8x32xf32>
    %1174 = arith.negf %1173 : vector<8x32xf32>
    %1175 = math.exp %1174 : vector<8x32xf32>
    %cst_375 = arith.constant 1.000000e+00 : f32
    %1176 = vector.broadcast %cst_375 : f32 to vector<8x32xf32>
    %1177 = arith.addf %1176, %1175 : vector<8x32xf32>
    %1178 = arith.divf %1176, %1177 : vector<8x32xf32>
    %1179 = vector.extract_strided_slice %1135 {offsets = [0, 64], sizes = [8, 32], strides = [1, 1]} : vector<8x128xf32> to vector<8x32xf32>
    %1180 = math.tanh %1179 : vector<8x32xf32>
    %1181 = vector.extract_strided_slice %1135 {offsets = [0, 96], sizes = [8, 32], strides = [1, 1]} : vector<8x128xf32> to vector<8x32xf32>
    %1182 = arith.negf %1181 : vector<8x32xf32>
    %1183 = math.exp %1182 : vector<8x32xf32>
    %cst_376 = arith.constant 1.000000e+00 : f32
    %1184 = vector.broadcast %cst_376 : f32 to vector<8x32xf32>
    %1185 = arith.addf %1184, %1183 : vector<8x32xf32>
    %1186 = arith.divf %1184, %1185 : vector<8x32xf32>
    %1187 = arith.mulf %1178, %1126 : vector<8x32xf32>
    %1188 = arith.mulf %1172, %1180 : vector<8x32xf32>
    %1189 = arith.addf %1187, %1188 : vector<8x32xf32>
    %1190 = math.tanh %1189 : vector<8x32xf32>
    %1191 = arith.mulf %1186, %1190 : vector<8x32xf32>
    %1192 = arith.select %1138, %1166, %1123 : vector<8x32xi1>, vector<8x32xf32>
    %1193 = arith.select %1141, %1191, %1125 : vector<8x32xi1>, vector<8x32xf32>
    %1194 = tpu.concatenate %601, %1192, %602, %1193 in 1 : vector<8x32xf32>, vector<8x32xf32>, vector<8x32xf32>, vector<8x32xf32> -> vector<8x128xf32>
    %c0_377 = arith.constant 0 : index
    %c0_378 = arith.constant 0 : index
    %1195 = vector.load %arg10[%c0_377, %c0_378] : memref<128x64xf32, #tpu.memory_space<vmem>>, vector<128x64xf32>
    %cst_379 = arith.constant dense<0.000000e+00> : vector<8x64xf32>
    %1196 = tpu.matmul %1194, %1195, %cst_379 {dimension_numbers = #tpu.dot_dimension_numbers<[1], [0], [0], [1], [0, 0, 1, 1], [], []>} : vector<8x128xf32>, vector<128x64xf32>, vector<8x64xf32> -> vector<8x64xf32>
    %c0_380 = arith.constant 0 : index
    %c0_381 = arith.constant 0 : index
    %1197 = vector.load %arg11[%c0_380, %c0_381] : memref<1x64xf32, #tpu.memory_space<vmem>>, vector<1x64xf32>
    %1198 = vector.broadcast %1197 : vector<1x64xf32> to vector<8x64xf32>
    %1199 = arith.addf %1196, %1198 : vector<8x64xf32>
    %cst_382 = arith.constant 0.000000e+00 : f32
    %1200 = vector.broadcast %cst_382 : f32 to vector<8x64xf32>
    %1201 = arith.maximumf %1199, %1200 : vector<8x64xf32>
    %c0_383 = arith.constant 0 : index
    %c0_384 = arith.constant 0 : index
    %1202 = vector.load %arg12[%c0_383, %c0_384] : memref<64x8xf32, #tpu.memory_space<vmem>>, vector<64x8xf32>
    %cst_385 = arith.constant dense<0.000000e+00> : vector<8x8xf32>
    %1203 = tpu.matmul %1201, %1202, %cst_385 {dimension_numbers = #tpu.dot_dimension_numbers<[1], [0], [0], [1], [0, 0, 1, 1], [], []>} : vector<8x64xf32>, vector<64x8xf32>, vector<8x8xf32> -> vector<8x8xf32>
    %c0_386 = arith.constant 0 : index
    %c0_387 = arith.constant 0 : index
    %1204 = vector.load %arg13[%c0_386, %c0_387] : memref<1x8xf32, #tpu.memory_space<vmem>>, vector<1x8xf32>
    %1205 = vector.broadcast %1204 : vector<1x8xf32> to vector<8x8xf32>
    %1206 = arith.addf %1203, %1205 : vector<8x8xf32>
    %1207 = vector.extract_strided_slice %1201 {offsets = [0, 0], sizes = [2, 64], strides = [1, 1]} : vector<8x64xf32> to vector<2x64xf32>
    %c0_388 = arith.constant 0 : index
    %c0_389 = arith.constant 0 : index
    %1208 = vector.load %arg15[%c0_388, %c0_389] : memref<2x64xf32, #tpu.memory_space<vmem>>, vector<2x64xf32>
    tpu.vector_store %arg15[%c0_388, %c0_389], %1207 {strides = array<i32>} : memref<2x64xf32, #tpu.memory_space<vmem>>, vector<2x64xf32>,
    %1209 = vector.extract_strided_slice %1206 {offsets = [0, 0], sizes = [2, 8], strides = [1, 1]} : vector<8x8xf32> to vector<2x8xf32>
    %c0_390 = arith.constant 0 : index
    %c0_391 = arith.constant 0 : index
    %1210 = vector.load %arg14[%c0_390, %c0_391] : memref<2x8xf32, #tpu.memory_space<vmem>>, vector<2x8xf32>
    tpu.vector_store %arg14[%c0_390, %c0_391], %1209 {strides = array<i32>} : memref<2x8xf32, #tpu.memory_space<vmem>>, vector<2x8xf32>,
    return
  }
}

</mosaic_0001>

<llo_original>
// kernel: lstm_classifier_forward.1
$region0: #{lstm_classifier_forward.1}
  #allocation0 [shape = 'u32[]', space=smem, size = 0x4, offset = 0x4, fixed_abs, tag = 'smem constant byte address 0x4 - core index']
  #allocation1 [shape = 'u32[72,128]{1,0:T(1,128)}', space=vmem, size = 0x9000, scoped, tag = 'internal scratch']
  #allocation2 [shape = 'f32[64,256]{1,0:T(8,128)}', space=vmem, size = 0x10000, scoped, tag = 'scratch operand']
  #allocation3 [shape = 'f32[64,64]{1,0:T(8,128)}', space=vmem, size = 0x8000, scoped, tag = 'scratch operand']
  %s0 = inlined_call_operand.vmem [shape: f32[64,16], index: 0, kind: input, shape index: {}]
  %s1 = inlined_call_operand.vmem [shape: f32[64,32], index: 1, kind: input, shape index: {}]
  %s2 = inlined_call_operand.vmem [shape: f32[16,256], index: 2, kind: input, shape index: {}]
  %s3 = inlined_call_operand.vmem [shape: f32[64,256], index: 3, kind: input, shape index: {}]
  %s4 = inlined_call_operand.vmem [shape: f32[1,256], index: 4, kind: input, shape index: {}]
  %s5 = inlined_call_operand.vmem [shape: f32[1,64], index: 5, kind: input, shape index: {}]
  %s6 = inlined_call_operand.vmem [shape: f32[1,64], index: 6, kind: input, shape index: {}]
  %s7 = inlined_call_operand.vmem [shape: f32[64,256], index: 7, kind: input, shape index: {}]
  %s8 = inlined_call_operand.vmem [shape: f32[64,256], index: 8, kind: input, shape index: {}]
  %s9 = inlined_call_operand.vmem [shape: f32[1,256], index: 9, kind: input, shape index: {}]
  %s10 = inlined_call_operand.vmem [shape: f32[128,64], index: 10, kind: input, shape index: {}]
  %s11 = inlined_call_operand.vmem [shape: f32[1,64], index: 11, kind: input, shape index: {}]
  %s12 = inlined_call_operand.vmem [shape: f32[64,8], index: 12, kind: input, shape index: {}]
  %s13 = inlined_call_operand.vmem [shape: f32[1,8], index: 13, kind: input, shape index: {}]
  %s14 = inlined_call_operand.hbm [shape: f32[2,8], index: 14, kind: output, shape index: {0}]
  %s15 = inlined_call_operand.hbm [shape: f32[2,64], index: 15, kind: output, shape index: {1}]
  %16 = xla_tuple %s14, %s15
  %s17 = sld [smem:[#allocation0]]
  $region74: #{lstm_classifier_forward.1} parent=0
    _
  %s19 = ssub.s32 1, %s17
  %s20 = scalar_select 0, %s19, %s17
  $region1: #{lstm_classifier_forward.1} parent=0
    #allocation4 [shape = 'u8[1024]{0}', space=vmem, size = 0x400, scoped, tag = 'output window, operand 0, single buffered']
    #allocation5 [shape = 's32[1]{0}', space=sflag, size = 0x4, scoped, tag = 'scoped memory for lstm_classifier_forward.1']
    #allocation6 [shape = 'u8[1024]{0}', space=vmem, size = 0x400, scoped, tag = 'output window, operand 1, single buffered']
    #allocation7 [shape = 's32[1]{0}', space=sflag, size = 0x4, scoped, tag = 'scoped memory for lstm_classifier_forward.1']
    %21 = vsyncpa [#allocation5], 0
    %22 = vsyncpa [#allocation7], 0
    // Predicated region
    $region2: #{lstm_classifier_forward.1} parent=1 // pred_check
      _
    $region3: #{lstm_classifier_forward.1} parent=1 // pred_check_branch
      %24 = sbr.rel (0) target = $region5
    $region4: #{lstm_classifier_forward.1} parent=1 // pred_region
      _
    $region5: #{lstm_classifier_forward.1} parent=1 // pred_fallthru
      _
    // Predicated region
    $region6: #{lstm_classifier_forward.1} parent=1 // pred_check
      _
    $region7: #{lstm_classifier_forward.1} parent=1 // pred_check_branch
      %26 = sbr.rel (0) target = $region9
    $region8: #{lstm_classifier_forward.1} parent=1 // pred_region
      _
    $region9: #{lstm_classifier_forward.1} parent=1 // pred_fallthru
      _
    // Predicated region
    $region10: #{lstm_classifier_forward.1} parent=1 // pred_check
      _
    $region11: #{lstm_classifier_forward.1} parent=1 // pred_check_branch
      %28 = sbr.rel (0) target = $region13
    $region12: #{lstm_classifier_forward.1} parent=1 // pred_region
      _
    $region13: #{lstm_classifier_forward.1} parent=1 // pred_fallthru
      _
    // Predicated region
    $region14: #{lstm_classifier_forward.1} parent=1 // pred_check
      _
    $region15: #{lstm_classifier_forward.1} parent=1 // pred_check_branch
      %30 = sbr.rel (0) target = $region17
    $region16: #{lstm_classifier_forward.1} parent=1 // pred_region
      _
    $region17: #{lstm_classifier_forward.1} parent=1 // pred_fallthru
      _
    // Predicated region
    $region18: #{lstm_classifier_forward.1} parent=1 // pred_check
      _
    $region19: #{lstm_classifier_forward.1} parent=1 // pred_check_branch
      %32 = sbr.rel (0) target = $region21
    $region20: #{lstm_classifier_forward.1} parent=1 // pred_region
      _
    $region21: #{lstm_classifier_forward.1} parent=1 // pred_fallthru
      _
    // Predicated region
    $region22: #{lstm_classifier_forward.1} parent=1 // pred_check
      _
    $region23: #{lstm_classifier_forward.1} parent=1 // pred_check_branch
      %34 = sbr.rel (0) target = $region25
    $region24: #{lstm_classifier_forward.1} parent=1 // pred_region
      _
    $region25: #{lstm_classifier_forward.1} parent=1 // pred_fallthru
      _
    // Predicated region
    $region26: #{lstm_classifier_forward.1} parent=1 // pred_check
      _
    $region27: #{lstm_classifier_forward.1} parent=1 // pred_check_branch
      %36 = sbr.rel (0) target = $region29
    $region28: #{lstm_classifier_forward.1} parent=1 // pred_region
      _
    $region29: #{lstm_classifier_forward.1} parent=1 // pred_fallthru
      _
    // Predicated region
    $region30: #{lstm_classifier_forward.1} parent=1 // pred_check
      _
    $region31: #{lstm_classifier_forward.1} parent=1 // pred_check_branch
      %38 = sbr.rel (0) target = $region33
    $region32: #{lstm_classifier_forward.1} parent=1 // pred_region
      _
    $region33: #{lstm_classifier_forward.1} parent=1 // pred_fallthru
      _
    // Predicated region
    $region34: #{lstm_classifier_forward.1} parent=1 // pred_check
      _
    $region35: #{lstm_classifier_forward.1} parent=1 // pred_check_branch
      %40 = sbr.rel (0) target = $region37
    $region36: #{lstm_classifier_forward.1} parent=1 // pred_region
      _
    $region37: #{lstm_classifier_forward.1} parent=1 // pred_fallthru
      _
    // Predicated region
    $region38: #{lstm_classifier_forward.1} parent=1 // pred_check
      _
    $region39: #{lstm_classifier_forward.1} parent=1 // pred_check_branch
      %42 = sbr.rel (0) target = $region41
    $region40: #{lstm_classifier_forward.1} parent=1 // pred_region
      _
    $region41: #{lstm_classifier_forward.1} parent=1 // pred_fallthru
      _
    // Predicated region
    $region42: #{lstm_classifier_forward.1} parent=1 // pred_check
      _
    $region43: #{lstm_classifier_forward.1} parent=1 // pred_check_branch
      %44 = sbr.rel (0) target = $region45
    $region44: #{lstm_classifier_forward.1} parent=1 // pred_region
      _
    $region45: #{lstm_classifier_forward.1} parent=1 // pred_fallthru
      _
    // Predicated region
    $region46: #{lstm_classifier_forward.1} parent=1 // pred_check
      _
    $region47: #{lstm_classifier_forward.1} parent=1 // pred_check_branch
      %46 = sbr.rel (0) target = $region49
    $region48: #{lstm_classifier_forward.1} parent=1 // pred_region
      _
    $region49: #{lstm_classifier_forward.1} parent=1 // pred_fallthru
      _
    // Predicated region
    $region50: #{lstm_classifier_forward.1} parent=1 // pred_check
      _
    $region51: #{lstm_classifier_forward.1} parent=1 // pred_check_branch
      %48 = sbr.rel (0) target = $region53
    $region52: #{lstm_classifier_forward.1} parent=1 // pred_region
      _
    $region53: #{lstm_classifier_forward.1} parent=1 // pred_fallthru
      _
    // Predicated region
    $region54: #{lstm_classifier_forward.1} parent=1 // pred_check
      _
    $region55: #{lstm_classifier_forward.1} parent=1 // pred_check_branch
      %50 = sbr.rel (0) target = $region57
    $region56: #{lstm_classifier_forward.1} parent=1 // pred_region
      _
    $region57: #{lstm_classifier_forward.1} parent=1 // pred_fallthru
      _
    %v51 = vld [vmem:[%s0] sm:$0xff]
    %v52 = vld [vmem:[%s0 + $0x8] sm:$0xff]
    %v53 = vld [vmem:[%s0 + $0x10] sm:$0xff]
    %v54 = vld [vmem:[%s0 + $0x18] sm:$0xff]
    %v55 = vld [vmem:[%s0 + $0x20] sm:$0xff]
    %v56 = vld [vmem:[%s0 + $0x28] sm:$0xff]
    %v57 = vld [vmem:[%s0 + $0x30] sm:$0xff]
    %v58 = vld [vmem:[%s0 + $0x38] sm:$0xff]
    %v59 = vld [vmem:[%s2] sm:$0xff]
    %v60 = vld [vmem:[%s2 + $0x8] sm:$0xff]
    %v61 = vld [vmem:[%s2 + $0x10] sm:$0xff]
    %v62 = vld [vmem:[%s2 + $0x18] sm:$0xff]
    %v63 = vld [vmem:[%s4] sm:$0x3]
    %v65 = vperm.slane %v63, 0
    %v66 = vperm.slane %v63, 1
    %vm69 = vcmask 130048
    %v71 = vsel %vm69, %v51, 0
    %v74 = vsel %vm69, %v52, 0
    %v77 = vsel %vm69, %v53, 0
    %v80 = vsel %vm69, %v54, 0
    %v83 = vsel %vm69, %v55, 0
    %v86 = vsel %vm69, %v56, 0
    %v89 = vsel %vm69, %v57, 0
    %v92 = vsel %vm69, %v58, 0
    %94 = vmatpush.msra.mxu0 0.0
    %95 = vmatpush.msra.mxu0 0.0
    %96 = vmatpush.msra.mxu0 0.0
    %97 = vmatpush.msra.mxu0 0.0
    %98 = vmatpush.msra.mxu0 0.0
    %99 = vmatpush.msra.mxu0 0.0
    %100 = vmatpush.msra.mxu0 0.0
    %101 = vmatpush.msra.mxu0 0.0
    %102 = vmatpush.msra.mxu0 0.0
    %103 = vmatpush.msra.mxu0 0.0
    %104 = vmatpush.msra.mxu0 0.0
    %105 = vmatpush.msra.mxu0 0.0
    %106 = vmatpush.msra.mxu0 0.0
    %107 = vmatpush.msra.mxu0 0.0
    %108 = vmatpush.msra.mxu0 %v61
    %109 = vmatpush.msra.mxu0 %v59
    %110 = vmatmul.f32.gmra.mxu0 %v71
    %v111 = vpop.f32.mrf.mxu0
    %v112 = vadd.f32 %v65, %v111
    %113 = vmatmul.f32.gmra.mxu0 %v74
    %v114 = vpop.f32.mrf.mxu0
    %v115 = vadd.f32 %v65, %v114
    %116 = vmatmul.f32.gmra.mxu0 %v77
    %v117 = vpop.f32.mrf.mxu0
    %v118 = vadd.f32 %v65, %v117
    %119 = vmatmul.f32.gmra.mxu0 %v80
    %v120 = vpop.f32.mrf.mxu0
    %v121 = vadd.f32 %v65, %v120
    %122 = vmatmul.f32.gmra.mxu0 %v83
    %v123 = vpop.f32.mrf.mxu0
    %v124 = vadd.f32 %v65, %v123
    %125 = vmatmul.f32.gmra.mxu0 %v86
    %v126 = vpop.f32.mrf.mxu0
    %v127 = vadd.f32 %v65, %v126
    %128 = vmatmul.f32.gmra.mxu0 %v89
    %v129 = vpop.f32.mrf.mxu0
    %v130 = vadd.f32 %v65, %v129
    %131 = vmatmul.f32.gmra.mxu0 %v92
    %v132 = vpop.f32.mrf.mxu0
    %v133 = vadd.f32 %v65, %v132
    %134 = vdwg.mxu0
    %135 = vmatpush.msra.mxu0 0.0
    %136 = vmatpush.msra.mxu0 0.0
    %137 = vmatpush.msra.mxu0 0.0
    %138 = vmatpush.msra.mxu0 0.0
    %139 = vmatpush.msra.mxu0 0.0
    %140 = vmatpush.msra.mxu0 0.0
    %141 = vmatpush.msra.mxu0 0.0
    %142 = vmatpush.msra.mxu0 0.0
    %143 = vmatpush.msra.mxu0 0.0
    %144 = vmatpush.msra.mxu0 0.0
    %145 = vmatpush.msra.mxu0 0.0
    %146 = vmatpush.msra.mxu0 0.0
    %147 = vmatpush.msra.mxu0 0.0
    %148 = vmatpush.msra.mxu0 0.0
    %149 = vmatpush.msra.mxu0 %v62
    %150 = vmatpush.msra.mxu0 %v60
    %151 = vmatmul.f32.gmra.mxu0 %v71
    %v152 = vpop.f32.mrf.mxu0
    %v153 = vadd.f32 %v66, %v152
    %154 = vmatmul.f32.gmra.mxu0 %v74
    %v155 = vpop.f32.mrf.mxu0
    %v156 = vadd.f32 %v66, %v155
    %157 = vmatmul.f32.gmra.mxu0 %v77
    %v158 = vpop.f32.mrf.mxu0
    %v159 = vadd.f32 %v66, %v158
    %160 = vmatmul.f32.gmra.mxu0 %v80
    %v161 = vpop.f32.mrf.mxu0
    %v162 = vadd.f32 %v66, %v161
    %163 = vmatmul.f32.gmra.mxu0 %v83
    %v164 = vpop.f32.mrf.mxu0
    %v165 = vadd.f32 %v66, %v164
    %166 = vmatmul.f32.gmra.mxu0 %v86
    %v167 = vpop.f32.mrf.mxu0
    %v168 = vadd.f32 %v66, %v167
    %169 = vmatmul.f32.gmra.mxu0 %v89
    %v170 = vpop.f32.mrf.mxu0
    %v171 = vadd.f32 %v66, %v170
    %172 = vmatmul.f32.gmra.mxu0 %v92
    %v173 = vpop.f32.mrf.mxu0
    %v174 = vadd.f32 %v66, %v173
    %175 = vdwg.mxu0
    %176 = vst [vmem:[#allocation2] sm:$0xff] %v112
    %177 = vst [vmem:[#allocation2 + $0x8] sm:$0xff] %v153
    %178 = vst [vmem:[#allocation2 + $0x10] sm:$0xff] %v115
    %179 = vst [vmem:[#allocation2 + $0x18] sm:$0xff] %v156
    %180 = vst [vmem:[#allocation2 + $0x20] sm:$0xff] %v118
    %181 = vst [vmem:[#allocation2 + $0x28] sm:$0xff] %v159
    %182 = vst [vmem:[#allocation2 + $0x30] sm:$0xff] %v121
    %183 = vst [vmem:[#allocation2 + $0x38] sm:$0xff] %v162
    %184 = vst [vmem:[#allocation2 + $0x40] sm:$0xff] %v124
    %185 = vst [vmem:[#allocation2 + $0x48] sm:$0xff] %v165
    %186 = vst [vmem:[#allocation2 + $0x50] sm:$0xff] %v127
    %187 = vst [vmem:[#allocation2 + $0x58] sm:$0xff] %v168
    %188 = vst [vmem:[#allocation2 + $0x60] sm:$0xff] %v130
    %189 = vst [vmem:[#allocation2 + $0x68] sm:$0xff] %v171
    %190 = vst [vmem:[#allocation2 + $0x70] sm:$0xff] %v133
    %191 = vst [vmem:[#allocation2 + $0x78] sm:$0xff] %v174
    %v192 = vld [vmem:[%s3] sm:$0xff]
    %v193 = vld [vmem:[%s3 + $0x8] sm:$0xff]
    %v194 = vld [vmem:[%s3 + $0x10] sm:$0xff]
    %v195 = vld [vmem:[%s3 + $0x18] sm:$0xff]
    %v196 = vld [vmem:[%s3 + $0x20] sm:$0xff]
    %v197 = vld [vmem:[%s3 + $0x28] sm:$0xff]
    %v198 = vld [vmem:[%s3 + $0x30] sm:$0xff]
    %v199 = vld [vmem:[%s3 + $0x38] sm:$0xff]
    %v200 = vld [vmem:[%s3 + $0x40] sm:$0xff]
    %v201 = vld [vmem:[%s3 + $0x48] sm:$0xff]
    %v202 = vld [vmem:[%s3 + $0x50] sm:$0xff]
    %v203 = vld [vmem:[%s3 + $0x58] sm:$0xff]
    %v204 = vld [vmem:[%s3 + $0x60] sm:$0xff]
    %v205 = vld [vmem:[%s3 + $0x68] sm:$0xff]
    %v206 = vld [vmem:[%s3 + $0x70] sm:$0xff]
    %v207 = vld [vmem:[%s3 + $0x78] sm:$0xff]
    %vm208 = vcmask 523264
    %v210 = vsel %vm208, 0.0, 0
    %212 = vmatpush.msra.mxu0 0.0
    %213 = vmatpush.msra.mxu0 0.0
    %214 = vmatpush.msra.mxu0 0.0
    %215 = vmatpush.msra.mxu0 0.0
    %216 = vmatpush.msra.mxu0 0.0
    %217 = vmatpush.msra.mxu0 0.0
    %218 = vmatpush.msra.mxu0 0.0
    %219 = vmatpush.msra.mxu0 0.0
    %220 = vmatpush.msra.mxu0 %v206
    %221 = vmatpush.msra.mxu0 %v204
    %222 = vmatpush.msra.mxu0 %v202
    %223 = vmatpush.msra.mxu0 %v200
    %224 = vmatpush.msra.mxu0 %v198
    %225 = vmatpush.msra.mxu0 %v196
    %226 = vmatpush.msra.mxu0 %v194
    %227 = vmatpush.msra.mxu0 %v192
    %228 = vmatmul.f32.gmra.mxu0 %v210
    %v229 = vpop.f32.mrf.mxu0
    %v230 = vadd.f32 0.0, %v229
    %231 = vdwg.mxu0
    %232 = vmatpush.msra.mxu0 0.0
    %233 = vmatpush.msra.mxu0 0.0
    %234 = vmatpush.msra.mxu0 0.0
    %235 = vmatpush.msra.mxu0 0.0
    %236 = vmatpush.msra.mxu0 0.0
    %237 = vmatpush.msra.mxu0 0.0
    %238 = vmatpush.msra.mxu0 0.0
    %239 = vmatpush.msra.mxu0 0.0
    %240 = vmatpush.msra.mxu0 %v207
    %241 = vmatpush.msra.mxu0 %v205
    %242 = vmatpush.msra.mxu0 %v203
    %243 = vmatpush.msra.mxu0 %v201
    %244 = vmatpush.msra.mxu0 %v199
    %245 = vmatpush.msra.mxu0 %v197
    %246 = vmatpush.msra.mxu0 %v195
    %247 = vmatpush.msra.mxu0 %v193
    %248 = vmatmul.f32.gmra.mxu0 %v210
    %v249 = vpop.f32.mrf.mxu0
    %v250 = vadd.f32 0.0, %v249
    %251 = vdwg.mxu0
    %v252 = vld [vmem:[#allocation2] sm:$0xff]
    %v253 = vadd.f32 %v252, %v230
    %v254 = vld [vmem:[#allocation2 + $0x78] sm:$0xff]
    %v255 = vadd.f32 %v254, %v250
    %v256 = vld [vmem:[%s1] sm:$0xff]
    %vm257 = vcmp.gt.f32.partialorder %v256, 0.5
    %v258 = vld [vmem:[%s1 + $0x38] sm:$0xff]
    %vm259 = vcmp.gt.f32.partialorder %v258, 0.5
    %v260 = vxor.u32 %v253, 2147483648
    %v261 = vmul.f32 %v260, 1.442695
    %v262 = vpow.pop %v261
    %v263 = vadd.f32 %v262, 1.0
    %v264 = vrcp.pop %v263
    %v265 = vmul.f32 %v263, %v264
    %v266 = vsub.f32 1.0, %v265
    %v267 = vmul.f32 %v264, %v266
    %v268 = vadd.f32 %v264, %v267
    %vm269 = vweird.f32 %v263
    %vm270 = vweird.f32 %v264
    %vm271 = vmor %vm269, %vm270
    %v272 = vsel %vm271, %v264, %v268
    %v273 = vand.u32 2147483647, %v263
    %vm274 = vcmp.eq.f32.partialorder %v273, 8.507059e+37
    %v275 = vand.u32 %v263, 2147483648
    %v276 = vor.u32 1.1754944e-38, %v275
    %v277 = vsel %vm274, %v276, %v272
    %v278 = vmul.f32 1.0, %v277
    %v279 = vtanh.pop %v253
    %v280 = vmul.f32 %v278, 0.0
    %282 = vrot.lane.b32.xlu0 %v279, 64
    %v283 = vpop.permute.xlu0 %282
    %v285 = vmul.f32 %v278, %v283
    %287 = vrot.lane.b32.xlu0 %v285, 32
    %v288 = vpop.permute.xlu0 %287
    %v290 = vadd.f32 %v280, %v288
    %v291 = vtanh.pop %v290
    %293 = vrot.lane.b32.xlu0 %v291, 64
    %v294 = vpop.permute.xlu0 %293
    %v296 = vmul.f32 %v278, %v294
    %v297 = vxor.u32 %v255, 2147483648
    %v298 = vmul.f32 %v297, 1.442695
    %v299 = vpow.pop %v298
    %v300 = vadd.f32 %v299, 1.0
    %v301 = vrcp.pop %v300
    %v302 = vmul.f32 %v300, %v301
    %v303 = vsub.f32 1.0, %v302
    %v304 = vmul.f32 %v301, %v303
    %v305 = vadd.f32 %v301, %v304
    %vm306 = vweird.f32 %v300
    %vm307 = vweird.f32 %v301
    %vm308 = vmor %vm306, %vm307
    %v309 = vsel %vm308, %v301, %v305
    %v310 = vand.u32 2147483647, %v300
    %vm311 = vcmp.eq.f32.partialorder %v310, 8.507059e+37
    %v312 = vand.u32 %v300, 2147483648
    %v313 = vor.u32 1.1754944e-38, %v312
    %v314 = vsel %vm311, %v313, %v309
    %v315 = vmul.f32 1.0, %v314
    %v316 = vtanh.pop %v255
    %v317 = vmul.f32 %v315, 0.0
    %319 = vrot.lane.b32.xlu0 %v316, 64
    %v320 = vpop.permute.xlu0 %319
    %v322 = vmul.f32 %v315, %v320
    %324 = vrot.lane.b32.xlu0 %v322, 32
    %v325 = vpop.permute.xlu0 %324
    %v327 = vadd.f32 %v317, %v325
    %v328 = vtanh.pop %v327
    %330 = vrot.lane.b32.xlu0 %v328, 64
    %v331 = vpop.permute.xlu0 %330
    %v333 = vmul.f32 %v315, %v331
    %335 = vrot.lane.b32.xlu0 %v296, 32
    %v336 = vpop.permute.xlu0 %335
    %v338 = vsel %vm257, %v336, 0.0
    %340 = vrot.lane.b32.xlu0 %v290, 96
    %v341 = vpop.permute.xlu0 %340
    %v343 = vsel %vm257, %v341, 0.0
    %345 = vrot.lane.b32.xlu0 %v333, 32
    %v346 = vpop.permute.xlu0 %345
    %v348 = vsel %vm259, %v346, 0.0
    %350 = vrot.lane.b32.xlu0 %v327, 96
    %v351 = vpop.permute.xlu0 %350
    %v353 = vsel %vm259, %v351, 0.0
    %vm354 = vcmask 261120
    %355 = vst.msk [vmem:[#allocation3] sm:$0xff] %vm354, %v338
    %357 = vrot.lane.b32.xlu0 %v348, 32
    %v358 = vpop.permute.xlu0 %357
    %vm360 = vcmask 523520
    %361 = vst.msk [vmem:[#allocation3 + $0x38] sm:$0xff] %vm360, %v358
    %v362 = vsel %vm354, %v338, %v358
    %v363 = vld [vmem:[%s3] sm:$0xff]
    %v364 = vld [vmem:[%s3 + $0x8] sm:$0xff]
    %v365 = vld [vmem:[%s3 + $0x10] sm:$0xff]
    %v366 = vld [vmem:[%s3 + $0x18] sm:$0xff]
    %v367 = vld [vmem:[%s3 + $0x20] sm:$0xff]
    %v368 = vld [vmem:[%s3 + $0x28] sm:$0xff]
    %v369 = vld [vmem:[%s3 + $0x30] sm:$0xff]
    %v370 = vld [vmem:[%s3 + $0x38] sm:$0xff]
    %v371 = vld [vmem:[%s3 + $0x40] sm:$0xff]
    %v372 = vld [vmem:[%s3 + $0x48] sm:$0xff]
    %v373 = vld [vmem:[%s3 + $0x50] sm:$0xff]
    %v374 = vld [vmem:[%s3 + $0x58] sm:$0xff]
    %v375 = vld [vmem:[%s3 + $0x60] sm:$0xff]
    %v376 = vld [vmem:[%s3 + $0x68] sm:$0xff]
    %v377 = vld [vmem:[%s3 + $0x70] sm:$0xff]
    %v378 = vld [vmem:[%s3 + $0x78] sm:$0xff]
    %v380 = vsel %vm208, %v362, 0
    %382 = vmatpush.msra.mxu0 0.0
    %383 = vmatpush.msra.mxu0 0.0
    %384 = vmatpush.msra.mxu0 0.0
    %385 = vmatpush.msra.mxu0 0.0
    %386 = vmatpush.msra.mxu0 0.0
    %387 = vmatpush.msra.mxu0 0.0
    %388 = vmatpush.msra.mxu0 0.0
    %389 = vmatpush.msra.mxu0 0.0
    %390 = vmatpush.msra.mxu0 %v377
    %391 = vmatpush.msra.mxu0 %v375
    %392 = vmatpush.msra.mxu0 %v373
    %393 = vmatpush.msra.mxu0 %v371
    %394 = vmatpush.msra.mxu0 %v369
    %395 = vmatpush.msra.mxu0 %v367
    %396 = vmatpush.msra.mxu0 %v365
    %397 = vmatpush.msra.mxu0 %v363
    %398 = vmatmul.f32.gmra.mxu0 %v380
    %v399 = vpop.f32.mrf.mxu0
    %v400 = vadd.f32 0.0, %v399
    %401 = vdwg.mxu0
    %402 = vmatpush.msra.mxu0 0.0
    %403 = vmatpush.msra.mxu0 0.0
    %404 = vmatpush.msra.mxu0 0.0
    %405 = vmatpush.msra.mxu0 0.0
    %406 = vmatpush.msra.mxu0 0.0
    %407 = vmatpush.msra.mxu0 0.0
    %408 = vmatpush.msra.mxu0 0.0
    %409 = vmatpush.msra.mxu0 0.0
    %410 = vmatpush.msra.mxu0 %v378
    %411 = vmatpush.msra.mxu0 %v376
    %412 = vmatpush.msra.mxu0 %v374
    %413 = vmatpush.msra.mxu0 %v372
    %414 = vmatpush.msra.mxu0 %v370
    %415 = vmatpush.msra.mxu0 %v368
    %416 = vmatpush.msra.mxu0 %v366
    %417 = vmatpush.msra.mxu0 %v364
    %418 = vmatmul.f32.gmra.mxu0 %v380
    %v419 = vpop.f32.mrf.mxu0
    %v420 = vadd.f32 0.0, %v419
    %421 = vdwg.mxu0
    %v422 = vld [vmem:[#allocation2 + $0x10] sm:$0xff]
    %v423 = vadd.f32 %v422, %v400
    %v424 = vld [vmem:[#allocation2 + $0x68] sm:$0xff]
    %v425 = vadd.f32 %v424, %v420
    %v426 = vld [vmem:[%s1 + $0x8] sm:$0xff]
    %vm427 = vcmp.gt.f32.partialorder %v426, 0.5
    %v428 = vld [vmem:[%s1 + $0x30] sm:$0xff]
    %vm429 = vcmp.gt.f32.partialorder %v428, 0.5
    %v430 = vxor.u32 %v423, 2147483648
    %v431 = vmul.f32 %v430, 1.442695
    %v432 = vpow.pop %v431
    %v433 = vadd.f32 %v432, 1.0
    %v434 = vrcp.pop %v433
    %v435 = vmul.f32 %v433, %v434
    %v436 = vsub.f32 1.0, %v435
    %v437 = vmul.f32 %v434, %v436
    %v438 = vadd.f32 %v434, %v437
    %vm439 = vweird.f32 %v433
    %vm440 = vweird.f32 %v434
    %vm441 = vmor %vm439, %vm440
    %v442 = vsel %vm441, %v434, %v438
    %v443 = vand.u32 2147483647, %v433
    %vm444 = vcmp.eq.f32.partialorder %v443, 8.507059e+37
    %v445 = vand.u32 %v433, 2147483648
    %v446 = vor.u32 1.1754944e-38, %v445
    %v447 = vsel %vm444, %v446, %v442
    %v448 = vmul.f32 1.0, %v447
    %v449 = vtanh.pop %v423
    %451 = vrot.lane.b32.xlu0 %v343, 32
    %v452 = vpop.permute.xlu0 %451
    %v454 = vmul.f32 %v448, %v452
    %456 = vrot.lane.b32.xlu0 %v449, 64
    %v457 = vpop.permute.xlu0 %456
    %v459 = vmul.f32 %v448, %v457
    %461 = vrot.lane.b32.xlu0 %v459, 32
    %v462 = vpop.permute.xlu0 %461
    %v464 = vadd.f32 %v454, %v462
    %v465 = vtanh.pop %v464
    %467 = vrot.lane.b32.xlu0 %v465, 64
    %v468 = vpop.permute.xlu0 %467
    %v470 = vmul.f32 %v448, %v468
    %v471 = vxor.u32 %v425, 2147483648
    %v472 = vmul.f32 %v471, 1.442695
    %v473 = vpow.pop %v472
    %v474 = vadd.f32 %v473, 1.0
    %v475 = vrcp.pop %v474
    %v476 = vmul.f32 %v474, %v475
    %v477 = vsub.f32 1.0, %v476
    %v478 = vmul.f32 %v475, %v477
    %v479 = vadd.f32 %v475, %v478
    %vm480 = vweird.f32 %v474
    %vm481 = vweird.f32 %v475
    %vm482 = vmor %vm480, %vm481
    %v483 = vsel %vm482, %v475, %v479
    %v484 = vand.u32 2147483647, %v474
    %vm485 = vcmp.eq.f32.partialorder %v484, 8.507059e+37
    %v486 = vand.u32 %v474, 2147483648
    %v487 = vor.u32 1.1754944e-38, %v486
    %v488 = vsel %vm485, %v487, %v483
    %v489 = vmul.f32 1.0, %v488
    %v490 = vtanh.pop %v425
    %492 = vrot.lane.b32.xlu0 %v353, 32
    %v493 = vpop.permute.xlu0 %492
    %v495 = vmul.f32 %v489, %v493
    %497 = vrot.lane.b32.xlu0 %v490, 64
    %v498 = vpop.permute.xlu0 %497
    %v500 = vmul.f32 %v489, %v498
    %502 = vrot.lane.b32.xlu0 %v500, 32
    %v503 = vpop.permute.xlu0 %502
    %v505 = vadd.f32 %v495, %v503
    %v506 = vtanh.pop %v505
    %508 = vrot.lane.b32.xlu0 %v506, 64
    %v509 = vpop.permute.xlu0 %508
    %v511 = vmul.f32 %v489, %v509
    %513 = vrot.lane.b32.xlu0 %v470, 32
    %v514 = vpop.permute.xlu0 %513
    %v516 = vsel %vm427, %v514, %v338
    %518 = vrot.lane.b32.xlu0 %v464, 96
    %v519 = vpop.permute.xlu0 %518
    %v521 = vsel %vm427, %v519, %v343
    %523 = vrot.lane.b32.xlu0 %v511, 32
    %v524 = vpop.permute.xlu0 %523
    %v526 = vsel %vm429, %v524, %v348
    %528 = vrot.lane.b32.xlu0 %v505, 96
    %v529 = vpop.permute.xlu0 %528
    %v531 = vsel %vm429, %v529, %v353
    %v532 = vsel %vm427, %v514, 0.0
    %533 = vst.msk [vmem:[#allocation3 + $0x8] sm:$0xff] %vm354, %v532
    %v534 = vsel %vm429, %v524, 0.0
    %536 = vrot.lane.b32.xlu0 %v534, 32
    %v537 = vpop.permute.xlu0 %536
    %539 = vst.msk [vmem:[#allocation3 + $0x30] sm:$0xff] %vm360, %v537
    %541 = vrot.lane.b32.xlu0 %v526, 32
    %v542 = vpop.permute.xlu0 %541
    %v544 = vsel %vm354, %v516, %v542
    %v545 = vld [vmem:[%s3] sm:$0xff]
    %v546 = vld [vmem:[%s3 + $0x8] sm:$0xff]
    %v547 = vld [vmem:[%s3 + $0x10] sm:$0xff]
    %v548 = vld [vmem:[%s3 + $0x18] sm:$0xff]
    %v549 = vld [vmem:[%s3 + $0x20] sm:$0xff]
    %v550 = vld [vmem:[%s3 + $0x28] sm:$0xff]
    %v551 = vld [vmem:[%s3 + $0x30] sm:$0xff]
    %v552 = vld [vmem:[%s3 + $0x38] sm:$0xff]
    %v553 = vld [vmem:[%s3 + $0x40] sm:$0xff]
    %v554 = vld [vmem:[%s3 + $0x48] sm:$0xff]
    %v555 = vld [vmem:[%s3 + $0x50] sm:$0xff]
    %v556 = vld [vmem:[%s3 + $0x58] sm:$0xff]
    %v557 = vld [vmem:[%s3 + $0x60] sm:$0xff]
    %v558 = vld [vmem:[%s3 + $0x68] sm:$0xff]
    %v559 = vld [vmem:[%s3 + $0x70] sm:$0xff]
    %v560 = vld [vmem:[%s3 + $0x78] sm:$0xff]
    %v562 = vsel %vm208, %v544, 0
    %564 = vmatpush.msra.mxu0 0.0
    %565 = vmatpush.msra.mxu0 0.0
    %566 = vmatpush.msra.mxu0 0.0
    %567 = vmatpush.msra.mxu0 0.0
    %568 = vmatpush.msra.mxu0 0.0
    %569 = vmatpush.msra.mxu0 0.0
    %570 = vmatpush.msra.mxu0 0.0
    %571 = vmatpush.msra.mxu0 0.0
    %572 = vmatpush.msra.mxu0 %v559
    %573 = vmatpush.msra.mxu0 %v557
    %574 = vmatpush.msra.mxu0 %v555
    %575 = vmatpush.msra.mxu0 %v553
    %576 = vmatpush.msra.mxu0 %v551
    %577 = vmatpush.msra.mxu0 %v549
    %578 = vmatpush.msra.mxu0 %v547
    %579 = vmatpush.msra.mxu0 %v545
    %580 = vmatmul.f32.gmra.mxu0 %v562
    %v581 = vpop.f32.mrf.mxu0
    %v582 = vadd.f32 0.0, %v581
    %583 = vdwg.mxu0
    %584 = vmatpush.msra.mxu0 0.0
    %585 = vmatpush.msra.mxu0 0.0
    %586 = vmatpush.msra.mxu0 0.0
    %587 = vmatpush.msra.mxu0 0.0
    %588 = vmatpush.msra.mxu0 0.0
    %589 = vmatpush.msra.mxu0 0.0
    %590 = vmatpush.msra.mxu0 0.0
    %591 = vmatpush.msra.mxu0 0.0
    %592 = vmatpush.msra.mxu0 %v560
    %593 = vmatpush.msra.mxu0 %v558
    %594 = vmatpush.msra.mxu0 %v556
    %595 = vmatpush.msra.mxu0 %v554
    %596 = vmatpush.msra.mxu0 %v552
    %597 = vmatpush.msra.mxu0 %v550
    %598 = vmatpush.msra.mxu0 %v548
    %599 = vmatpush.msra.mxu0 %v546
    %600 = vmatmul.f32.gmra.mxu0 %v562
    %v601 = vpop.f32.mrf.mxu0
    %v602 = vadd.f32 0.0, %v601
    %603 = vdwg.mxu0
    %v604 = vld [vmem:[#allocation2 + $0x20] sm:$0xff]
    %v605 = vadd.f32 %v604, %v582
    %v606 = vld [vmem:[#allocation2 + $0x58] sm:$0xff]
    %v607 = vadd.f32 %v606, %v602
    %v608 = vld [vmem:[%s1 + $0x10] sm:$0xff]
    %vm609 = vcmp.gt.f32.partialorder %v608, 0.5
    %v610 = vld [vmem:[%s1 + $0x28] sm:$0xff]
    %vm611 = vcmp.gt.f32.partialorder %v610, 0.5
    %v612 = vxor.u32 %v605, 2147483648
    %v613 = vmul.f32 %v612, 1.442695
    %v614 = vpow.pop %v613
    %v615 = vadd.f32 %v614, 1.0
    %v616 = vrcp.pop %v615
    %v617 = vmul.f32 %v615, %v616
    %v618 = vsub.f32 1.0, %v617
    %v619 = vmul.f32 %v616, %v618
    %v620 = vadd.f32 %v616, %v619
    %vm621 = vweird.f32 %v615
    %vm622 = vweird.f32 %v616
    %vm623 = vmor %vm621, %vm622
    %v624 = vsel %vm623, %v616, %v620
    %v625 = vand.u32 2147483647, %v615
    %vm626 = vcmp.eq.f32.partialorder %v625, 8.507059e+37
    %v627 = vand.u32 %v615, 2147483648
    %v628 = vor.u32 1.1754944e-38, %v627
    %v629 = vsel %vm626, %v628, %v624
    %v630 = vmul.f32 1.0, %v629
    %v631 = vtanh.pop %v605
    %633 = vrot.lane.b32.xlu0 %v521, 32
    %v634 = vpop.permute.xlu0 %633
    %v636 = vmul.f32 %v630, %v634
    %638 = vrot.lane.b32.xlu0 %v631, 64
    %v639 = vpop.permute.xlu0 %638
    %v641 = vmul.f32 %v630, %v639
    %643 = vrot.lane.b32.xlu0 %v641, 32
    %v644 = vpop.permute.xlu0 %643
    %v646 = vadd.f32 %v636, %v644
    %v647 = vtanh.pop %v646
    %649 = vrot.lane.b32.xlu0 %v647, 64
    %v650 = vpop.permute.xlu0 %649
    %v652 = vmul.f32 %v630, %v650
    %v653 = vxor.u32 %v607, 2147483648
    %v654 = vmul.f32 %v653, 1.442695
    %v655 = vpow.pop %v654
    %v656 = vadd.f32 %v655, 1.0
    %v657 = vrcp.pop %v656
    %v658 = vmul.f32 %v656, %v657
    %v659 = vsub.f32 1.0, %v658
    %v660 = vmul.f32 %v657, %v659
    %v661 = vadd.f32 %v657, %v660
    %vm662 = vweird.f32 %v656
    %vm663 = vweird.f32 %v657
    %vm664 = vmor %vm662, %vm663
    %v665 = vsel %vm664, %v657, %v661
    %v666 = vand.u32 2147483647, %v656
    %vm667 = vcmp.eq.f32.partialorder %v666, 8.507059e+37
    %v668 = vand.u32 %v656, 2147483648
    %v669 = vor.u32 1.1754944e-38, %v668
    %v670 = vsel %vm667, %v669, %v665
    %v671 = vmul.f32 1.0, %v670
    %v672 = vtanh.pop %v607
    %674 = vrot.lane.b32.xlu0 %v531, 32
    %v675 = vpop.permute.xlu0 %674
    %v677 = vmul.f32 %v671, %v675
    %679 = vrot.lane.b32.xlu0 %v672, 64
    %v680 = vpop.permute.xlu0 %679
    %v682 = vmul.f32 %v671, %v680
    %684 = vrot.lane.b32.xlu0 %v682, 32
    %v685 = vpop.permute.xlu0 %684
    %v687 = vadd.f32 %v677, %v685
    %v688 = vtanh.pop %v687
    %690 = vrot.lane.b32.xlu0 %v688, 64
    %v691 = vpop.permute.xlu0 %690
    %v693 = vmul.f32 %v671, %v691
    %695 = vrot.lane.b32.xlu0 %v652, 32
    %v696 = vpop.permute.xlu0 %695
    %v698 = vsel %vm609, %v696, %v516
    %700 = vrot.lane.b32.xlu0 %v646, 96
    %v701 = vpop.permute.xlu0 %700
    %v703 = vsel %vm609, %v701, %v521
    %705 = vrot.lane.b32.xlu0 %v693, 32
    %v706 = vpop.permute.xlu0 %705
    %v708 = vsel %vm611, %v706, %v526
    %710 = vrot.lane.b32.xlu0 %v687, 96
    %v711 = vpop.permute.xlu0 %710
    %v713 = vsel %vm611, %v711, %v531
    %v714 = vsel %vm609, %v696, 0.0
    %715 = vst.msk [vmem:[#allocation3 + $0x10] sm:$0xff] %vm354, %v714
    %v716 = vsel %vm611, %v706, 0.0
    %718 = vrot.lane.b32.xlu0 %v716, 32
    %v719 = vpop.permute.xlu0 %718
    %721 = vst.msk [vmem:[#allocation3 + $0x28] sm:$0xff] %vm360, %v719
    %723 = vrot.lane.b32.xlu0 %v708, 32
    %v724 = vpop.permute.xlu0 %723
    %v726 = vsel %vm354, %v698, %v724
    %v727 = vld [vmem:[%s3] sm:$0xff]
    %v728 = vld [vmem:[%s3 + $0x8] sm:$0xff]
    %v729 = vld [vmem:[%s3 + $0x10] sm:$0xff]
    %v730 = vld [vmem:[%s3 + $0x18] sm:$0xff]
    %v731 = vld [vmem:[%s3 + $0x20] sm:$0xff]
    %v732 = vld [vmem:[%s3 + $0x28] sm:$0xff]
    %v733 = vld [vmem:[%s3 + $0x30] sm:$0xff]
    %v734 = vld [vmem:[%s3 + $0x38] sm:$0xff]
    %v735 = vld [vmem:[%s3 + $0x40] sm:$0xff]
    %v736 = vld [vmem:[%s3 + $0x48] sm:$0xff]
    %v737 = vld [vmem:[%s3 + $0x50] sm:$0xff]
    %v738 = vld [vmem:[%s3 + $0x58] sm:$0xff]
    %v739 = vld [vmem:[%s3 + $0x60] sm:$0xff]
    %v740 = vld [vmem:[%s3 + $0x68] sm:$0xff]
    %v741 = vld [vmem:[%s3 + $0x70] sm:$0xff]
    %v742 = vld [vmem:[%s3 + $0x78] sm:$0xff]
    %v744 = vsel %vm208, %v726, 0
    %746 = vmatpush.msra.mxu0 0.0
    %747 = vmatpush.msra.mxu0 0.0
    %748 = vmatpush.msra.mxu0 0.0
    %749 = vmatpush.msra.mxu0 0.0
    %750 = vmatpush.msra.mxu0 0.0
    %751 = vmatpush.msra.mxu0 0.0
    %752 = vmatpush.msra.mxu0 0.0
    %753 = vmatpush.msra.mxu0 0.0
    %754 = vmatpush.msra.mxu0 %v741
    %755 = vmatpush.msra.mxu0 %v739
    %756 = vmatpush.msra.mxu0 %v737
    %757 = vmatpush.msra.mxu0 %v735
    %758 = vmatpush.msra.mxu0 %v733
    %759 = vmatpush.msra.mxu0 %v731
    %760 = vmatpush.msra.mxu0 %v729
    %761 = vmatpush.msra.mxu0 %v727
    %762 = vmatmul.f32.gmra.mxu0 %v744
    %v763 = vpop.f32.mrf.mxu0
    %v764 = vadd.f32 0.0, %v763
    %765 = vdwg.mxu0
    %766 = vmatpush.msra.mxu0 0.0
    %767 = vmatpush.msra.mxu0 0.0
    %768 = vmatpush.msra.mxu0 0.0
    %769 = vmatpush.msra.mxu0 0.0
    %770 = vmatpush.msra.mxu0 0.0
    %771 = vmatpush.msra.mxu0 0.0
    %772 = vmatpush.msra.mxu0 0.0
    %773 = vmatpush.msra.mxu0 0.0
    %774 = vmatpush.msra.mxu0 %v742
    %775 = vmatpush.msra.mxu0 %v740
    %776 = vmatpush.msra.mxu0 %v738
    %777 = vmatpush.msra.mxu0 %v736
    %778 = vmatpush.msra.mxu0 %v734
    %779 = vmatpush.msra.mxu0 %v732
    %780 = vmatpush.msra.mxu0 %v730
    %781 = vmatpush.msra.mxu0 %v728
    %782 = vmatmul.f32.gmra.mxu0 %v744
    %v783 = vpop.f32.mrf.mxu0
    %v784 = vadd.f32 0.0, %v783
    %785 = vdwg.mxu0
    %v786 = vld [vmem:[#allocation2 + $0x30] sm:$0xff]
    %v787 = vadd.f32 %v786, %v764
    %v788 = vld [vmem:[#allocation2 + $0x48] sm:$0xff]
    %v789 = vadd.f32 %v788, %v784
    %v790 = vld [vmem:[%s1 + $0x18] sm:$0xff]
    %vm791 = vcmp.gt.f32.partialorder %v790, 0.5
    %v792 = vld [vmem:[%s1 + $0x20] sm:$0xff]
    %vm793 = vcmp.gt.f32.partialorder %v792, 0.5
    %v794 = vxor.u32 %v787, 2147483648
    %v795 = vmul.f32 %v794, 1.442695
    %v796 = vpow.pop %v795
    %v797 = vadd.f32 %v796, 1.0
    %v798 = vrcp.pop %v797
    %v799 = vmul.f32 %v797, %v798
    %v800 = vsub.f32 1.0, %v799
    %v801 = vmul.f32 %v798, %v800
    %v802 = vadd.f32 %v798, %v801
    %vm803 = vweird.f32 %v797
    %vm804 = vweird.f32 %v798
    %vm805 = vmor %vm803, %vm804
    %v806 = vsel %vm805, %v798, %v802
    %v807 = vand.u32 2147483647, %v797
    %vm808 = vcmp.eq.f32.partialorder %v807, 8.507059e+37
    %v809 = vand.u32 %v797, 2147483648
    %v810 = vor.u32 1.1754944e-38, %v809
    %v811 = vsel %vm808, %v810, %v806
    %v812 = vmul.f32 1.0, %v811
    %v813 = vtanh.pop %v787
    %815 = vrot.lane.b32.xlu0 %v703, 32
    %v816 = vpop.permute.xlu0 %815
    %v818 = vmul.f32 %v812, %v816
    %820 = vrot.lane.b32.xlu0 %v813, 64
    %v821 = vpop.permute.xlu0 %820
    %v823 = vmul.f32 %v812, %v821
    %825 = vrot.lane.b32.xlu0 %v823, 32
    %v826 = vpop.permute.xlu0 %825
    %v828 = vadd.f32 %v818, %v826
    %v829 = vtanh.pop %v828
    %831 = vrot.lane.b32.xlu0 %v829, 64
    %v832 = vpop.permute.xlu0 %831
    %v834 = vmul.f32 %v812, %v832
    %v835 = vxor.u32 %v789, 2147483648
    %v836 = vmul.f32 %v835, 1.442695
    %v837 = vpow.pop %v836
    %v838 = vadd.f32 %v837, 1.0
    %v839 = vrcp.pop %v838
    %v840 = vmul.f32 %v838, %v839
    %v841 = vsub.f32 1.0, %v840
    %v842 = vmul.f32 %v839, %v841
    %v843 = vadd.f32 %v839, %v842
    %vm844 = vweird.f32 %v838
    %vm845 = vweird.f32 %v839
    %vm846 = vmor %vm844, %vm845
    %v847 = vsel %vm846, %v839, %v843
    %v848 = vand.u32 2147483647, %v838
    %vm849 = vcmp.eq.f32.partialorder %v848, 8.507059e+37
    %v850 = vand.u32 %v838, 2147483648
    %v851 = vor.u32 1.1754944e-38, %v850
    %v852 = vsel %vm849, %v851, %v847
    %v853 = vmul.f32 1.0, %v852
    %v854 = vtanh.pop %v789
    %856 = vrot.lane.b32.xlu0 %v713, 32
    %v857 = vpop.permute.xlu0 %856
    %v859 = vmul.f32 %v853, %v857
    %861 = vrot.lane.b32.xlu0 %v854, 64
    %v862 = vpop.permute.xlu0 %861
    %v864 = vmul.f32 %v853, %v862
    %866 = vrot.lane.b32.xlu0 %v864, 32
    %v867 = vpop.permute.xlu0 %866
    %v869 = vadd.f32 %v859, %v867
    %v870 = vtanh.pop %v869
    %872 = vrot.lane.b32.xlu0 %v870, 64
    %v873 = vpop.permute.xlu0 %872
    %v875 = vmul.f32 %v853, %v873
    %877 = vrot.lane.b32.xlu0 %v834, 32
    %v878 = vpop.permute.xlu0 %877
    %v880 = vsel %vm791, %v878, %v698
    %882 = vrot.lane.b32.xlu0 %v828, 96
    %v883 = vpop.permute.xlu0 %882
    %v885 = vsel %vm791, %v883, %v703
    %887 = vrot.lane.b32.xlu0 %v875, 32
    %v888 = vpop.permute.xlu0 %887
    %v890 = vsel %vm793, %v888, %v708
    %892 = vrot.lane.b32.xlu0 %v869, 96
    %v893 = vpop.permute.xlu0 %892
    %v895 = vsel %vm793, %v893, %v713
    %v896 = vsel %vm791, %v878, 0.0
    %897 = vst.msk [vmem:[#allocation3 + $0x18] sm:$0xff] %vm354, %v896
    %v898 = vsel %vm793, %v888, 0.0
    %900 = vrot.lane.b32.xlu0 %v898, 32
    %v901 = vpop.permute.xlu0 %900
    %903 = vst.msk [vmem:[#allocation3 + $0x20] sm:$0xff] %vm360, %v901
    %905 = vrot.lane.b32.xlu0 %v890, 32
    %v906 = vpop.permute.xlu0 %905
    %v908 = vsel %vm354, %v880, %v906
    %v909 = vld [vmem:[%s3] sm:$0xff]
    %v910 = vld [vmem:[%s3 + $0x8] sm:$0xff]
    %v911 = vld [vmem:[%s3 + $0x10] sm:$0xff]
    %v912 = vld [vmem:[%s3 + $0x18] sm:$0xff]
    %v913 = vld [vmem:[%s3 + $0x20] sm:$0xff]
    %v914 = vld [vmem:[%s3 + $0x28] sm:$0xff]
    %v915 = vld [vmem:[%s3 + $0x30] sm:$0xff]
    %v916 = vld [vmem:[%s3 + $0x38] sm:$0xff]
    %v917 = vld [vmem:[%s3 + $0x40] sm:$0xff]
    %v918 = vld [vmem:[%s3 + $0x48] sm:$0xff]
    %v919 = vld [vmem:[%s3 + $0x50] sm:$0xff]
    %v920 = vld [vmem:[%s3 + $0x58] sm:$0xff]
    %v921 = vld [vmem:[%s3 + $0x60] sm:$0xff]
    %v922 = vld [vmem:[%s3 + $0x68] sm:$0xff]
    %v923 = vld [vmem:[%s3 + $0x70] sm:$0xff]
    %v924 = vld [vmem:[%s3 + $0x78] sm:$0xff]
    %v926 = vsel %vm208, %v908, 0
    %928 = vmatpush.msra.mxu0 0.0
    %929 = vmatpush.msra.mxu0 0.0
    %930 = vmatpush.msra.mxu0 0.0
    %931 = vmatpush.msra.mxu0 0.0
    %932 = vmatpush.msra.mxu0 0.0
    %933 = vmatpush.msra.mxu0 0.0
    %934 = vmatpush.msra.mxu0 0.0
    %935 = vmatpush.msra.mxu0 0.0
    %936 = vmatpush.msra.mxu0 %v923
    %937 = vmatpush.msra.mxu0 %v921
    %938 = vmatpush.msra.mxu0 %v919
    %939 = vmatpush.msra.mxu0 %v917
    %940 = vmatpush.msra.mxu0 %v915
    %941 = vmatpush.msra.mxu0 %v913
    %942 = vmatpush.msra.mxu0 %v911
    %943 = vmatpush.msra.mxu0 %v909
    %944 = vmatmul.f32.gmra.mxu0 %v926
    %v945 = vpop.f32.mrf.mxu0
    %v946 = vadd.f32 0.0, %v945
    %947 = vdwg.mxu0
    %948 = vmatpush.msra.mxu0 0.0
    %949 = vmatpush.msra.mxu0 0.0
    %950 = vmatpush.msra.mxu0 0.0
    %951 = vmatpush.msra.mxu0 0.0
    %952 = vmatpush.msra.mxu0 0.0
    %953 = vmatpush.msra.mxu0 0.0
    %954 = vmatpush.msra.mxu0 0.0
    %955 = vmatpush.msra.mxu0 0.0
    %956 = vmatpush.msra.mxu0 %v924
    %957 = vmatpush.msra.mxu0 %v922
    %958 = vmatpush.msra.mxu0 %v920
    %959 = vmatpush.msra.mxu0 %v918
    %960 = vmatpush.msra.mxu0 %v916
    %961 = vmatpush.msra.mxu0 %v914
    %962 = vmatpush.msra.mxu0 %v912
    %963 = vmatpush.msra.mxu0 %v910
    %964 = vmatmul.f32.gmra.mxu0 %v926
    %v965 = vpop.f32.mrf.mxu0
    %v966 = vadd.f32 0.0, %v965
    %967 = vdwg.mxu0
    %v968 = vld [vmem:[#allocation2 + $0x40] sm:$0xff]
    %v969 = vadd.f32 %v968, %v946
    %v970 = vld [vmem:[#allocation2 + $0x38] sm:$0xff]
    %v971 = vadd.f32 %v970, %v966
    %v972 = vld [vmem:[%s1 + $0x20] sm:$0xff]
    %vm973 = vcmp.gt.f32.partialorder %v972, 0.5
    %v974 = vld [vmem:[%s1 + $0x18] sm:$0xff]
    %vm975 = vcmp.gt.f32.partialorder %v974, 0.5
    %v976 = vxor.u32 %v969, 2147483648
    %v977 = vmul.f32 %v976, 1.442695
    %v978 = vpow.pop %v977
    %v979 = vadd.f32 %v978, 1.0
    %v980 = vrcp.pop %v979
    %v981 = vmul.f32 %v979, %v980
    %v982 = vsub.f32 1.0, %v981
    %v983 = vmul.f32 %v980, %v982
    %v984 = vadd.f32 %v980, %v983
    %vm985 = vweird.f32 %v979
    %vm986 = vweird.f32 %v980
    %vm987 = vmor %vm985, %vm986
    %v988 = vsel %vm987, %v980, %v984
    %v989 = vand.u32 2147483647, %v979
    %vm990 = vcmp.eq.f32.partialorder %v989, 8.507059e+37
    %v991 = vand.u32 %v979, 2147483648
    %v992 = vor.u32 1.1754944e-38, %v991
    %v993 = vsel %vm990, %v992, %v988
    %v994 = vmul.f32 1.0, %v993
    %v995 = vtanh.pop %v969
    %997 = vrot.lane.b32.xlu0 %v885, 32
    %v998 = vpop.permute.xlu0 %997
    %v1000 = vmul.f32 %v994, %v998
    %1002 = vrot.lane.b32.xlu0 %v995, 64
    %v1003 = vpop.permute.xlu0 %1002
    %v1005 = vmul.f32 %v994, %v1003
    %1007 = vrot.lane.b32.xlu0 %v1005, 32
    %v1008 = vpop.permute.xlu0 %1007
    %v1010 = vadd.f32 %v1000, %v1008
    %v1011 = vtanh.pop %v1010
    %1013 = vrot.lane.b32.xlu0 %v1011, 64
    %v1014 = vpop.permute.xlu0 %1013
    %v1016 = vmul.f32 %v994, %v1014
    %v1017 = vxor.u32 %v971, 2147483648
    %v1018 = vmul.f32 %v1017, 1.442695
    %v1019 = vpow.pop %v1018
    %v1020 = vadd.f32 %v1019, 1.0
    %v1021 = vrcp.pop %v1020
    %v1022 = vmul.f32 %v1020, %v1021
    %v1023 = vsub.f32 1.0, %v1022
    %v1024 = vmul.f32 %v1021, %v1023
    %v1025 = vadd.f32 %v1021, %v1024
    %vm1026 = vweird.f32 %v1020
    %vm1027 = vweird.f32 %v1021
    %vm1028 = vmor %vm1026, %vm1027
    %v1029 = vsel %vm1028, %v1021, %v1025
    %v1030 = vand.u32 2147483647, %v1020
    %vm1031 = vcmp.eq.f32.partialorder %v1030, 8.507059e+37
    %v1032 = vand.u32 %v1020, 2147483648
    %v1033 = vor.u32 1.1754944e-38, %v1032
    %v1034 = vsel %vm1031, %v1033, %v1029
    %v1035 = vmul.f32 1.0, %v1034
    %v1036 = vtanh.pop %v971
    %1038 = vrot.lane.b32.xlu0 %v895, 32
    %v1039 = vpop.permute.xlu0 %1038
    %v1041 = vmul.f32 %v1035, %v1039
    %1043 = vrot.lane.b32.xlu0 %v1036, 64
    %v1044 = vpop.permute.xlu0 %1043
    %v1046 = vmul.f32 %v1035, %v1044
    %1048 = vrot.lane.b32.xlu0 %v1046, 32
    %v1049 = vpop.permute.xlu0 %1048
    %v1051 = vadd.f32 %v1041, %v1049
    %v1052 = vtanh.pop %v1051
    %1054 = vrot.lane.b32.xlu0 %v1052, 64
    %v1055 = vpop.permute.xlu0 %1054
    %v1057 = vmul.f32 %v1035, %v1055
    %1059 = vrot.lane.b32.xlu0 %v1016, 32
    %v1060 = vpop.permute.xlu0 %1059
    %v1062 = vsel %vm973, %v1060, %v880
    %1064 = vrot.lane.b32.xlu0 %v1010, 96
    %v1065 = vpop.permute.xlu0 %1064
    %v1067 = vsel %vm973, %v1065, %v885
    %1069 = vrot.lane.b32.xlu0 %v1057, 32
    %v1070 = vpop.permute.xlu0 %1069
    %v1072 = vsel %vm975, %v1070, %v890
    %1074 = vrot.lane.b32.xlu0 %v1051, 96
    %v1075 = vpop.permute.xlu0 %1074
    %v1077 = vsel %vm975, %v1075, %v895
    %v1078 = vsel %vm973, %v1060, 0.0
    %1079 = vst.msk [vmem:[#allocation3 + $0x20] sm:$0xff] %vm354, %v1078
    %v1080 = vsel %vm975, %v1070, 0.0
    %1082 = vrot.lane.b32.xlu0 %v1080, 32
    %v1083 = vpop.permute.xlu0 %1082
    %1085 = vst.msk [vmem:[#allocation3 + $0x18] sm:$0xff] %vm360, %v1083
    %1087 = vrot.lane.b32.xlu0 %v1072, 32
    %v1088 = vpop.permute.xlu0 %1087
    %v1090 = vsel %vm354, %v1062, %v1088
    %v1091 = vld [vmem:[%s3] sm:$0xff]
    %v1092 = vld [vmem:[%s3 + $0x8] sm:$0xff]
    %v1093 = vld [vmem:[%s3 + $0x10] sm:$0xff]
    %v1094 = vld [vmem:[%s3 + $0x18] sm:$0xff]
    %v1095 = vld [vmem:[%s3 + $0x20] sm:$0xff]
    %v1096 = vld [vmem:[%s3 + $0x28] sm:$0xff]
    %v1097 = vld [vmem:[%s3 + $0x30] sm:$0xff]
    %v1098 = vld [vmem:[%s3 + $0x38] sm:$0xff]
    %v1099 = vld [vmem:[%s3 + $0x40] sm:$0xff]
    %v1100 = vld [vmem:[%s3 + $0x48] sm:$0xff]
    %v1101 = vld [vmem:[%s3 + $0x50] sm:$0xff]
    %v1102 = vld [vmem:[%s3 + $0x58] sm:$0xff]
    %v1103 = vld [vmem:[%s3 + $0x60] sm:$0xff]
    %v1104 = vld [vmem:[%s3 + $0x68] sm:$0xff]
    %v1105 = vld [vmem:[%s3 + $0x70] sm:$0xff]
    %v1106 = vld [vmem:[%s3 + $0x78] sm:$0xff]
    %v1108 = vsel %vm208, %v1090, 0
    %1110 = vmatpush.msra.mxu0 0.0
    %1111 = vmatpush.msra.mxu0 0.0
    %1112 = vmatpush.msra.mxu0 0.0
    %1113 = vmatpush.msra.mxu0 0.0
    %1114 = vmatpush.msra.mxu0 0.0
    %1115 = vmatpush.msra.mxu0 0.0
    %1116 = vmatpush.msra.mxu0 0.0
    %1117 = vmatpush.msra.mxu0 0.0
    %1118 = vmatpush.msra.mxu0 %v1105
    %1119 = vmatpush.msra.mxu0 %v1103
    %1120 = vmatpush.msra.mxu0 %v1101
    %1121 = vmatpush.msra.mxu0 %v1099
    %1122 = vmatpush.msra.mxu0 %v1097
    %1123 = vmatpush.msra.mxu0 %v1095
    %1124 = vmatpush.msra.mxu0 %v1093
    %1125 = vmatpush.msra.mxu0 %v1091
    %1126 = vmatmul.f32.gmra.mxu0 %v1108
    %v1127 = vpop.f32.mrf.mxu0
    %v1128 = vadd.f32 0.0, %v1127
    %1129 = vdwg.mxu0
    %1130 = vmatpush.msra.mxu0 0.0
    %1131 = vmatpush.msra.mxu0 0.0
    %1132 = vmatpush.msra.mxu0 0.0
    %1133 = vmatpush.msra.mxu0 0.0
    %1134 = vmatpush.msra.mxu0 0.0
    %1135 = vmatpush.msra.mxu0 0.0
    %1136 = vmatpush.msra.mxu0 0.0
    %1137 = vmatpush.msra.mxu0 0.0
    %1138 = vmatpush.msra.mxu0 %v1106
    %1139 = vmatpush.msra.mxu0 %v1104
    %1140 = vmatpush.msra.mxu0 %v1102
    %1141 = vmatpush.msra.mxu0 %v1100
    %1142 = vmatpush.msra.mxu0 %v1098
    %1143 = vmatpush.msra.mxu0 %v1096
    %1144 = vmatpush.msra.mxu0 %v1094
    %1145 = vmatpush.msra.mxu0 %v1092
    %1146 = vmatmul.f32.gmra.mxu0 %v1108
    %v1147 = vpop.f32.mrf.mxu0
    %v1148 = vadd.f32 0.0, %v1147
    %1149 = vdwg.mxu0
    %v1150 = vld [vmem:[#allocation2 + $0x50] sm:$0xff]
    %v1151 = vadd.f32 %v1150, %v1128
    %v1152 = vld [vmem:[#allocation2 + $0x28] sm:$0xff]
    %v1153 = vadd.f32 %v1152, %v1148
    %v1154 = vld [vmem:[%s1 + $0x28] sm:$0xff]
    %vm1155 = vcmp.gt.f32.partialorder %v1154, 0.5
    %v1156 = vld [vmem:[%s1 + $0x10] sm:$0xff]
    %vm1157 = vcmp.gt.f32.partialorder %v1156, 0.5
    %v1158 = vxor.u32 %v1151, 2147483648
    %v1159 = vmul.f32 %v1158, 1.442695
    %v1160 = vpow.pop %v1159
    %v1161 = vadd.f32 %v1160, 1.0
    %v1162 = vrcp.pop %v1161
    %v1163 = vmul.f32 %v1161, %v1162
    %v1164 = vsub.f32 1.0, %v1163
    %v1165 = vmul.f32 %v1162, %v1164
    %v1166 = vadd.f32 %v1162, %v1165
    %vm1167 = vweird.f32 %v1161
    %vm1168 = vweird.f32 %v1162
    %vm1169 = vmor %vm1167, %vm1168
    %v1170 = vsel %vm1169, %v1162, %v1166
    %v1171 = vand.u32 2147483647, %v1161
    %vm1172 = vcmp.eq.f32.partialorder %v1171, 8.507059e+37
    %v1173 = vand.u32 %v1161, 2147483648
    %v1174 = vor.u32 1.1754944e-38, %v1173
    %v1175 = vsel %vm1172, %v1174, %v1170
    %v1176 = vmul.f32 1.0, %v1175
    %v1177 = vtanh.pop %v1151
    %1179 = vrot.lane.b32.xlu0 %v1067, 32
    %v1180 = vpop.permute.xlu0 %1179
    %v1182 = vmul.f32 %v1176, %v1180
    %1184 = vrot.lane.b32.xlu0 %v1177, 64
    %v1185 = vpop.permute.xlu0 %1184
    %v1187 = vmul.f32 %v1176, %v1185
    %1189 = vrot.lane.b32.xlu0 %v1187, 32
    %v1190 = vpop.permute.xlu0 %1189
    %v1192 = vadd.f32 %v1182, %v1190
    %v1193 = vtanh.pop %v1192
    %1195 = vrot.lane.b32.xlu0 %v1193, 64
    %v1196 = vpop.permute.xlu0 %1195
    %v1198 = vmul.f32 %v1176, %v1196
    %v1199 = vxor.u32 %v1153, 2147483648
    %v1200 = vmul.f32 %v1199, 1.442695
    %v1201 = vpow.pop %v1200
    %v1202 = vadd.f32 %v1201, 1.0
    %v1203 = vrcp.pop %v1202
    %v1204 = vmul.f32 %v1202, %v1203
    %v1205 = vsub.f32 1.0, %v1204
    %v1206 = vmul.f32 %v1203, %v1205
    %v1207 = vadd.f32 %v1203, %v1206
    %vm1208 = vweird.f32 %v1202
    %vm1209 = vweird.f32 %v1203
    %vm1210 = vmor %vm1208, %vm1209
    %v1211 = vsel %vm1210, %v1203, %v1207
    %v1212 = vand.u32 2147483647, %v1202
    %vm1213 = vcmp.eq.f32.partialorder %v1212, 8.507059e+37
    %v1214 = vand.u32 %v1202, 2147483648
    %v1215 = vor.u32 1.1754944e-38, %v1214
    %v1216 = vsel %vm1213, %v1215, %v1211
    %v1217 = vmul.f32 1.0, %v1216
    %v1218 = vtanh.pop %v1153
    %1220 = vrot.lane.b32.xlu0 %v1077, 32
    %v1221 = vpop.permute.xlu0 %1220
    %v1223 = vmul.f32 %v1217, %v1221
    %1225 = vrot.lane.b32.xlu0 %v1218, 64
    %v1226 = vpop.permute.xlu0 %1225
    %v1228 = vmul.f32 %v1217, %v1226
    %1230 = vrot.lane.b32.xlu0 %v1228, 32
    %v1231 = vpop.permute.xlu0 %1230
    %v1233 = vadd.f32 %v1223, %v1231
    %v1234 = vtanh.pop %v1233
    %1236 = vrot.lane.b32.xlu0 %v1234, 64
    %v1237 = vpop.permute.xlu0 %1236
    %v1239 = vmul.f32 %v1217, %v1237
    %1241 = vrot.lane.b32.xlu0 %v1198, 32
    %v1242 = vpop.permute.xlu0 %1241
    %v1244 = vsel %vm1155, %v1242, %v1062
    %1246 = vrot.lane.b32.xlu0 %v1192, 96
    %v1247 = vpop.permute.xlu0 %1246
    %v1249 = vsel %vm1155, %v1247, %v1067
    %1251 = vrot.lane.b32.xlu0 %v1239, 32
    %v1252 = vpop.permute.xlu0 %1251
    %v1254 = vsel %vm1157, %v1252, %v1072
    %1256 = vrot.lane.b32.xlu0 %v1233, 96
    %v1257 = vpop.permute.xlu0 %1256
    %v1259 = vsel %vm1157, %v1257, %v1077
    %v1260 = vsel %vm1155, %v1242, 0.0
    %1261 = vst.msk [vmem:[#allocation3 + $0x28] sm:$0xff] %vm354, %v1260
    %v1262 = vsel %vm1157, %v1252, 0.0
    %1264 = vrot.lane.b32.xlu0 %v1262, 32
    %v1265 = vpop.permute.xlu0 %1264
    %1267 = vst.msk [vmem:[#allocation3 + $0x10] sm:$0xff] %vm360, %v1265
    %1269 = vrot.lane.b32.xlu0 %v1254, 32
    %v1270 = vpop.permute.xlu0 %1269
    %v1272 = vsel %vm354, %v1244, %v1270
    %v1273 = vld [vmem:[%s3] sm:$0xff]
    %v1274 = vld [vmem:[%s3 + $0x8] sm:$0xff]
    %v1275 = vld [vmem:[%s3 + $0x10] sm:$0xff]
    %v1276 = vld [vmem:[%s3 + $0x18] sm:$0xff]
    %v1277 = vld [vmem:[%s3 + $0x20] sm:$0xff]
    %v1278 = vld [vmem:[%s3 + $0x28] sm:$0xff]
    %v1279 = vld [vmem:[%s3 + $0x30] sm:$0xff]
    %v1280 = vld [vmem:[%s3 + $0x38] sm:$0xff]
    %v1281 = vld [vmem:[%s3 + $0x40] sm:$0xff]
    %v1282 = vld [vmem:[%s3 + $0x48] sm:$0xff]
    %v1283 = vld [vmem:[%s3 + $0x50] sm:$0xff]
    %v1284 = vld [vmem:[%s3 + $0x58] sm:$0xff]
    %v1285 = vld [vmem:[%s3 + $0x60] sm:$0xff]
    %v1286 = vld [vmem:[%s3 + $0x68] sm:$0xff]
    %v1287 = vld [vmem:[%s3 + $0x70] sm:$0xff]
    %v1288 = vld [vmem:[%s3 + $0x78] sm:$0xff]
    %v1290 = vsel %vm208, %v1272, 0
    %1292 = vmatpush.msra.mxu0 0.0
    %1293 = vmatpush.msra.mxu0 0.0
    %1294 = vmatpush.msra.mxu0 0.0
    %1295 = vmatpush.msra.mxu0 0.0
    %1296 = vmatpush.msra.mxu0 0.0
    %1297 = vmatpush.msra.mxu0 0.0
    %1298 = vmatpush.msra.mxu0 0.0
    %1299 = vmatpush.msra.mxu0 0.0
    %1300 = vmatpush.msra.mxu0 %v1287
    %1301 = vmatpush.msra.mxu0 %v1285
    %1302 = vmatpush.msra.mxu0 %v1283
    %1303 = vmatpush.msra.mxu0 %v1281
    %1304 = vmatpush.msra.mxu0 %v1279
    %1305 = vmatpush.msra.mxu0 %v1277
    %1306 = vmatpush.msra.mxu0 %v1275
    %1307 = vmatpush.msra.mxu0 %v1273
    %1308 = vmatmul.f32.gmra.mxu0 %v1290
    %v1309 = vpop.f32.mrf.mxu0
    %v1310 = vadd.f32 0.0, %v1309
    %1311 = vdwg.mxu0
    %1312 = vmatpush.msra.mxu0 0.0
    %1313 = vmatpush.msra.mxu0 0.0
    %1314 = vmatpush.msra.mxu0 0.0
    %1315 = vmatpush.msra.mxu0 0.0
    %1316 = vmatpush.msra.mxu0 0.0
    %1317 = vmatpush.msra.mxu0 0.0
    %1318 = vmatpush.msra.mxu0 0.0
    %1319 = vmatpush.msra.mxu0 0.0
    %1320 = vmatpush.msra.mxu0 %v1288
    %1321 = vmatpush.msra.mxu0 %v1286
    %1322 = vmatpush.msra.mxu0 %v1284
    %1323 = vmatpush.msra.mxu0 %v1282
    %1324 = vmatpush.msra.mxu0 %v1280
    %1325 = vmatpush.msra.mxu0 %v1278
    %1326 = vmatpush.msra.mxu0 %v1276
    %1327 = vmatpush.msra.mxu0 %v1274
    %1328 = vmatmul.f32.gmra.mxu0 %v1290
    %v1329 = vpop.f32.mrf.mxu0
    %v1330 = vadd.f32 0.0, %v1329
    %1331 = vdwg.mxu0
    %v1332 = vld [vmem:[#allocation2 + $0x60] sm:$0xff]
    %v1333 = vadd.f32 %v1332, %v1310
    %v1334 = vld [vmem:[#allocation2 + $0x18] sm:$0xff]
    %v1335 = vadd.f32 %v1334, %v1330
    %v1336 = vld [vmem:[%s1 + $0x30] sm:$0xff]
    %vm1337 = vcmp.gt.f32.partialorder %v1336, 0.5
    %v1338 = vld [vmem:[%s1 + $0x8] sm:$0xff]
    %vm1339 = vcmp.gt.f32.partialorder %v1338, 0.5
    %v1340 = vxor.u32 %v1333, 2147483648
    %v1341 = vmul.f32 %v1340, 1.442695
    %v1342 = vpow.pop %v1341
    %v1343 = vadd.f32 %v1342, 1.0
    %v1344 = vrcp.pop %v1343
    %v1345 = vmul.f32 %v1343, %v1344
    %v1346 = vsub.f32 1.0, %v1345
    %v1347 = vmul.f32 %v1344, %v1346
    %v1348 = vadd.f32 %v1344, %v1347
    %vm1349 = vweird.f32 %v1343
    %vm1350 = vweird.f32 %v1344
    %vm1351 = vmor %vm1349, %vm1350
    %v1352 = vsel %vm1351, %v1344, %v1348
    %v1353 = vand.u32 2147483647, %v1343
    %vm1354 = vcmp.eq.f32.partialorder %v1353, 8.507059e+37
    %v1355 = vand.u32 %v1343, 2147483648
    %v1356 = vor.u32 1.1754944e-38, %v1355
    %v1357 = vsel %vm1354, %v1356, %v1352
    %v1358 = vmul.f32 1.0, %v1357
    %v1359 = vtanh.pop %v1333
    %1361 = vrot.lane.b32.xlu0 %v1249, 32
    %v1362 = vpop.permute.xlu0 %1361
    %v1364 = vmul.f32 %v1358, %v1362
    %1366 = vrot.lane.b32.xlu0 %v1359, 64
    %v1367 = vpop.permute.xlu0 %1366
    %v1369 = vmul.f32 %v1358, %v1367
    %1371 = vrot.lane.b32.xlu0 %v1369, 32
    %v1372 = vpop.permute.xlu0 %1371
    %v1374 = vadd.f32 %v1364, %v1372
    %v1375 = vtanh.pop %v1374
    %1377 = vrot.lane.b32.xlu0 %v1375, 64
    %v1378 = vpop.permute.xlu0 %1377
    %v1380 = vmul.f32 %v1358, %v1378
    %v1381 = vxor.u32 %v1335, 2147483648
    %v1382 = vmul.f32 %v1381, 1.442695
    %v1383 = vpow.pop %v1382
    %v1384 = vadd.f32 %v1383, 1.0
    %v1385 = vrcp.pop %v1384
    %v1386 = vmul.f32 %v1384, %v1385
    %v1387 = vsub.f32 1.0, %v1386
    %v1388 = vmul.f32 %v1385, %v1387
    %v1389 = vadd.f32 %v1385, %v1388
    %vm1390 = vweird.f32 %v1384
    %vm1391 = vweird.f32 %v1385
    %vm1392 = vmor %vm1390, %vm1391
    %v1393 = vsel %vm1392, %v1385, %v1389
    %v1394 = vand.u32 2147483647, %v1384
    %vm1395 = vcmp.eq.f32.partialorder %v1394, 8.507059e+37
    %v1396 = vand.u32 %v1384, 2147483648
    %v1397 = vor.u32 1.1754944e-38, %v1396
    %v1398 = vsel %vm1395, %v1397, %v1393
    %v1399 = vmul.f32 1.0, %v1398
    %v1400 = vtanh.pop %v1335
    %1402 = vrot.lane.b32.xlu0 %v1259, 32
    %v1403 = vpop.permute.xlu0 %1402
    %v1405 = vmul.f32 %v1399, %v1403
    %1407 = vrot.lane.b32.xlu0 %v1400, 64
    %v1408 = vpop.permute.xlu0 %1407
    %v1410 = vmul.f32 %v1399, %v1408
    %1412 = vrot.lane.b32.xlu0 %v1410, 32
    %v1413 = vpop.permute.xlu0 %1412
    %v1415 = vadd.f32 %v1405, %v1413
    %v1416 = vtanh.pop %v1415
    %1418 = vrot.lane.b32.xlu0 %v1416, 64
    %v1419 = vpop.permute.xlu0 %1418
    %v1421 = vmul.f32 %v1399, %v1419
    %1423 = vrot.lane.b32.xlu0 %v1380, 32
    %v1424 = vpop.permute.xlu0 %1423
    %v1426 = vsel %vm1337, %v1424, %v1244
    %1428 = vrot.lane.b32.xlu0 %v1374, 96
    %v1429 = vpop.permute.xlu0 %1428
    %v1431 = vsel %vm1337, %v1429, %v1249
    %1433 = vrot.lane.b32.xlu0 %v1421, 32
    %v1434 = vpop.permute.xlu0 %1433
    %v1436 = vsel %vm1339, %v1434, %v1254
    %1438 = vrot.lane.b32.xlu0 %v1415, 96
    %v1439 = vpop.permute.xlu0 %1438
    %v1441 = vsel %vm1339, %v1439, %v1259
    %v1442 = vsel %vm1337, %v1424, 0.0
    %1443 = vst.msk [vmem:[#allocation3 + $0x30] sm:$0xff] %vm354, %v1442
    %v1444 = vsel %vm1339, %v1434, 0.0
    %1446 = vrot.lane.b32.xlu0 %v1444, 32
    %v1447 = vpop.permute.xlu0 %1446
    %1449 = vst.msk [vmem:[#allocation3 + $0x8] sm:$0xff] %vm360, %v1447
    %1451 = vrot.lane.b32.xlu0 %v1436, 32
    %v1452 = vpop.permute.xlu0 %1451
    %v1454 = vsel %vm354, %v1426, %v1452
    %v1455 = vld [vmem:[%s3] sm:$0xff]
    %v1456 = vld [vmem:[%s3 + $0x8] sm:$0xff]
    %v1457 = vld [vmem:[%s3 + $0x10] sm:$0xff]
    %v1458 = vld [vmem:[%s3 + $0x18] sm:$0xff]
    %v1459 = vld [vmem:[%s3 + $0x20] sm:$0xff]
    %v1460 = vld [vmem:[%s3 + $0x28] sm:$0xff]
    %v1461 = vld [vmem:[%s3 + $0x30] sm:$0xff]
    %v1462 = vld [vmem:[%s3 + $0x38] sm:$0xff]
    %v1463 = vld [vmem:[%s3 + $0x40] sm:$0xff]
    %v1464 = vld [vmem:[%s3 + $0x48] sm:$0xff]
    %v1465 = vld [vmem:[%s3 + $0x50] sm:$0xff]
    %v1466 = vld [vmem:[%s3 + $0x58] sm:$0xff]
    %v1467 = vld [vmem:[%s3 + $0x60] sm:$0xff]
    %v1468 = vld [vmem:[%s3 + $0x68] sm:$0xff]
    %v1469 = vld [vmem:[%s3 + $0x70] sm:$0xff]
    %v1470 = vld [vmem:[%s3 + $0x78] sm:$0xff]
    %v1472 = vsel %vm208, %v1454, 0
    %1474 = vmatpush.msra.mxu0 0.0
    %1475 = vmatpush.msra.mxu0 0.0
    %1476 = vmatpush.msra.mxu0 0.0
    %1477 = vmatpush.msra.mxu0 0.0
    %1478 = vmatpush.msra.mxu0 0.0
    %1479 = vmatpush.msra.mxu0 0.0
    %1480 = vmatpush.msra.mxu0 0.0
    %1481 = vmatpush.msra.mxu0 0.0
    %1482 = vmatpush.msra.mxu0 %v1469
    %1483 = vmatpush.msra.mxu0 %v1467
    %1484 = vmatpush.msra.mxu0 %v1465
    %1485 = vmatpush.msra.mxu0 %v1463
    %1486 = vmatpush.msra.mxu0 %v1461
    %1487 = vmatpush.msra.mxu0 %v1459
    %1488 = vmatpush.msra.mxu0 %v1457
    %1489 = vmatpush.msra.mxu0 %v1455
    %1490 = vmatmul.f32.gmra.mxu0 %v1472
    %v1491 = vpop.f32.mrf.mxu0
    %v1492 = vadd.f32 0.0, %v1491
    %1493 = vdwg.mxu0
    %1494 = vmatpush.msra.mxu0 0.0
    %1495 = vmatpush.msra.mxu0 0.0
    %1496 = vmatpush.msra.mxu0 0.0
    %1497 = vmatpush.msra.mxu0 0.0
    %1498 = vmatpush.msra.mxu0 0.0
    %1499 = vmatpush.msra.mxu0 0.0
    %1500 = vmatpush.msra.mxu0 0.0
    %1501 = vmatpush.msra.mxu0 0.0
    %1502 = vmatpush.msra.mxu0 %v1470
    %1503 = vmatpush.msra.mxu0 %v1468
    %1504 = vmatpush.msra.mxu0 %v1466
    %1505 = vmatpush.msra.mxu0 %v1464
    %1506 = vmatpush.msra.mxu0 %v1462
    %1507 = vmatpush.msra.mxu0 %v1460
    %1508 = vmatpush.msra.mxu0 %v1458
    %1509 = vmatpush.msra.mxu0 %v1456
    %1510 = vmatmul.f32.gmra.mxu0 %v1472
    %v1511 = vpop.f32.mrf.mxu0
    %v1512 = vadd.f32 0.0, %v1511
    %1513 = vdwg.mxu0
    %v1514 = vld [vmem:[#allocation2 + $0x70] sm:$0xff]
    %v1515 = vadd.f32 %v1514, %v1492
    %v1516 = vld [vmem:[#allocation2 + $0x8] sm:$0xff]
    %v1517 = vadd.f32 %v1516, %v1512
    %v1518 = vld [vmem:[%s1 + $0x38] sm:$0xff]
    %vm1519 = vcmp.gt.f32.partialorder %v1518, 0.5
    %v1520 = vld [vmem:[%s1] sm:$0xff]
    %vm1521 = vcmp.gt.f32.partialorder %v1520, 0.5
    %v1522 = vxor.u32 %v1515, 2147483648
    %v1523 = vmul.f32 %v1522, 1.442695
    %v1524 = vpow.pop %v1523
    %v1525 = vadd.f32 %v1524, 1.0
    %v1526 = vrcp.pop %v1525
    %v1527 = vmul.f32 %v1525, %v1526
    %v1528 = vsub.f32 1.0, %v1527
    %v1529 = vmul.f32 %v1526, %v1528
    %v1530 = vadd.f32 %v1526, %v1529
    %vm1531 = vweird.f32 %v1525
    %vm1532 = vweird.f32 %v1526
    %vm1533 = vmor %vm1531, %vm1532
    %v1534 = vsel %vm1533, %v1526, %v1530
    %v1535 = vand.u32 2147483647, %v1525
    %vm1536 = vcmp.eq.f32.partialorder %v1535, 8.507059e+37
    %v1537 = vand.u32 %v1525, 2147483648
    %v1538 = vor.u32 1.1754944e-38, %v1537
    %v1539 = vsel %vm1536, %v1538, %v1534
    %v1540 = vmul.f32 1.0, %v1539
    %v1541 = vtanh.pop %v1515
    %1543 = vrot.lane.b32.xlu0 %v1431, 32
    %v1544 = vpop.permute.xlu0 %1543
    %v1546 = vmul.f32 %v1540, %v1544
    %1548 = vrot.lane.b32.xlu0 %v1541, 64
    %v1549 = vpop.permute.xlu0 %1548
    %v1551 = vmul.f32 %v1540, %v1549
    %1553 = vrot.lane.b32.xlu0 %v1551, 32
    %v1554 = vpop.permute.xlu0 %1553
    %v1556 = vadd.f32 %v1546, %v1554
    %v1557 = vtanh.pop %v1556
    %1559 = vrot.lane.b32.xlu0 %v1557, 64
    %v1560 = vpop.permute.xlu0 %1559
    %v1562 = vmul.f32 %v1540, %v1560
    %v1563 = vxor.u32 %v1517, 2147483648
    %v1564 = vmul.f32 %v1563, 1.442695
    %v1565 = vpow.pop %v1564
    %v1566 = vadd.f32 %v1565, 1.0
    %v1567 = vrcp.pop %v1566
    %v1568 = vmul.f32 %v1566, %v1567
    %v1569 = vsub.f32 1.0, %v1568
    %v1570 = vmul.f32 %v1567, %v1569
    %v1571 = vadd.f32 %v1567, %v1570
    %vm1572 = vweird.f32 %v1566
    %vm1573 = vweird.f32 %v1567
    %vm1574 = vmor %vm1572, %vm1573
    %v1575 = vsel %vm1574, %v1567, %v1571
    %v1576 = vand.u32 2147483647, %v1566
    %vm1577 = vcmp.eq.f32.partialorder %v1576, 8.507059e+37
    %v1578 = vand.u32 %v1566, 2147483648
    %v1579 = vor.u32 1.1754944e-38, %v1578
    %v1580 = vsel %vm1577, %v1579, %v1575
    %v1581 = vmul.f32 1.0, %v1580
    %v1582 = vtanh.pop %v1517
    %1584 = vrot.lane.b32.xlu0 %v1441, 32
    %v1585 = vpop.permute.xlu0 %1584
    %v1587 = vmul.f32 %v1581, %v1585
    %1589 = vrot.lane.b32.xlu0 %v1582, 64
    %v1590 = vpop.permute.xlu0 %1589
    %v1592 = vmul.f32 %v1581, %v1590
    %1594 = vrot.lane.b32.xlu0 %v1592, 32
    %v1595 = vpop.permute.xlu0 %1594
    %v1597 = vadd.f32 %v1587, %v1595
    %v1598 = vtanh.pop %v1597
    %1600 = vrot.lane.b32.xlu0 %v1598, 64
    %v1601 = vpop.permute.xlu0 %1600
    %v1603 = vmul.f32 %v1581, %v1601
    %1605 = vrot.lane.b32.xlu0 %v1562, 32
    %v1606 = vpop.permute.xlu0 %1605
    %v1608 = vsel %vm1519, %v1606, %v1426
    %1610 = vrot.lane.b32.xlu0 %v1603, 32
    %v1611 = vpop.permute.xlu0 %1610
    %v1613 = vsel %vm1521, %v1611, %v1436
    %v1614 = vsel %vm1519, %v1606, 0.0
    %1615 = vst.msk [vmem:[#allocation3 + $0x38] sm:$0xff] %vm354, %v1614
    %v1616 = vsel %vm1521, %v1611, 0.0
    %1618 = vrot.lane.b32.xlu0 %v1616, 32
    %v1619 = vpop.permute.xlu0 %1618
    %1621 = vst.msk [vmem:[#allocation3] sm:$0xff] %vm360, %v1619
    %v1622 = vld [vmem:[#allocation3] sm:$0xff]
    %v1623 = vld [vmem:[#allocation3 + $0x8] sm:$0xff]
    %v1624 = vld [vmem:[#allocation3 + $0x10] sm:$0xff]
    %v1625 = vld [vmem:[#allocation3 + $0x18] sm:$0xff]
    %v1626 = vld [vmem:[#allocation3 + $0x20] sm:$0xff]
    %v1627 = vld [vmem:[#allocation3 + $0x28] sm:$0xff]
    %v1628 = vld [vmem:[#allocation3 + $0x30] sm:$0xff]
    %v1629 = vld [vmem:[#allocation3 + $0x38] sm:$0xff]
    %v1630 = vsel %vm208, %v1622, 0.0
    %1631 = vadd.xlane.f32.xlu0 %v1630
    %v1632 = vpop.xlane.xlu0 %1631
    %v1633 = vsel %vm208, %v1623, 0.0
    %1634 = vadd.xlane.f32.xlu0 %v1633
    %v1635 = vpop.xlane.xlu0 %1634
    %v1636 = vsel %vm208, %v1624, 0.0
    %1637 = vadd.xlane.f32.xlu0 %v1636
    %v1638 = vpop.xlane.xlu0 %1637
    %v1639 = vsel %vm208, %v1625, 0.0
    %1640 = vadd.xlane.f32.xlu0 %v1639
    %v1641 = vpop.xlane.xlu0 %1640
    %v1642 = vsel %vm208, %v1626, 0.0
    %1643 = vadd.xlane.f32.xlu0 %v1642
    %v1644 = vpop.xlane.xlu0 %1643
    %v1645 = vsel %vm208, %v1627, 0.0
    %1646 = vadd.xlane.f32.xlu0 %v1645
    %v1647 = vpop.xlane.xlu0 %1646
    %v1648 = vsel %vm208, %v1628, 0.0
    %1649 = vadd.xlane.f32.xlu0 %v1648
    %v1650 = vpop.xlane.xlu0 %1649
    %v1651 = vsel %vm208, %v1629, 0.0
    %1652 = vadd.xlane.f32.xlu0 %v1651
    %v1653 = vpop.xlane.xlu0 %1652
    %v1654 = vrcp.pop 64.0
    %v1655 = vmul.f32 64.0, %v1654
    %v1656 = vsub.f32 1.0, %v1655
    %v1657 = vmul.f32 %v1654, %v1656
    %v1658 = vadd.f32 %v1654, %v1657
    %vm1659 = vweird.f32 %v1654
    %v1660 = vsel %vm1659, %v1654, %v1658
    %v1661 = vmul.f32 %v1632, %v1660
    %v1662 = vmul.f32 %v1635, %v1660
    %v1663 = vmul.f32 %v1638, %v1660
    %v1664 = vmul.f32 %v1641, %v1660
    %v1665 = vmul.f32 %v1644, %v1660
    %v1666 = vmul.f32 %v1647, %v1660
    %v1667 = vmul.f32 %v1650, %v1660
    %v1668 = vmul.f32 %v1653, %v1660
    %v1669 = vsub.f32 %v1622, %v1661
    %v1670 = vsub.f32 %v1623, %v1662
    %v1671 = vsub.f32 %v1624, %v1663
    %v1672 = vsub.f32 %v1625, %v1664
    %v1673 = vsub.f32 %v1626, %v1665
    %v1674 = vsub.f32 %v1627, %v1666
    %v1675 = vsub.f32 %v1628, %v1667
    %v1676 = vsub.f32 %v1629, %v1668
    %v1677 = vmul.f32 %v1669, %v1669
    %v1678 = vmul.f32 %v1670, %v1670
    %v1679 = vmul.f32 %v1671, %v1671
    %v1680 = vmul.f32 %v1672, %v1672
    %v1681 = vmul.f32 %v1673, %v1673
    %v1682 = vmul.f32 %v1674, %v1674
    %v1683 = vmul.f32 %v1675, %v1675
    %v1684 = vmul.f32 %v1676, %v1676
    %v1685 = vsel %vm208, %v1677, 0.0
    %1686 = vadd.xlane.f32.xlu0 %v1685
    %v1687 = vpop.xlane.xlu0 %1686
    %v1688 = vsel %vm208, %v1678, 0.0
    %1689 = vadd.xlane.f32.xlu0 %v1688
    %v1690 = vpop.xlane.xlu0 %1689
    %v1691 = vsel %vm208, %v1679, 0.0
    %1692 = vadd.xlane.f32.xlu0 %v1691
    %v1693 = vpop.xlane.xlu0 %1692
    %v1694 = vsel %vm208, %v1680, 0.0
    %1695 = vadd.xlane.f32.xlu0 %v1694
    %v1696 = vpop.xlane.xlu0 %1695
    %v1697 = vsel %vm208, %v1681, 0.0
    %1698 = vadd.xlane.f32.xlu0 %v1697
    %v1699 = vpop.xlane.xlu0 %1698
    %v1700 = vsel %vm208, %v1682, 0.0
    %1701 = vadd.xlane.f32.xlu0 %v1700
    %v1702 = vpop.xlane.xlu0 %1701
    %v1703 = vsel %vm208, %v1683, 0.0
    %1704 = vadd.xlane.f32.xlu0 %v1703
    %v1705 = vpop.xlane.xlu0 %1704
    %v1706 = vsel %vm208, %v1684, 0.0
    %1707 = vadd.xlane.f32.xlu0 %v1706
    %v1708 = vpop.xlane.xlu0 %1707
    %v1709 = vmul.f32 %v1687, %v1660
    %v1710 = vmul.f32 %v1690, %v1660
    %v1711 = vmul.f32 %v1693, %v1660
    %v1712 = vmul.f32 %v1696, %v1660
    %v1713 = vmul.f32 %v1699, %v1660
    %v1714 = vmul.f32 %v1702, %v1660
    %v1715 = vmul.f32 %v1705, %v1660
    %v1716 = vmul.f32 %v1708, %v1660
    %v1717 = vadd.f32 %v1709, 1e-05
    %v1718 = vadd.f32 %v1710, 1e-05
    %v1719 = vadd.f32 %v1711, 1e-05
    %v1720 = vadd.f32 %v1712, 1e-05
    %v1721 = vadd.f32 %v1713, 1e-05
    %v1722 = vadd.f32 %v1714, 1e-05
    %v1723 = vadd.f32 %v1715, 1e-05
    %v1724 = vadd.f32 %v1716, 1e-05
    %v1725 = vrsqrt.pop %v1717
    %v1726 = vmul.f32 %v1725, %v1717
    %v1727 = vmul.f32 %v1726, %v1725
    %v1728 = vmul.f32 0.5, %v1727
    %v1729 = vsub.f32 1.5, %v1728
    %v1730 = vmul.f32 %v1725, %v1729
    %vm1731 = vweird.f32 %v1717
    %vm1732 = vweird.f32 %v1725
    %vm1733 = vmor %vm1731, %vm1732
    %v1734 = vsel %vm1733, %v1725, %v1730
    %v1735 = vrsqrt.pop %v1718
    %v1736 = vmul.f32 %v1735, %v1718
    %v1737 = vmul.f32 %v1736, %v1735
    %v1738 = vmul.f32 0.5, %v1737
    %v1739 = vsub.f32 1.5, %v1738
    %v1740 = vmul.f32 %v1735, %v1739
    %vm1741 = vweird.f32 %v1718
    %vm1742 = vweird.f32 %v1735
    %vm1743 = vmor %vm1741, %vm1742
    %v1744 = vsel %vm1743, %v1735, %v1740
    %v1745 = vrsqrt.pop %v1719
    %v1746 = vmul.f32 %v1745, %v1719
    %v1747 = vmul.f32 %v1746, %v1745
    %v1748 = vmul.f32 0.5, %v1747
    %v1749 = vsub.f32 1.5, %v1748
    %v1750 = vmul.f32 %v1745, %v1749
    %vm1751 = vweird.f32 %v1719
    %vm1752 = vweird.f32 %v1745
    %vm1753 = vmor %vm1751, %vm1752
    %v1754 = vsel %vm1753, %v1745, %v1750
    %v1755 = vrsqrt.pop %v1720
    %v1756 = vmul.f32 %v1755, %v1720
    %v1757 = vmul.f32 %v1756, %v1755
    %v1758 = vmul.f32 0.5, %v1757
    %v1759 = vsub.f32 1.5, %v1758
    %v1760 = vmul.f32 %v1755, %v1759
    %vm1761 = vweird.f32 %v1720
    %vm1762 = vweird.f32 %v1755
    %vm1763 = vmor %vm1761, %vm1762
    %v1764 = vsel %vm1763, %v1755, %v1760
    %v1765 = vrsqrt.pop %v1721
    %v1766 = vmul.f32 %v1765, %v1721
    %v1767 = vmul.f32 %v1766, %v1765
    %v1768 = vmul.f32 0.5, %v1767
    %v1769 = vsub.f32 1.5, %v1768
    %v1770 = vmul.f32 %v1765, %v1769
    %vm1771 = vweird.f32 %v1721
    %vm1772 = vweird.f32 %v1765
    %vm1773 = vmor %vm1771, %vm1772
    %v1774 = vsel %vm1773, %v1765, %v1770
    %v1775 = vrsqrt.pop %v1722
    %v1776 = vmul.f32 %v1775, %v1722
    %v1777 = vmul.f32 %v1776, %v1775
    %v1778 = vmul.f32 0.5, %v1777
    %v1779 = vsub.f32 1.5, %v1778
    %v1780 = vmul.f32 %v1775, %v1779
    %vm1781 = vweird.f32 %v1722
    %vm1782 = vweird.f32 %v1775
    %vm1783 = vmor %vm1781, %vm1782
    %v1784 = vsel %vm1783, %v1775, %v1780
    %v1785 = vrsqrt.pop %v1723
    %v1786 = vmul.f32 %v1785, %v1723
    %v1787 = vmul.f32 %v1786, %v1785
    %v1788 = vmul.f32 0.5, %v1787
    %v1789 = vsub.f32 1.5, %v1788
    %v1790 = vmul.f32 %v1785, %v1789
    %vm1791 = vweird.f32 %v1723
    %vm1792 = vweird.f32 %v1785
    %vm1793 = vmor %vm1791, %vm1792
    %v1794 = vsel %vm1793, %v1785, %v1790
    %v1795 = vrsqrt.pop %v1724
    %v1796 = vmul.f32 %v1795, %v1724
    %v1797 = vmul.f32 %v1796, %v1795
    %v1798 = vmul.f32 0.5, %v1797
    %v1799 = vsub.f32 1.5, %v1798
    %v1800 = vmul.f32 %v1795, %v1799
    %vm1801 = vweird.f32 %v1724
    %vm1802 = vweird.f32 %v1795
    %vm1803 = vmor %vm1801, %vm1802
    %v1804 = vsel %vm1803, %v1795, %v1800
    %v1805 = vmul.f32 %v1669, %v1734
    %v1806 = vmul.f32 %v1670, %v1744
    %v1807 = vmul.f32 %v1671, %v1754
    %v1808 = vmul.f32 %v1672, %v1764
    %v1809 = vmul.f32 %v1673, %v1774
    %v1810 = vmul.f32 %v1674, %v1784
    %v1811 = vmul.f32 %v1675, %v1794
    %v1812 = vmul.f32 %v1676, %v1804
    %v1813 = vld [vmem:[%s5] sm:$0x1]
    %v1815 = vperm.slane %v1813, 0
    %v1817 = vmul.f32 %v1805, %v1815
    %v1818 = vmul.f32 %v1806, %v1815
    %v1819 = vmul.f32 %v1807, %v1815
    %v1820 = vmul.f32 %v1808, %v1815
    %v1821 = vmul.f32 %v1809, %v1815
    %v1822 = vmul.f32 %v1810, %v1815
    %v1823 = vmul.f32 %v1811, %v1815
    %v1824 = vmul.f32 %v1812, %v1815
    %v1825 = vld [vmem:[%s6] sm:$0x1]
    %v1827 = vperm.slane %v1825, 0
    %v1829 = vadd.f32 %v1817, %v1827
    %v1830 = vadd.f32 %v1818, %v1827
    %v1831 = vadd.f32 %v1819, %v1827
    %v1832 = vadd.f32 %v1820, %v1827
    %v1833 = vadd.f32 %v1821, %v1827
    %v1834 = vadd.f32 %v1822, %v1827
    %v1835 = vadd.f32 %v1823, %v1827
    %v1836 = vadd.f32 %v1824, %v1827
    %v1837 = vld [vmem:[%s7] sm:$0xff]
    %v1838 = vld [vmem:[%s7 + $0x8] sm:$0xff]
    %v1839 = vld [vmem:[%s7 + $0x10] sm:$0xff]
    %v1840 = vld [vmem:[%s7 + $0x18] sm:$0xff]
    %v1841 = vld [vmem:[%s7 + $0x20] sm:$0xff]
    %v1842 = vld [vmem:[%s7 + $0x28] sm:$0xff]
    %v1843 = vld [vmem:[%s7 + $0x30] sm:$0xff]
    %v1844 = vld [vmem:[%s7 + $0x38] sm:$0xff]
    %v1845 = vld [vmem:[%s7 + $0x40] sm:$0xff]
    %v1846 = vld [vmem:[%s7 + $0x48] sm:$0xff]
    %v1847 = vld [vmem:[%s7 + $0x50] sm:$0xff]
    %v1848 = vld [vmem:[%s7 + $0x58] sm:$0xff]
    %v1849 = vld [vmem:[%s7 + $0x60] sm:$0xff]
    %v1850 = vld [vmem:[%s7 + $0x68] sm:$0xff]
    %v1851 = vld [vmem:[%s7 + $0x70] sm:$0xff]
    %v1852 = vld [vmem:[%s7 + $0x78] sm:$0xff]
    %v1853 = vld [vmem:[%s9] sm:$0x3]
    %v1855 = vperm.slane %v1853, 0
    %v1856 = vperm.slane %v1853, 1
    %v1860 = vsel %vm208, %v1829, 0
    %v1863 = vsel %vm208, %v1830, 0
    %v1866 = vsel %vm208, %v1831, 0
    %v1869 = vsel %vm208, %v1832, 0
    %v1872 = vsel %vm208, %v1833, 0
    %v1875 = vsel %vm208, %v1834, 0
    %v1878 = vsel %vm208, %v1835, 0
    %v1881 = vsel %vm208, %v1836, 0
    %1883 = vmatpush.msra.mxu0 0.0
    %1884 = vmatpush.msra.mxu0 0.0
    %1885 = vmatpush.msra.mxu0 0.0
    %1886 = vmatpush.msra.mxu0 0.0
    %1887 = vmatpush.msra.mxu0 0.0
    %1888 = vmatpush.msra.mxu0 0.0
    %1889 = vmatpush.msra.mxu0 0.0
    %1890 = vmatpush.msra.mxu0 0.0
    %1891 = vmatpush.msra.mxu0 %v1851
    %1892 = vmatpush.msra.mxu0 %v1849
    %1893 = vmatpush.msra.mxu0 %v1847
    %1894 = vmatpush.msra.mxu0 %v1845
    %1895 = vmatpush.msra.mxu0 %v1843
    %1896 = vmatpush.msra.mxu0 %v1841
    %1897 = vmatpush.msra.mxu0 %v1839
    %1898 = vmatpush.msra.mxu0 %v1837
    %1899 = vmatmul.f32.gmra.mxu0 %v1860
    %v1900 = vpop.f32.mrf.mxu0
    %v1901 = vadd.f32 %v1855, %v1900
    %1902 = vmatmul.f32.gmra.mxu0 %v1863
    %v1903 = vpop.f32.mrf.mxu0
    %v1904 = vadd.f32 %v1855, %v1903
    %1905 = vmatmul.f32.gmra.mxu0 %v1866
    %v1906 = vpop.f32.mrf.mxu0
    %v1907 = vadd.f32 %v1855, %v1906
    %1908 = vmatmul.f32.gmra.mxu0 %v1869
    %v1909 = vpop.f32.mrf.mxu0
    %v1910 = vadd.f32 %v1855, %v1909
    %1911 = vmatmul.f32.gmra.mxu0 %v1872
    %v1912 = vpop.f32.mrf.mxu0
    %v1913 = vadd.f32 %v1855, %v1912
    %1914 = vmatmul.f32.gmra.mxu0 %v1875
    %v1915 = vpop.f32.mrf.mxu0
    %v1916 = vadd.f32 %v1855, %v1915
    %1917 = vmatmul.f32.gmra.mxu0 %v1878
    %v1918 = vpop.f32.mrf.mxu0
    %v1919 = vadd.f32 %v1855, %v1918
    %1920 = vmatmul.f32.gmra.mxu0 %v1881
    %v1921 = vpop.f32.mrf.mxu0
    %v1922 = vadd.f32 %v1855, %v1921
    %1923 = vdwg.mxu0
    %1924 = vmatpush.msra.mxu0 0.0
    %1925 = vmatpush.msra.mxu0 0.0
    %1926 = vmatpush.msra.mxu0 0.0
    %1927 = vmatpush.msra.mxu0 0.0
    %1928 = vmatpush.msra.mxu0 0.0
    %1929 = vmatpush.msra.mxu0 0.0
    %1930 = vmatpush.msra.mxu0 0.0
    %1931 = vmatpush.msra.mxu0 0.0
    %1932 = vmatpush.msra.mxu0 %v1852
    %1933 = vmatpush.msra.mxu0 %v1850
    %1934 = vmatpush.msra.mxu0 %v1848
    %1935 = vmatpush.msra.mxu0 %v1846
    %1936 = vmatpush.msra.mxu0 %v1844
    %1937 = vmatpush.msra.mxu0 %v1842
    %1938 = vmatpush.msra.mxu0 %v1840
    %1939 = vmatpush.msra.mxu0 %v1838
    %1940 = vmatmul.f32.gmra.mxu0 %v1860
    %v1941 = vpop.f32.mrf.mxu0
    %v1942 = vadd.f32 %v1856, %v1941
    %1943 = vmatmul.f32.gmra.mxu0 %v1863
    %v1944 = vpop.f32.mrf.mxu0
    %v1945 = vadd.f32 %v1856, %v1944
    %1946 = vmatmul.f32.gmra.mxu0 %v1866
    %v1947 = vpop.f32.mrf.mxu0
    %v1948 = vadd.f32 %v1856, %v1947
    %1949 = vmatmul.f32.gmra.mxu0 %v1869
    %v1950 = vpop.f32.mrf.mxu0
    %v1951 = vadd.f32 %v1856, %v1950
    %1952 = vmatmul.f32.gmra.mxu0 %v1872
    %v1953 = vpop.f32.mrf.mxu0
    %v1954 = vadd.f32 %v1856, %v1953
    %1955 = vmatmul.f32.gmra.mxu0 %v1875
    %v1956 = vpop.f32.mrf.mxu0
    %v1957 = vadd.f32 %v1856, %v1956
    %1958 = vmatmul.f32.gmra.mxu0 %v1878
    %v1959 = vpop.f32.mrf.mxu0
    %v1960 = vadd.f32 %v1856, %v1959
    %1961 = vmatmul.f32.gmra.mxu0 %v1881
    %v1962 = vpop.f32.mrf.mxu0
    %v1963 = vadd.f32 %v1856, %v1962
    %1964 = vdwg.mxu0
    %1965 = vst [vmem:[#allocation2] sm:$0xff] %v1901
    %1966 = vst [vmem:[#allocation2 + $0x8] sm:$0xff] %v1942
    %1967 = vst [vmem:[#allocation2 + $0x10] sm:$0xff] %v1904
    %1968 = vst [vmem:[#allocation2 + $0x18] sm:$0xff] %v1945
    %1969 = vst [vmem:[#allocation2 + $0x20] sm:$0xff] %v1907
    %1970 = vst [vmem:[#allocation2 + $0x28] sm:$0xff] %v1948
    %1971 = vst [vmem:[#allocation2 + $0x30] sm:$0xff] %v1910
    %1972 = vst [vmem:[#allocation2 + $0x38] sm:$0xff] %v1951
    %1973 = vst [vmem:[#allocation2 + $0x40] sm:$0xff] %v1913
    %1974 = vst [vmem:[#allocation2 + $0x48] sm:$0xff] %v1954
    %1975 = vst [vmem:[#allocation2 + $0x50] sm:$0xff] %v1916
    %1976 = vst [vmem:[#allocation2 + $0x58] sm:$0xff] %v1957
    %1977 = vst [vmem:[#allocation2 + $0x60] sm:$0xff] %v1919
    %1978 = vst [vmem:[#allocation2 + $0x68] sm:$0xff] %v1960
    %1979 = vst [vmem:[#allocation2 + $0x70] sm:$0xff] %v1922
    %1980 = vst [vmem:[#allocation2 + $0x78] sm:$0xff] %v1963
    %v1981 = vld [vmem:[%s8] sm:$0xff]
    %v1982 = vld [vmem:[%s8 + $0x8] sm:$0xff]
    %v1983 = vld [vmem:[%s8 + $0x10] sm:$0xff]
    %v1984 = vld [vmem:[%s8 + $0x18] sm:$0xff]
    %v1985 = vld [vmem:[%s8 + $0x20] sm:$0xff]
    %v1986 = vld [vmem:[%s8 + $0x28] sm:$0xff]
    %v1987 = vld [vmem:[%s8 + $0x30] sm:$0xff]
    %v1988 = vld [vmem:[%s8 + $0x38] sm:$0xff]
    %v1989 = vld [vmem:[%s8 + $0x40] sm:$0xff]
    %v1990 = vld [vmem:[%s8 + $0x48] sm:$0xff]
    %v1991 = vld [vmem:[%s8 + $0x50] sm:$0xff]
    %v1992 = vld [vmem:[%s8 + $0x58] sm:$0xff]
    %v1993 = vld [vmem:[%s8 + $0x60] sm:$0xff]
    %v1994 = vld [vmem:[%s8 + $0x68] sm:$0xff]
    %v1995 = vld [vmem:[%s8 + $0x70] sm:$0xff]
    %v1996 = vld [vmem:[%s8 + $0x78] sm:$0xff]
    %1997 = vmatpush.msra.mxu0 0.0
    %1998 = vmatpush.msra.mxu0 0.0
    %1999 = vmatpush.msra.mxu0 0.0
    %2000 = vmatpush.msra.mxu0 0.0
    %2001 = vmatpush.msra.mxu0 0.0
    %2002 = vmatpush.msra.mxu0 0.0
    %2003 = vmatpush.msra.mxu0 0.0
    %2004 = vmatpush.msra.mxu0 0.0
    %2005 = vmatpush.msra.mxu0 %v1995
    %2006 = vmatpush.msra.mxu0 %v1993
    %2007 = vmatpush.msra.mxu0 %v1991
    %2008 = vmatpush.msra.mxu0 %v1989
    %2009 = vmatpush.msra.mxu0 %v1987
    %2010 = vmatpush.msra.mxu0 %v1985
    %2011 = vmatpush.msra.mxu0 %v1983
    %2012 = vmatpush.msra.mxu0 %v1981
    %2013 = vmatmul.f32.gmra.mxu0 %v210
    %v2014 = vpop.f32.mrf.mxu0
    %v2015 = vadd.f32 0.0, %v2014
    %2016 = vdwg.mxu0
    %2017 = vmatpush.msra.mxu0 0.0
    %2018 = vmatpush.msra.mxu0 0.0
    %2019 = vmatpush.msra.mxu0 0.0
    %2020 = vmatpush.msra.mxu0 0.0
    %2021 = vmatpush.msra.mxu0 0.0
    %2022 = vmatpush.msra.mxu0 0.0
    %2023 = vmatpush.msra.mxu0 0.0
    %2024 = vmatpush.msra.mxu0 0.0
    %2025 = vmatpush.msra.mxu0 %v1996
    %2026 = vmatpush.msra.mxu0 %v1994
    %2027 = vmatpush.msra.mxu0 %v1992
    %2028 = vmatpush.msra.mxu0 %v1990
    %2029 = vmatpush.msra.mxu0 %v1988
    %2030 = vmatpush.msra.mxu0 %v1986
    %2031 = vmatpush.msra.mxu0 %v1984
    %2032 = vmatpush.msra.mxu0 %v1982
    %2033 = vmatmul.f32.gmra.mxu0 %v210
    %v2034 = vpop.f32.mrf.mxu0
    %v2035 = vadd.f32 0.0, %v2034
    %2036 = vdwg.mxu0
    %v2037 = vld [vmem:[#allocation2] sm:$0xff]
    %v2038 = vadd.f32 %v2037, %v2015
    %v2039 = vld [vmem:[#allocation2 + $0x78] sm:$0xff]
    %v2040 = vadd.f32 %v2039, %v2035
    %v2041 = vld [vmem:[%s1] sm:$0xff]
    %vm2042 = vcmp.gt.f32.partialorder %v2041, 0.5
    %v2043 = vld [vmem:[%s1 + $0x38] sm:$0xff]
    %vm2044 = vcmp.gt.f32.partialorder %v2043, 0.5
    %v2045 = vxor.u32 %v2038, 2147483648
    %v2046 = vmul.f32 %v2045, 1.442695
    %v2047 = vpow.pop %v2046
    %v2048 = vadd.f32 %v2047, 1.0
    %v2049 = vrcp.pop %v2048
    %v2050 = vmul.f32 %v2048, %v2049
    %v2051 = vsub.f32 1.0, %v2050
    %v2052 = vmul.f32 %v2049, %v2051
    %v2053 = vadd.f32 %v2049, %v2052
    %vm2054 = vweird.f32 %v2048
    %vm2055 = vweird.f32 %v2049
    %vm2056 = vmor %vm2054, %vm2055
    %v2057 = vsel %vm2056, %v2049, %v2053
    %v2058 = vand.u32 2147483647, %v2048
    %vm2059 = vcmp.eq.f32.partialorder %v2058, 8.507059e+37
    %v2060 = vand.u32 %v2048, 2147483648
    %v2061 = vor.u32 1.1754944e-38, %v2060
    %v2062 = vsel %vm2059, %v2061, %v2057
    %v2063 = vmul.f32 1.0, %v2062
    %v2064 = vtanh.pop %v2038
    %v2065 = vmul.f32 %v2063, 0.0
    %2067 = vrot.lane.b32.xlu0 %v2064, 64
    %v2068 = vpop.permute.xlu0 %2067
    %v2070 = vmul.f32 %v2063, %v2068
    %2072 = vrot.lane.b32.xlu0 %v2070, 32
    %v2073 = vpop.permute.xlu0 %2072
    %v2075 = vadd.f32 %v2065, %v2073
    %v2076 = vtanh.pop %v2075
    %2078 = vrot.lane.b32.xlu0 %v2076, 64
    %v2079 = vpop.permute.xlu0 %2078
    %v2081 = vmul.f32 %v2063, %v2079
    %v2082 = vxor.u32 %v2040, 2147483648
    %v2083 = vmul.f32 %v2082, 1.442695
    %v2084 = vpow.pop %v2083
    %v2085 = vadd.f32 %v2084, 1.0
    %v2086 = vrcp.pop %v2085
    %v2087 = vmul.f32 %v2085, %v2086
    %v2088 = vsub.f32 1.0, %v2087
    %v2089 = vmul.f32 %v2086, %v2088
    %v2090 = vadd.f32 %v2086, %v2089
    %vm2091 = vweird.f32 %v2085
    %vm2092 = vweird.f32 %v2086
    %vm2093 = vmor %vm2091, %vm2092
    %v2094 = vsel %vm2093, %v2086, %v2090
    %v2095 = vand.u32 2147483647, %v2085
    %vm2096 = vcmp.eq.f32.partialorder %v2095, 8.507059e+37
    %v2097 = vand.u32 %v2085, 2147483648
    %v2098 = vor.u32 1.1754944e-38, %v2097
    %v2099 = vsel %vm2096, %v2098, %v2094
    %v2100 = vmul.f32 1.0, %v2099
    %v2101 = vtanh.pop %v2040
    %v2102 = vmul.f32 %v2100, 0.0
    %2104 = vrot.lane.b32.xlu0 %v2101, 64
    %v2105 = vpop.permute.xlu0 %2104
    %v2107 = vmul.f32 %v2100, %v2105
    %2109 = vrot.lane.b32.xlu0 %v2107, 32
    %v2110 = vpop.permute.xlu0 %2109
    %v2112 = vadd.f32 %v2102, %v2110
    %v2113 = vtanh.pop %v2112
    %2115 = vrot.lane.b32.xlu0 %v2113, 64
    %v2116 = vpop.permute.xlu0 %2115
    %v2118 = vmul.f32 %v2100, %v2116
    %2120 = vrot.lane.b32.xlu0 %v2081, 32
    %v2121 = vpop.permute.xlu0 %2120
    %v2123 = vsel %vm2042, %v2121, 0.0
    %2125 = vrot.lane.b32.xlu0 %v2075, 96
    %v2126 = vpop.permute.xlu0 %2125
    %v2128 = vsel %vm2042, %v2126, 0.0
    %2130 = vrot.lane.b32.xlu0 %v2118, 32
    %v2131 = vpop.permute.xlu0 %2130
    %v2133 = vsel %vm2044, %v2131, 0.0
    %2135 = vrot.lane.b32.xlu0 %v2112, 96
    %v2136 = vpop.permute.xlu0 %2135
    %v2138 = vsel %vm2044, %v2136, 0.0
    %2140 = vrot.lane.b32.xlu0 %v2133, 32
    %v2141 = vpop.permute.xlu0 %2140
    %v2143 = vsel %vm354, %v2123, %v2141
    %v2145 = vsel %vm208, %v2143, 0
    %2147 = vmatpush.msra.mxu0 0.0
    %2148 = vmatpush.msra.mxu0 0.0
    %2149 = vmatpush.msra.mxu0 0.0
    %2150 = vmatpush.msra.mxu0 0.0
    %2151 = vmatpush.msra.mxu0 0.0
    %2152 = vmatpush.msra.mxu0 0.0
    %2153 = vmatpush.msra.mxu0 0.0
    %2154 = vmatpush.msra.mxu0 0.0
    %2155 = vmatpush.msra.mxu0 %v1995
    %2156 = vmatpush.msra.mxu0 %v1993
    %2157 = vmatpush.msra.mxu0 %v1991
    %2158 = vmatpush.msra.mxu0 %v1989
    %2159 = vmatpush.msra.mxu0 %v1987
    %2160 = vmatpush.msra.mxu0 %v1985
    %2161 = vmatpush.msra.mxu0 %v1983
    %2162 = vmatpush.msra.mxu0 %v1981
    %2163 = vmatmul.f32.gmra.mxu0 %v2145
    %v2164 = vpop.f32.mrf.mxu0
    %v2165 = vadd.f32 0.0, %v2164
    %2166 = vdwg.mxu0
    %2167 = vmatpush.msra.mxu0 0.0
    %2168 = vmatpush.msra.mxu0 0.0
    %2169 = vmatpush.msra.mxu0 0.0
    %2170 = vmatpush.msra.mxu0 0.0
    %2171 = vmatpush.msra.mxu0 0.0
    %2172 = vmatpush.msra.mxu0 0.0
    %2173 = vmatpush.msra.mxu0 0.0
    %2174 = vmatpush.msra.mxu0 0.0
    %2175 = vmatpush.msra.mxu0 %v1996
    %2176 = vmatpush.msra.mxu0 %v1994
    %2177 = vmatpush.msra.mxu0 %v1992
    %2178 = vmatpush.msra.mxu0 %v1990
    %2179 = vmatpush.msra.mxu0 %v1988
    %2180 = vmatpush.msra.mxu0 %v1986
    %2181 = vmatpush.msra.mxu0 %v1984
    %2182 = vmatpush.msra.mxu0 %v1982
    %2183 = vmatmul.f32.gmra.mxu0 %v2145
    %v2184 = vpop.f32.mrf.mxu0
    %v2185 = vadd.f32 0.0, %v2184
    %2186 = vdwg.mxu0
    %v2187 = vld [vmem:[#allocation2 + $0x10] sm:$0xff]
    %v2188 = vadd.f32 %v2187, %v2165
    %v2189 = vld [vmem:[#allocation2 + $0x68] sm:$0xff]
    %v2190 = vadd.f32 %v2189, %v2185
    %v2191 = vld [vmem:[%s1 + $0x8] sm:$0xff]
    %vm2192 = vcmp.gt.f32.partialorder %v2191, 0.5
    %v2193 = vld [vmem:[%s1 + $0x30] sm:$0xff]
    %vm2194 = vcmp.gt.f32.partialorder %v2193, 0.5
    %v2195 = vxor.u32 %v2188, 2147483648
    %v2196 = vmul.f32 %v2195, 1.442695
    %v2197 = vpow.pop %v2196
    %v2198 = vadd.f32 %v2197, 1.0
    %v2199 = vrcp.pop %v2198
    %v2200 = vmul.f32 %v2198, %v2199
    %v2201 = vsub.f32 1.0, %v2200
    %v2202 = vmul.f32 %v2199, %v2201
    %v2203 = vadd.f32 %v2199, %v2202
    %vm2204 = vweird.f32 %v2198
    %vm2205 = vweird.f32 %v2199
    %vm2206 = vmor %vm2204, %vm2205
    %v2207 = vsel %vm2206, %v2199, %v2203
    %v2208 = vand.u32 2147483647, %v2198
    %vm2209 = vcmp.eq.f32.partialorder %v2208, 8.507059e+37
    %v2210 = vand.u32 %v2198, 2147483648
    %v2211 = vor.u32 1.1754944e-38, %v2210
    %v2212 = vsel %vm2209, %v2211, %v2207
    %v2213 = vmul.f32 1.0, %v2212
    %v2214 = vtanh.pop %v2188
    %2216 = vrot.lane.b32.xlu0 %v2128, 32
    %v2217 = vpop.permute.xlu0 %2216
    %v2219 = vmul.f32 %v2213, %v2217
    %2221 = vrot.lane.b32.xlu0 %v2214, 64
    %v2222 = vpop.permute.xlu0 %2221
    %v2224 = vmul.f32 %v2213, %v2222
    %2226 = vrot.lane.b32.xlu0 %v2224, 32
    %v2227 = vpop.permute.xlu0 %2226
    %v2229 = vadd.f32 %v2219, %v2227
    %v2230 = vtanh.pop %v2229
    %2232 = vrot.lane.b32.xlu0 %v2230, 64
    %v2233 = vpop.permute.xlu0 %2232
    %v2235 = vmul.f32 %v2213, %v2233
    %v2236 = vxor.u32 %v2190, 2147483648
    %v2237 = vmul.f32 %v2236, 1.442695
    %v2238 = vpow.pop %v2237
    %v2239 = vadd.f32 %v2238, 1.0
    %v2240 = vrcp.pop %v2239
    %v2241 = vmul.f32 %v2239, %v2240
    %v2242 = vsub.f32 1.0, %v2241
    %v2243 = vmul.f32 %v2240, %v2242
    %v2244 = vadd.f32 %v2240, %v2243
    %vm2245 = vweird.f32 %v2239
    %vm2246 = vweird.f32 %v2240
    %vm2247 = vmor %vm2245, %vm2246
    %v2248 = vsel %vm2247, %v2240, %v2244
    %v2249 = vand.u32 2147483647, %v2239
    %vm2250 = vcmp.eq.f32.partialorder %v2249, 8.507059e+37
    %v2251 = vand.u32 %v2239, 2147483648
    %v2252 = vor.u32 1.1754944e-38, %v2251
    %v2253 = vsel %vm2250, %v2252, %v2248
    %v2254 = vmul.f32 1.0, %v2253
    %v2255 = vtanh.pop %v2190
    %2257 = vrot.lane.b32.xlu0 %v2138, 32
    %v2258 = vpop.permute.xlu0 %2257
    %v2260 = vmul.f32 %v2254, %v2258
    %2262 = vrot.lane.b32.xlu0 %v2255, 64
    %v2263 = vpop.permute.xlu0 %2262
    %v2265 = vmul.f32 %v2254, %v2263
    %2267 = vrot.lane.b32.xlu0 %v2265, 32
    %v2268 = vpop.permute.xlu0 %2267
    %v2270 = vadd.f32 %v2260, %v2268
    %v2271 = vtanh.pop %v2270
    %2273 = vrot.lane.b32.xlu0 %v2271, 64
    %v2274 = vpop.permute.xlu0 %2273
    %v2276 = vmul.f32 %v2254, %v2274
    %2278 = vrot.lane.b32.xlu0 %v2235, 32
    %v2279 = vpop.permute.xlu0 %2278
    %v2281 = vsel %vm2192, %v2279, %v2123
    %2283 = vrot.lane.b32.xlu0 %v2229, 96
    %v2284 = vpop.permute.xlu0 %2283
    %v2286 = vsel %vm2192, %v2284, %v2128
    %2288 = vrot.lane.b32.xlu0 %v2276, 32
    %v2289 = vpop.permute.xlu0 %2288
    %v2291 = vsel %vm2194, %v2289, %v2133
    %2293 = vrot.lane.b32.xlu0 %v2270, 96
    %v2294 = vpop.permute.xlu0 %2293
    %v2296 = vsel %vm2194, %v2294, %v2138
    %2298 = vrot.lane.b32.xlu0 %v2291, 32
    %v2299 = vpop.permute.xlu0 %2298
    %v2301 = vsel %vm354, %v2281, %v2299
    %v2303 = vsel %vm208, %v2301, 0
    %2305 = vmatpush.msra.mxu0 0.0
    %2306 = vmatpush.msra.mxu0 0.0
    %2307 = vmatpush.msra.mxu0 0.0
    %2308 = vmatpush.msra.mxu0 0.0
    %2309 = vmatpush.msra.mxu0 0.0
    %2310 = vmatpush.msra.mxu0 0.0
    %2311 = vmatpush.msra.mxu0 0.0
    %2312 = vmatpush.msra.mxu0 0.0
    %2313 = vmatpush.msra.mxu0 %v1995
    %2314 = vmatpush.msra.mxu0 %v1993
    %2315 = vmatpush.msra.mxu0 %v1991
    %2316 = vmatpush.msra.mxu0 %v1989
    %2317 = vmatpush.msra.mxu0 %v1987
    %2318 = vmatpush.msra.mxu0 %v1985
    %2319 = vmatpush.msra.mxu0 %v1983
    %2320 = vmatpush.msra.mxu0 %v1981
    %2321 = vmatmul.f32.gmra.mxu0 %v2303
    %v2322 = vpop.f32.mrf.mxu0
    %v2323 = vadd.f32 0.0, %v2322
    %2324 = vdwg.mxu0
    %2325 = vmatpush.msra.mxu0 0.0
    %2326 = vmatpush.msra.mxu0 0.0
    %2327 = vmatpush.msra.mxu0 0.0
    %2328 = vmatpush.msra.mxu0 0.0
    %2329 = vmatpush.msra.mxu0 0.0
    %2330 = vmatpush.msra.mxu0 0.0
    %2331 = vmatpush.msra.mxu0 0.0
    %2332 = vmatpush.msra.mxu0 0.0
    %2333 = vmatpush.msra.mxu0 %v1996
    %2334 = vmatpush.msra.mxu0 %v1994
    %2335 = vmatpush.msra.mxu0 %v1992
    %2336 = vmatpush.msra.mxu0 %v1990
    %2337 = vmatpush.msra.mxu0 %v1988
    %2338 = vmatpush.msra.mxu0 %v1986
    %2339 = vmatpush.msra.mxu0 %v1984
    %2340 = vmatpush.msra.mxu0 %v1982
    %2341 = vmatmul.f32.gmra.mxu0 %v2303
    %v2342 = vpop.f32.mrf.mxu0
    %v2343 = vadd.f32 0.0, %v2342
    %2344 = vdwg.mxu0
    %v2345 = vld [vmem:[#allocation2 + $0x20] sm:$0xff]
    %v2346 = vadd.f32 %v2345, %v2323
    %v2347 = vld [vmem:[#allocation2 + $0x58] sm:$0xff]
    %v2348 = vadd.f32 %v2347, %v2343
    %v2349 = vld [vmem:[%s1 + $0x10] sm:$0xff]
    %vm2350 = vcmp.gt.f32.partialorder %v2349, 0.5
    %v2351 = vld [vmem:[%s1 + $0x28] sm:$0xff]
    %vm2352 = vcmp.gt.f32.partialorder %v2351, 0.5
    %v2353 = vxor.u32 %v2346, 2147483648
    %v2354 = vmul.f32 %v2353, 1.442695
    %v2355 = vpow.pop %v2354
    %v2356 = vadd.f32 %v2355, 1.0
    %v2357 = vrcp.pop %v2356
    %v2358 = vmul.f32 %v2356, %v2357
    %v2359 = vsub.f32 1.0, %v2358
    %v2360 = vmul.f32 %v2357, %v2359
    %v2361 = vadd.f32 %v2357, %v2360
    %vm2362 = vweird.f32 %v2356
    %vm2363 = vweird.f32 %v2357
    %vm2364 = vmor %vm2362, %vm2363
    %v2365 = vsel %vm2364, %v2357, %v2361
    %v2366 = vand.u32 2147483647, %v2356
    %vm2367 = vcmp.eq.f32.partialorder %v2366, 8.507059e+37
    %v2368 = vand.u32 %v2356, 2147483648
    %v2369 = vor.u32 1.1754944e-38, %v2368
    %v2370 = vsel %vm2367, %v2369, %v2365
    %v2371 = vmul.f32 1.0, %v2370
    %v2372 = vtanh.pop %v2346
    %2374 = vrot.lane.b32.xlu0 %v2286, 32
    %v2375 = vpop.permute.xlu0 %2374
    %v2377 = vmul.f32 %v2371, %v2375
    %2379 = vrot.lane.b32.xlu0 %v2372, 64
    %v2380 = vpop.permute.xlu0 %2379
    %v2382 = vmul.f32 %v2371, %v2380
    %2384 = vrot.lane.b32.xlu0 %v2382, 32
    %v2385 = vpop.permute.xlu0 %2384
    %v2387 = vadd.f32 %v2377, %v2385
    %v2388 = vtanh.pop %v2387
    %2390 = vrot.lane.b32.xlu0 %v2388, 64
    %v2391 = vpop.permute.xlu0 %2390
    %v2393 = vmul.f32 %v2371, %v2391
    %v2394 = vxor.u32 %v2348, 2147483648
    %v2395 = vmul.f32 %v2394, 1.442695
    %v2396 = vpow.pop %v2395
    %v2397 = vadd.f32 %v2396, 1.0
    %v2398 = vrcp.pop %v2397
    %v2399 = vmul.f32 %v2397, %v2398
    %v2400 = vsub.f32 1.0, %v2399
    %v2401 = vmul.f32 %v2398, %v2400
    %v2402 = vadd.f32 %v2398, %v2401
    %vm2403 = vweird.f32 %v2397
    %vm2404 = vweird.f32 %v2398
    %vm2405 = vmor %vm2403, %vm2404
    %v2406 = vsel %vm2405, %v2398, %v2402
    %v2407 = vand.u32 2147483647, %v2397
    %vm2408 = vcmp.eq.f32.partialorder %v2407, 8.507059e+37
    %v2409 = vand.u32 %v2397, 2147483648
    %v2410 = vor.u32 1.1754944e-38, %v2409
    %v2411 = vsel %vm2408, %v2410, %v2406
    %v2412 = vmul.f32 1.0, %v2411
    %v2413 = vtanh.pop %v2348
    %2415 = vrot.lane.b32.xlu0 %v2296, 32
    %v2416 = vpop.permute.xlu0 %2415
    %v2418 = vmul.f32 %v2412, %v2416
    %2420 = vrot.lane.b32.xlu0 %v2413, 64
    %v2421 = vpop.permute.xlu0 %2420
    %v2423 = vmul.f32 %v2412, %v2421
    %2425 = vrot.lane.b32.xlu0 %v2423, 32
    %v2426 = vpop.permute.xlu0 %2425
    %v2428 = vadd.f32 %v2418, %v2426
    %v2429 = vtanh.pop %v2428
    %2431 = vrot.lane.b32.xlu0 %v2429, 64
    %v2432 = vpop.permute.xlu0 %2431
    %v2434 = vmul.f32 %v2412, %v2432
    %2436 = vrot.lane.b32.xlu0 %v2393, 32
    %v2437 = vpop.permute.xlu0 %2436
    %v2439 = vsel %vm2350, %v2437, %v2281
    %2441 = vrot.lane.b32.xlu0 %v2387, 96
    %v2442 = vpop.permute.xlu0 %2441
    %v2444 = vsel %vm2350, %v2442, %v2286
    %2446 = vrot.lane.b32.xlu0 %v2434, 32
    %v2447 = vpop.permute.xlu0 %2446
    %v2449 = vsel %vm2352, %v2447, %v2291
    %2451 = vrot.lane.b32.xlu0 %v2428, 96
    %v2452 = vpop.permute.xlu0 %2451
    %v2454 = vsel %vm2352, %v2452, %v2296
    %2456 = vrot.lane.b32.xlu0 %v2449, 32
    %v2457 = vpop.permute.xlu0 %2456
    %v2459 = vsel %vm354, %v2439, %v2457
    %v2461 = vsel %vm208, %v2459, 0
    %2463 = vmatpush.msra.mxu0 0.0
    %2464 = vmatpush.msra.mxu0 0.0
    %2465 = vmatpush.msra.mxu0 0.0
    %2466 = vmatpush.msra.mxu0 0.0
    %2467 = vmatpush.msra.mxu0 0.0
    %2468 = vmatpush.msra.mxu0 0.0
    %2469 = vmatpush.msra.mxu0 0.0
    %2470 = vmatpush.msra.mxu0 0.0
    %2471 = vmatpush.msra.mxu0 %v1995
    %2472 = vmatpush.msra.mxu0 %v1993
    %2473 = vmatpush.msra.mxu0 %v1991
    %2474 = vmatpush.msra.mxu0 %v1989
    %2475 = vmatpush.msra.mxu0 %v1987
    %2476 = vmatpush.msra.mxu0 %v1985
    %2477 = vmatpush.msra.mxu0 %v1983
    %2478 = vmatpush.msra.mxu0 %v1981
    %2479 = vmatmul.f32.gmra.mxu0 %v2461
    %v2480 = vpop.f32.mrf.mxu0
    %v2481 = vadd.f32 0.0, %v2480
    %2482 = vdwg.mxu0
    %2483 = vmatpush.msra.mxu0 0.0
    %2484 = vmatpush.msra.mxu0 0.0
    %2485 = vmatpush.msra.mxu0 0.0
    %2486 = vmatpush.msra.mxu0 0.0
    %2487 = vmatpush.msra.mxu0 0.0
    %2488 = vmatpush.msra.mxu0 0.0
    %2489 = vmatpush.msra.mxu0 0.0
    %2490 = vmatpush.msra.mxu0 0.0
    %2491 = vmatpush.msra.mxu0 %v1996
    %2492 = vmatpush.msra.mxu0 %v1994
    %2493 = vmatpush.msra.mxu0 %v1992
    %2494 = vmatpush.msra.mxu0 %v1990
    %2495 = vmatpush.msra.mxu0 %v1988
    %2496 = vmatpush.msra.mxu0 %v1986
    %2497 = vmatpush.msra.mxu0 %v1984
    %2498 = vmatpush.msra.mxu0 %v1982
    %2499 = vmatmul.f32.gmra.mxu0 %v2461
    %v2500 = vpop.f32.mrf.mxu0
    %v2501 = vadd.f32 0.0, %v2500
    %2502 = vdwg.mxu0
    %v2503 = vld [vmem:[#allocation2 + $0x30] sm:$0xff]
    %v2504 = vadd.f32 %v2503, %v2481
    %v2505 = vld [vmem:[#allocation2 + $0x48] sm:$0xff]
    %v2506 = vadd.f32 %v2505, %v2501
    %v2507 = vld [vmem:[%s1 + $0x18] sm:$0xff]
    %vm2508 = vcmp.gt.f32.partialorder %v2507, 0.5
    %v2509 = vld [vmem:[%s1 + $0x20] sm:$0xff]
    %vm2510 = vcmp.gt.f32.partialorder %v2509, 0.5
    %v2511 = vxor.u32 %v2504, 2147483648
    %v2512 = vmul.f32 %v2511, 1.442695
    %v2513 = vpow.pop %v2512
    %v2514 = vadd.f32 %v2513, 1.0
    %v2515 = vrcp.pop %v2514
    %v2516 = vmul.f32 %v2514, %v2515
    %v2517 = vsub.f32 1.0, %v2516
    %v2518 = vmul.f32 %v2515, %v2517
    %v2519 = vadd.f32 %v2515, %v2518
    %vm2520 = vweird.f32 %v2514
    %vm2521 = vweird.f32 %v2515
    %vm2522 = vmor %vm2520, %vm2521
    %v2523 = vsel %vm2522, %v2515, %v2519
    %v2524 = vand.u32 2147483647, %v2514
    %vm2525 = vcmp.eq.f32.partialorder %v2524, 8.507059e+37
    %v2526 = vand.u32 %v2514, 2147483648
    %v2527 = vor.u32 1.1754944e-38, %v2526
    %v2528 = vsel %vm2525, %v2527, %v2523
    %v2529 = vmul.f32 1.0, %v2528
    %v2530 = vtanh.pop %v2504
    %2532 = vrot.lane.b32.xlu0 %v2444, 32
    %v2533 = vpop.permute.xlu0 %2532
    %v2535 = vmul.f32 %v2529, %v2533
    %2537 = vrot.lane.b32.xlu0 %v2530, 64
    %v2538 = vpop.permute.xlu0 %2537
    %v2540 = vmul.f32 %v2529, %v2538
    %2542 = vrot.lane.b32.xlu0 %v2540, 32
    %v2543 = vpop.permute.xlu0 %2542
    %v2545 = vadd.f32 %v2535, %v2543
    %v2546 = vtanh.pop %v2545
    %2548 = vrot.lane.b32.xlu0 %v2546, 64
    %v2549 = vpop.permute.xlu0 %2548
    %v2551 = vmul.f32 %v2529, %v2549
    %v2552 = vxor.u32 %v2506, 2147483648
    %v2553 = vmul.f32 %v2552, 1.442695
    %v2554 = vpow.pop %v2553
    %v2555 = vadd.f32 %v2554, 1.0
    %v2556 = vrcp.pop %v2555
    %v2557 = vmul.f32 %v2555, %v2556
    %v2558 = vsub.f32 1.0, %v2557
    %v2559 = vmul.f32 %v2556, %v2558
    %v2560 = vadd.f32 %v2556, %v2559
    %vm2561 = vweird.f32 %v2555
    %vm2562 = vweird.f32 %v2556
    %vm2563 = vmor %vm2561, %vm2562
    %v2564 = vsel %vm2563, %v2556, %v2560
    %v2565 = vand.u32 2147483647, %v2555
    %vm2566 = vcmp.eq.f32.partialorder %v2565, 8.507059e+37
    %v2567 = vand.u32 %v2555, 2147483648
    %v2568 = vor.u32 1.1754944e-38, %v2567
    %v2569 = vsel %vm2566, %v2568, %v2564
    %v2570 = vmul.f32 1.0, %v2569
    %v2571 = vtanh.pop %v2506
    %2573 = vrot.lane.b32.xlu0 %v2454, 32
    %v2574 = vpop.permute.xlu0 %2573
    %v2576 = vmul.f32 %v2570, %v2574
    %2578 = vrot.lane.b32.xlu0 %v2571, 64
    %v2579 = vpop.permute.xlu0 %2578
    %v2581 = vmul.f32 %v2570, %v2579
    %2583 = vrot.lane.b32.xlu0 %v2581, 32
    %v2584 = vpop.permute.xlu0 %2583
    %v2586 = vadd.f32 %v2576, %v2584
    %v2587 = vtanh.pop %v2586
    %2589 = vrot.lane.b32.xlu0 %v2587, 64
    %v2590 = vpop.permute.xlu0 %2589
    %v2592 = vmul.f32 %v2570, %v2590
    %2594 = vrot.lane.b32.xlu0 %v2551, 32
    %v2595 = vpop.permute.xlu0 %2594
    %v2597 = vsel %vm2508, %v2595, %v2439
    %2599 = vrot.lane.b32.xlu0 %v2545, 96
    %v2600 = vpop.permute.xlu0 %2599
    %v2602 = vsel %vm2508, %v2600, %v2444
    %2604 = vrot.lane.b32.xlu0 %v2592, 32
    %v2605 = vpop.permute.xlu0 %2604
    %v2607 = vsel %vm2510, %v2605, %v2449
    %2609 = vrot.lane.b32.xlu0 %v2586, 96
    %v2610 = vpop.permute.xlu0 %2609
    %v2612 = vsel %vm2510, %v2610, %v2454
    %2614 = vrot.lane.b32.xlu0 %v2607, 32
    %v2615 = vpop.permute.xlu0 %2614
    %v2617 = vsel %vm354, %v2597, %v2615
    %v2619 = vsel %vm208, %v2617, 0
    %2621 = vmatpush.msra.mxu0 0.0
    %2622 = vmatpush.msra.mxu0 0.0
    %2623 = vmatpush.msra.mxu0 0.0
    %2624 = vmatpush.msra.mxu0 0.0
    %2625 = vmatpush.msra.mxu0 0.0
    %2626 = vmatpush.msra.mxu0 0.0
    %2627 = vmatpush.msra.mxu0 0.0
    %2628 = vmatpush.msra.mxu0 0.0
    %2629 = vmatpush.msra.mxu0 %v1995
    %2630 = vmatpush.msra.mxu0 %v1993
    %2631 = vmatpush.msra.mxu0 %v1991
    %2632 = vmatpush.msra.mxu0 %v1989
    %2633 = vmatpush.msra.mxu0 %v1987
    %2634 = vmatpush.msra.mxu0 %v1985
    %2635 = vmatpush.msra.mxu0 %v1983
    %2636 = vmatpush.msra.mxu0 %v1981
    %2637 = vmatmul.f32.gmra.mxu0 %v2619
    %v2638 = vpop.f32.mrf.mxu0
    %v2639 = vadd.f32 0.0, %v2638
    %2640 = vdwg.mxu0
    %2641 = vmatpush.msra.mxu0 0.0
    %2642 = vmatpush.msra.mxu0 0.0
    %2643 = vmatpush.msra.mxu0 0.0
    %2644 = vmatpush.msra.mxu0 0.0
    %2645 = vmatpush.msra.mxu0 0.0
    %2646 = vmatpush.msra.mxu0 0.0
    %2647 = vmatpush.msra.mxu0 0.0
    %2648 = vmatpush.msra.mxu0 0.0
    %2649 = vmatpush.msra.mxu0 %v1996
    %2650 = vmatpush.msra.mxu0 %v1994
    %2651 = vmatpush.msra.mxu0 %v1992
    %2652 = vmatpush.msra.mxu0 %v1990
    %2653 = vmatpush.msra.mxu0 %v1988
    %2654 = vmatpush.msra.mxu0 %v1986
    %2655 = vmatpush.msra.mxu0 %v1984
    %2656 = vmatpush.msra.mxu0 %v1982
    %2657 = vmatmul.f32.gmra.mxu0 %v2619
    %v2658 = vpop.f32.mrf.mxu0
    %v2659 = vadd.f32 0.0, %v2658
    %2660 = vdwg.mxu0
    %v2661 = vld [vmem:[#allocation2 + $0x40] sm:$0xff]
    %v2662 = vadd.f32 %v2661, %v2639
    %v2663 = vld [vmem:[#allocation2 + $0x38] sm:$0xff]
    %v2664 = vadd.f32 %v2663, %v2659
    %v2665 = vxor.u32 %v2662, 2147483648
    %v2666 = vmul.f32 %v2665, 1.442695
    %v2667 = vpow.pop %v2666
    %v2668 = vadd.f32 %v2667, 1.0
    %v2669 = vrcp.pop %v2668
    %v2670 = vmul.f32 %v2668, %v2669
    %v2671 = vsub.f32 1.0, %v2670
    %v2672 = vmul.f32 %v2669, %v2671
    %v2673 = vadd.f32 %v2669, %v2672
    %vm2674 = vweird.f32 %v2668
    %vm2675 = vweird.f32 %v2669
    %vm2676 = vmor %vm2674, %vm2675
    %v2677 = vsel %vm2676, %v2669, %v2673
    %v2678 = vand.u32 2147483647, %v2668
    %vm2679 = vcmp.eq.f32.partialorder %v2678, 8.507059e+37
    %v2680 = vand.u32 %v2668, 2147483648
    %v2681 = vor.u32 1.1754944e-38, %v2680
    %v2682 = vsel %vm2679, %v2681, %v2677
    %v2683 = vmul.f32 1.0, %v2682
    %v2684 = vtanh.pop %v2662
    %2686 = vrot.lane.b32.xlu0 %v2602, 32
    %v2687 = vpop.permute.xlu0 %2686
    %v2689 = vmul.f32 %v2683, %v2687
    %2691 = vrot.lane.b32.xlu0 %v2684, 64
    %v2692 = vpop.permute.xlu0 %2691
    %v2694 = vmul.f32 %v2683, %v2692
    %2696 = vrot.lane.b32.xlu0 %v2694, 32
    %v2697 = vpop.permute.xlu0 %2696
    %v2699 = vadd.f32 %v2689, %v2697
    %v2700 = vtanh.pop %v2699
    %2702 = vrot.lane.b32.xlu0 %v2700, 64
    %v2703 = vpop.permute.xlu0 %2702
    %v2705 = vmul.f32 %v2683, %v2703
    %v2706 = vxor.u32 %v2664, 2147483648
    %v2707 = vmul.f32 %v2706, 1.442695
    %v2708 = vpow.pop %v2707
    %v2709 = vadd.f32 %v2708, 1.0
    %v2710 = vrcp.pop %v2709
    %v2711 = vmul.f32 %v2709, %v2710
    %v2712 = vsub.f32 1.0, %v2711
    %v2713 = vmul.f32 %v2710, %v2712
    %v2714 = vadd.f32 %v2710, %v2713
    %vm2715 = vweird.f32 %v2709
    %vm2716 = vweird.f32 %v2710
    %vm2717 = vmor %vm2715, %vm2716
    %v2718 = vsel %vm2717, %v2710, %v2714
    %v2719 = vand.u32 2147483647, %v2709
    %vm2720 = vcmp.eq.f32.partialorder %v2719, 8.507059e+37
    %v2721 = vand.u32 %v2709, 2147483648
    %v2722 = vor.u32 1.1754944e-38, %v2721
    %v2723 = vsel %vm2720, %v2722, %v2718
    %v2724 = vmul.f32 1.0, %v2723
    %v2725 = vtanh.pop %v2664
    %2727 = vrot.lane.b32.xlu0 %v2612, 32
    %v2728 = vpop.permute.xlu0 %2727
    %v2730 = vmul.f32 %v2724, %v2728
    %2732 = vrot.lane.b32.xlu0 %v2725, 64
    %v2733 = vpop.permute.xlu0 %2732
    %v2735 = vmul.f32 %v2724, %v2733
    %2737 = vrot.lane.b32.xlu0 %v2735, 32
    %v2738 = vpop.permute.xlu0 %2737
    %v2740 = vadd.f32 %v2730, %v2738
    %v2741 = vtanh.pop %v2740
    %2743 = vrot.lane.b32.xlu0 %v2741, 64
    %v2744 = vpop.permute.xlu0 %2743
    %v2746 = vmul.f32 %v2724, %v2744
    %2748 = vrot.lane.b32.xlu0 %v2705, 32
    %v2749 = vpop.permute.xlu0 %2748
    %v2751 = vsel %vm2510, %v2749, %v2597
    %2753 = vrot.lane.b32.xlu0 %v2699, 96
    %v2754 = vpop.permute.xlu0 %2753
    %v2756 = vsel %vm2510, %v2754, %v2602
    %2758 = vrot.lane.b32.xlu0 %v2746, 32
    %v2759 = vpop.permute.xlu0 %2758
    %v2761 = vsel %vm2508, %v2759, %v2607
    %2763 = vrot.lane.b32.xlu0 %v2740, 96
    %v2764 = vpop.permute.xlu0 %2763
    %v2766 = vsel %vm2508, %v2764, %v2612
    %2768 = vrot.lane.b32.xlu0 %v2761, 32
    %v2769 = vpop.permute.xlu0 %2768
    %v2771 = vsel %vm354, %v2751, %v2769
    %v2773 = vsel %vm208, %v2771, 0
    %2775 = vmatpush.msra.mxu0 0.0
    %2776 = vmatpush.msra.mxu0 0.0
    %2777 = vmatpush.msra.mxu0 0.0
    %2778 = vmatpush.msra.mxu0 0.0
    %2779 = vmatpush.msra.mxu0 0.0
    %2780 = vmatpush.msra.mxu0 0.0
    %2781 = vmatpush.msra.mxu0 0.0
    %2782 = vmatpush.msra.mxu0 0.0
    %2783 = vmatpush.msra.mxu0 %v1995
    %2784 = vmatpush.msra.mxu0 %v1993
    %2785 = vmatpush.msra.mxu0 %v1991
    %2786 = vmatpush.msra.mxu0 %v1989
    %2787 = vmatpush.msra.mxu0 %v1987
    %2788 = vmatpush.msra.mxu0 %v1985
    %2789 = vmatpush.msra.mxu0 %v1983
    %2790 = vmatpush.msra.mxu0 %v1981
    %2791 = vmatmul.f32.gmra.mxu0 %v2773
    %v2792 = vpop.f32.mrf.mxu0
    %v2793 = vadd.f32 0.0, %v2792
    %2794 = vdwg.mxu0
    %2795 = vmatpush.msra.mxu0 0.0
    %2796 = vmatpush.msra.mxu0 0.0
    %2797 = vmatpush.msra.mxu0 0.0
    %2798 = vmatpush.msra.mxu0 0.0
    %2799 = vmatpush.msra.mxu0 0.0
    %2800 = vmatpush.msra.mxu0 0.0
    %2801 = vmatpush.msra.mxu0 0.0
    %2802 = vmatpush.msra.mxu0 0.0
    %2803 = vmatpush.msra.mxu0 %v1996
    %2804 = vmatpush.msra.mxu0 %v1994
    %2805 = vmatpush.msra.mxu0 %v1992
    %2806 = vmatpush.msra.mxu0 %v1990
    %2807 = vmatpush.msra.mxu0 %v1988
    %2808 = vmatpush.msra.mxu0 %v1986
    %2809 = vmatpush.msra.mxu0 %v1984
    %2810 = vmatpush.msra.mxu0 %v1982
    %2811 = vmatmul.f32.gmra.mxu0 %v2773
    %v2812 = vpop.f32.mrf.mxu0
    %v2813 = vadd.f32 0.0, %v2812
    %2814 = vdwg.mxu0
    %v2815 = vld [vmem:[#allocation2 + $0x50] sm:$0xff]
    %v2816 = vadd.f32 %v2815, %v2793
    %v2817 = vld [vmem:[#allocation2 + $0x28] sm:$0xff]
    %v2818 = vadd.f32 %v2817, %v2813
    %v2819 = vxor.u32 %v2816, 2147483648
    %v2820 = vmul.f32 %v2819, 1.442695
    %v2821 = vpow.pop %v2820
    %v2822 = vadd.f32 %v2821, 1.0
    %v2823 = vrcp.pop %v2822
    %v2824 = vmul.f32 %v2822, %v2823
    %v2825 = vsub.f32 1.0, %v2824
    %v2826 = vmul.f32 %v2823, %v2825
    %v2827 = vadd.f32 %v2823, %v2826
    %vm2828 = vweird.f32 %v2822
    %vm2829 = vweird.f32 %v2823
    %vm2830 = vmor %vm2828, %vm2829
    %v2831 = vsel %vm2830, %v2823, %v2827
    %v2832 = vand.u32 2147483647, %v2822
    %vm2833 = vcmp.eq.f32.partialorder %v2832, 8.507059e+37
    %v2834 = vand.u32 %v2822, 2147483648
    %v2835 = vor.u32 1.1754944e-38, %v2834
    %v2836 = vsel %vm2833, %v2835, %v2831
    %v2837 = vmul.f32 1.0, %v2836
    %v2838 = vtanh.pop %v2816
    %2840 = vrot.lane.b32.xlu0 %v2756, 32
    %v2841 = vpop.permute.xlu0 %2840
    %v2843 = vmul.f32 %v2837, %v2841
    %2845 = vrot.lane.b32.xlu0 %v2838, 64
    %v2846 = vpop.permute.xlu0 %2845
    %v2848 = vmul.f32 %v2837, %v2846
    %2850 = vrot.lane.b32.xlu0 %v2848, 32
    %v2851 = vpop.permute.xlu0 %2850
    %v2853 = vadd.f32 %v2843, %v2851
    %v2854 = vtanh.pop %v2853
    %2856 = vrot.lane.b32.xlu0 %v2854, 64
    %v2857 = vpop.permute.xlu0 %2856
    %v2859 = vmul.f32 %v2837, %v2857
    %v2860 = vxor.u32 %v2818, 2147483648
    %v2861 = vmul.f32 %v2860, 1.442695
    %v2862 = vpow.pop %v2861
    %v2863 = vadd.f32 %v2862, 1.0
    %v2864 = vrcp.pop %v2863
    %v2865 = vmul.f32 %v2863, %v2864
    %v2866 = vsub.f32 1.0, %v2865
    %v2867 = vmul.f32 %v2864, %v2866
    %v2868 = vadd.f32 %v2864, %v2867
    %vm2869 = vweird.f32 %v2863
    %vm2870 = vweird.f32 %v2864
    %vm2871 = vmor %vm2869, %vm2870
    %v2872 = vsel %vm2871, %v2864, %v2868
    %v2873 = vand.u32 2147483647, %v2863
    %vm2874 = vcmp.eq.f32.partialorder %v2873, 8.507059e+37
    %v2875 = vand.u32 %v2863, 2147483648
    %v2876 = vor.u32 1.1754944e-38, %v2875
    %v2877 = vsel %vm2874, %v2876, %v2872
    %v2878 = vmul.f32 1.0, %v2877
    %v2879 = vtanh.pop %v2818
    %2881 = vrot.lane.b32.xlu0 %v2766, 32
    %v2882 = vpop.permute.xlu0 %2881
    %v2884 = vmul.f32 %v2878, %v2882
    %2886 = vrot.lane.b32.xlu0 %v2879, 64
    %v2887 = vpop.permute.xlu0 %2886
    %v2889 = vmul.f32 %v2878, %v2887
    %2891 = vrot.lane.b32.xlu0 %v2889, 32
    %v2892 = vpop.permute.xlu0 %2891
    %v2894 = vadd.f32 %v2884, %v2892
    %v2895 = vtanh.pop %v2894
    %2897 = vrot.lane.b32.xlu0 %v2895, 64
    %v2898 = vpop.permute.xlu0 %2897
    %v2900 = vmul.f32 %v2878, %v2898
    %2902 = vrot.lane.b32.xlu0 %v2859, 32
    %v2903 = vpop.permute.xlu0 %2902
    %v2905 = vsel %vm2352, %v2903, %v2751
    %2907 = vrot.lane.b32.xlu0 %v2853, 96
    %v2908 = vpop.permute.xlu0 %2907
    %v2910 = vsel %vm2352, %v2908, %v2756
    %2912 = vrot.lane.b32.xlu0 %v2900, 32
    %v2913 = vpop.permute.xlu0 %2912
    %v2915 = vsel %vm2350, %v2913, %v2761
    %2917 = vrot.lane.b32.xlu0 %v2894, 96
    %v2918 = vpop.permute.xlu0 %2917
    %v2920 = vsel %vm2350, %v2918, %v2766
    %2922 = vrot.lane.b32.xlu0 %v2915, 32
    %v2923 = vpop.permute.xlu0 %2922
    %v2925 = vsel %vm354, %v2905, %v2923
    %v2927 = vsel %vm208, %v2925, 0
    %2929 = vmatpush.msra.mxu0 0.0
    %2930 = vmatpush.msra.mxu0 0.0
    %2931 = vmatpush.msra.mxu0 0.0
    %2932 = vmatpush.msra.mxu0 0.0
    %2933 = vmatpush.msra.mxu0 0.0
    %2934 = vmatpush.msra.mxu0 0.0
    %2935 = vmatpush.msra.mxu0 0.0
    %2936 = vmatpush.msra.mxu0 0.0
    %2937 = vmatpush.msra.mxu0 %v1995
    %2938 = vmatpush.msra.mxu0 %v1993
    %2939 = vmatpush.msra.mxu0 %v1991
    %2940 = vmatpush.msra.mxu0 %v1989
    %2941 = vmatpush.msra.mxu0 %v1987
    %2942 = vmatpush.msra.mxu0 %v1985
    %2943 = vmatpush.msra.mxu0 %v1983
    %2944 = vmatpush.msra.mxu0 %v1981
    %2945 = vmatmul.f32.gmra.mxu0 %v2927
    %v2946 = vpop.f32.mrf.mxu0
    %v2947 = vadd.f32 0.0, %v2946
    %2948 = vdwg.mxu0
    %2949 = vmatpush.msra.mxu0 0.0
    %2950 = vmatpush.msra.mxu0 0.0
    %2951 = vmatpush.msra.mxu0 0.0
    %2952 = vmatpush.msra.mxu0 0.0
    %2953 = vmatpush.msra.mxu0 0.0
    %2954 = vmatpush.msra.mxu0 0.0
    %2955 = vmatpush.msra.mxu0 0.0
    %2956 = vmatpush.msra.mxu0 0.0
    %2957 = vmatpush.msra.mxu0 %v1996
    %2958 = vmatpush.msra.mxu0 %v1994
    %2959 = vmatpush.msra.mxu0 %v1992
    %2960 = vmatpush.msra.mxu0 %v1990
    %2961 = vmatpush.msra.mxu0 %v1988
    %2962 = vmatpush.msra.mxu0 %v1986
    %2963 = vmatpush.msra.mxu0 %v1984
    %2964 = vmatpush.msra.mxu0 %v1982
    %2965 = vmatmul.f32.gmra.mxu0 %v2927
    %v2966 = vpop.f32.mrf.mxu0
    %v2967 = vadd.f32 0.0, %v2966
    %2968 = vdwg.mxu0
    %v2969 = vld [vmem:[#allocation2 + $0x60] sm:$0xff]
    %v2970 = vadd.f32 %v2969, %v2947
    %v2971 = vld [vmem:[#allocation2 + $0x18] sm:$0xff]
    %v2972 = vadd.f32 %v2971, %v2967
    %v2973 = vxor.u32 %v2970, 2147483648
    %v2974 = vmul.f32 %v2973, 1.442695
    %v2975 = vpow.pop %v2974
    %v2976 = vadd.f32 %v2975, 1.0
    %v2977 = vrcp.pop %v2976
    %v2978 = vmul.f32 %v2976, %v2977
    %v2979 = vsub.f32 1.0, %v2978
    %v2980 = vmul.f32 %v2977, %v2979
    %v2981 = vadd.f32 %v2977, %v2980
    %vm2982 = vweird.f32 %v2976
    %vm2983 = vweird.f32 %v2977
    %vm2984 = vmor %vm2982, %vm2983
    %v2985 = vsel %vm2984, %v2977, %v2981
    %v2986 = vand.u32 2147483647, %v2976
    %vm2987 = vcmp.eq.f32.partialorder %v2986, 8.507059e+37
    %v2988 = vand.u32 %v2976, 2147483648
    %v2989 = vor.u32 1.1754944e-38, %v2988
    %v2990 = vsel %vm2987, %v2989, %v2985
    %v2991 = vmul.f32 1.0, %v2990
    %v2992 = vtanh.pop %v2970
    %2994 = vrot.lane.b32.xlu0 %v2910, 32
    %v2995 = vpop.permute.xlu0 %2994
    %v2997 = vmul.f32 %v2991, %v2995
    %2999 = vrot.lane.b32.xlu0 %v2992, 64
    %v3000 = vpop.permute.xlu0 %2999
    %v3002 = vmul.f32 %v2991, %v3000
    %3004 = vrot.lane.b32.xlu0 %v3002, 32
    %v3005 = vpop.permute.xlu0 %3004
    %v3007 = vadd.f32 %v2997, %v3005
    %v3008 = vtanh.pop %v3007
    %3010 = vrot.lane.b32.xlu0 %v3008, 64
    %v3011 = vpop.permute.xlu0 %3010
    %v3013 = vmul.f32 %v2991, %v3011
    %v3014 = vxor.u32 %v2972, 2147483648
    %v3015 = vmul.f32 %v3014, 1.442695
    %v3016 = vpow.pop %v3015
    %v3017 = vadd.f32 %v3016, 1.0
    %v3018 = vrcp.pop %v3017
    %v3019 = vmul.f32 %v3017, %v3018
    %v3020 = vsub.f32 1.0, %v3019
    %v3021 = vmul.f32 %v3018, %v3020
    %v3022 = vadd.f32 %v3018, %v3021
    %vm3023 = vweird.f32 %v3017
    %vm3024 = vweird.f32 %v3018
    %vm3025 = vmor %vm3023, %vm3024
    %v3026 = vsel %vm3025, %v3018, %v3022
    %v3027 = vand.u32 2147483647, %v3017
    %vm3028 = vcmp.eq.f32.partialorder %v3027, 8.507059e+37
    %v3029 = vand.u32 %v3017, 2147483648
    %v3030 = vor.u32 1.1754944e-38, %v3029
    %v3031 = vsel %vm3028, %v3030, %v3026
    %v3032 = vmul.f32 1.0, %v3031
    %v3033 = vtanh.pop %v2972
    %3035 = vrot.lane.b32.xlu0 %v2920, 32
    %v3036 = vpop.permute.xlu0 %3035
    %v3038 = vmul.f32 %v3032, %v3036
    %3040 = vrot.lane.b32.xlu0 %v3033, 64
    %v3041 = vpop.permute.xlu0 %3040
    %v3043 = vmul.f32 %v3032, %v3041
    %3045 = vrot.lane.b32.xlu0 %v3043, 32
    %v3046 = vpop.permute.xlu0 %3045
    %v3048 = vadd.f32 %v3038, %v3046
    %v3049 = vtanh.pop %v3048
    %3051 = vrot.lane.b32.xlu0 %v3049, 64
    %v3052 = vpop.permute.xlu0 %3051
    %v3054 = vmul.f32 %v3032, %v3052
    %3056 = vrot.lane.b32.xlu0 %v3013, 32
    %v3057 = vpop.permute.xlu0 %3056
    %v3059 = vsel %vm2194, %v3057, %v2905
    %3061 = vrot.lane.b32.xlu0 %v3007, 96
    %v3062 = vpop.permute.xlu0 %3061
    %v3064 = vsel %vm2194, %v3062, %v2910
    %3066 = vrot.lane.b32.xlu0 %v3054, 32
    %v3067 = vpop.permute.xlu0 %3066
    %v3069 = vsel %vm2192, %v3067, %v2915
    %3071 = vrot.lane.b32.xlu0 %v3048, 96
    %v3072 = vpop.permute.xlu0 %3071
    %v3074 = vsel %vm2192, %v3072, %v2920
    %3076 = vrot.lane.b32.xlu0 %v3069, 32
    %v3077 = vpop.permute.xlu0 %3076
    %v3079 = vsel %vm354, %v3059, %v3077
    %v3081 = vsel %vm208, %v3079, 0
    %3083 = vmatpush.msra.mxu0 0.0
    %3084 = vmatpush.msra.mxu0 0.0
    %3085 = vmatpush.msra.mxu0 0.0
    %3086 = vmatpush.msra.mxu0 0.0
    %3087 = vmatpush.msra.mxu0 0.0
    %3088 = vmatpush.msra.mxu0 0.0
    %3089 = vmatpush.msra.mxu0 0.0
    %3090 = vmatpush.msra.mxu0 0.0
    %3091 = vmatpush.msra.mxu0 %v1995
    %3092 = vmatpush.msra.mxu0 %v1993
    %3093 = vmatpush.msra.mxu0 %v1991
    %3094 = vmatpush.msra.mxu0 %v1989
    %3095 = vmatpush.msra.mxu0 %v1987
    %3096 = vmatpush.msra.mxu0 %v1985
    %3097 = vmatpush.msra.mxu0 %v1983
    %3098 = vmatpush.msra.mxu0 %v1981
    %3099 = vmatmul.f32.gmra.mxu0 %v3081
    %v3100 = vpop.f32.mrf.mxu0
    %v3101 = vadd.f32 0.0, %v3100
    %3102 = vdwg.mxu0
    %3103 = vmatpush.msra.mxu0 0.0
    %3104 = vmatpush.msra.mxu0 0.0
    %3105 = vmatpush.msra.mxu0 0.0
    %3106 = vmatpush.msra.mxu0 0.0
    %3107 = vmatpush.msra.mxu0 0.0
    %3108 = vmatpush.msra.mxu0 0.0
    %3109 = vmatpush.msra.mxu0 0.0
    %3110 = vmatpush.msra.mxu0 0.0
    %3111 = vmatpush.msra.mxu0 %v1996
    %3112 = vmatpush.msra.mxu0 %v1994
    %3113 = vmatpush.msra.mxu0 %v1992
    %3114 = vmatpush.msra.mxu0 %v1990
    %3115 = vmatpush.msra.mxu0 %v1988
    %3116 = vmatpush.msra.mxu0 %v1986
    %3117 = vmatpush.msra.mxu0 %v1984
    %3118 = vmatpush.msra.mxu0 %v1982
    %3119 = vmatmul.f32.gmra.mxu0 %v3081
    %v3120 = vpop.f32.mrf.mxu0
    %v3121 = vadd.f32 0.0, %v3120
    %3122 = vdwg.mxu0
    %v3123 = vld [vmem:[#allocation2 + $0x70] sm:$0xff]
    %v3124 = vadd.f32 %v3123, %v3101
    %v3125 = vld [vmem:[#allocation2 + $0x8] sm:$0xff]
    %v3126 = vadd.f32 %v3125, %v3121
    %v3127 = vxor.u32 %v3124, 2147483648
    %v3128 = vmul.f32 %v3127, 1.442695
    %v3129 = vpow.pop %v3128
    %v3130 = vadd.f32 %v3129, 1.0
    %v3131 = vrcp.pop %v3130
    %v3132 = vmul.f32 %v3130, %v3131
    %v3133 = vsub.f32 1.0, %v3132
    %v3134 = vmul.f32 %v3131, %v3133
    %v3135 = vadd.f32 %v3131, %v3134
    %vm3136 = vweird.f32 %v3130
    %vm3137 = vweird.f32 %v3131
    %vm3138 = vmor %vm3136, %vm3137
    %v3139 = vsel %vm3138, %v3131, %v3135
    %v3140 = vand.u32 2147483647, %v3130
    %vm3141 = vcmp.eq.f32.partialorder %v3140, 8.507059e+37
    %v3142 = vand.u32 %v3130, 2147483648
    %v3143 = vor.u32 1.1754944e-38, %v3142
    %v3144 = vsel %vm3141, %v3143, %v3139
    %v3145 = vmul.f32 1.0, %v3144
    %v3146 = vtanh.pop %v3124
    %3148 = vrot.lane.b32.xlu0 %v3064, 32
    %v3149 = vpop.permute.xlu0 %3148
    %v3151 = vmul.f32 %v3145, %v3149
    %3153 = vrot.lane.b32.xlu0 %v3146, 64
    %v3154 = vpop.permute.xlu0 %3153
    %v3156 = vmul.f32 %v3145, %v3154
    %3158 = vrot.lane.b32.xlu0 %v3156, 32
    %v3159 = vpop.permute.xlu0 %3158
    %v3161 = vadd.f32 %v3151, %v3159
    %v3162 = vtanh.pop %v3161
    %3164 = vrot.lane.b32.xlu0 %v3162, 64
    %v3165 = vpop.permute.xlu0 %3164
    %v3167 = vmul.f32 %v3145, %v3165
    %v3168 = vxor.u32 %v3126, 2147483648
    %v3169 = vmul.f32 %v3168, 1.442695
    %v3170 = vpow.pop %v3169
    %v3171 = vadd.f32 %v3170, 1.0
    %v3172 = vrcp.pop %v3171
    %v3173 = vmul.f32 %v3171, %v3172
    %v3174 = vsub.f32 1.0, %v3173
    %v3175 = vmul.f32 %v3172, %v3174
    %v3176 = vadd.f32 %v3172, %v3175
    %vm3177 = vweird.f32 %v3171
    %vm3178 = vweird.f32 %v3172
    %vm3179 = vmor %vm3177, %vm3178
    %v3180 = vsel %vm3179, %v3172, %v3176
    %v3181 = vand.u32 2147483647, %v3171
    %vm3182 = vcmp.eq.f32.partialorder %v3181, 8.507059e+37
    %v3183 = vand.u32 %v3171, 2147483648
    %v3184 = vor.u32 1.1754944e-38, %v3183
    %v3185 = vsel %vm3182, %v3184, %v3180
    %v3186 = vmul.f32 1.0, %v3185
    %v3187 = vtanh.pop %v3126
    %3189 = vrot.lane.b32.xlu0 %v3074, 32
    %v3190 = vpop.permute.xlu0 %3189
    %v3192 = vmul.f32 %v3186, %v3190
    %3194 = vrot.lane.b32.xlu0 %v3187, 64
    %v3195 = vpop.permute.xlu0 %3194
    %v3197 = vmul.f32 %v3186, %v3195
    %3199 = vrot.lane.b32.xlu0 %v3197, 32
    %v3200 = vpop.permute.xlu0 %3199
    %v3202 = vadd.f32 %v3192, %v3200
    %v3203 = vtanh.pop %v3202
    %3205 = vrot.lane.b32.xlu0 %v3203, 64
    %v3206 = vpop.permute.xlu0 %3205
    %v3208 = vmul.f32 %v3186, %v3206
    %3210 = vrot.lane.b32.xlu0 %v3167, 32
    %v3211 = vpop.permute.xlu0 %3210
    %v3213 = vsel %vm2044, %v3211, %v3059
    %3215 = vrot.lane.b32.xlu0 %v3208, 32
    %v3216 = vpop.permute.xlu0 %3215
    %v3218 = vsel %vm2042, %v3216, %v3069
    %3220 = vrot.lane.b32.xlu0 %v3213, 32
    %v3221 = vpop.permute.xlu0 %3220
    %3224 = vrot.lane.b32.xlu0 %v1613, 64
    %v3225 = vpop.permute.xlu0 %3224
    %3228 = vrot.lane.b32.xlu0 %v3218, 96
    %v3229 = vpop.permute.xlu0 %3228
    %v3231 = vsel %vm354, %v1608, %v3221
    %v3232 = vsel %vm208, %v3231, %v3225
    %vm3233 = vcmask 785408
    %v3234 = vsel %vm3233, %v3232, %v3229
    %v3235 = vld [vmem:[%s10] sm:$0xff]
    %v3236 = vld [vmem:[%s10 + $0x8] sm:$0xff]
    %v3237 = vld [vmem:[%s10 + $0x10] sm:$0xff]
    %v3238 = vld [vmem:[%s10 + $0x18] sm:$0xff]
    %v3239 = vld [vmem:[%s10 + $0x20] sm:$0xff]
    %v3240 = vld [vmem:[%s10 + $0x28] sm:$0xff]
    %v3241 = vld [vmem:[%s10 + $0x30] sm:$0xff]
    %v3242 = vld [vmem:[%s10 + $0x38] sm:$0xff]
    %v3243 = vld [vmem:[%s10 + $0x40] sm:$0xff]
    %v3244 = vld [vmem:[%s10 + $0x48] sm:$0xff]
    %v3245 = vld [vmem:[%s10 + $0x50] sm:$0xff]
    %v3246 = vld [vmem:[%s10 + $0x58] sm:$0xff]
    %v3247 = vld [vmem:[%s10 + $0x60] sm:$0xff]
    %v3248 = vld [vmem:[%s10 + $0x68] sm:$0xff]
    %v3249 = vld [vmem:[%s10 + $0x70] sm:$0xff]
    %v3250 = vld [vmem:[%s10 + $0x78] sm:$0xff]
    %v3251 = vld [vmem:[%s11] sm:$0x1]
    %v3253 = vperm.slane %v3251, 0
    %3255 = vmatpush.msra.mxu0 %v3250
    %3256 = vmatpush.msra.mxu0 %v3249
    %3257 = vmatpush.msra.mxu0 %v3248
    %3258 = vmatpush.msra.mxu0 %v3247
    %3259 = vmatpush.msra.mxu0 %v3246
    %3260 = vmatpush.msra.mxu0 %v3245
    %3261 = vmatpush.msra.mxu0 %v3244
    %3262 = vmatpush.msra.mxu0 %v3243
    %3263 = vmatpush.msra.mxu0 %v3242
    %3264 = vmatpush.msra.mxu0 %v3241
    %3265 = vmatpush.msra.mxu0 %v3240
    %3266 = vmatpush.msra.mxu0 %v3239
    %3267 = vmatpush.msra.mxu0 %v3238
    %3268 = vmatpush.msra.mxu0 %v3237
    %3269 = vmatpush.msra.mxu0 %v3236
    %3270 = vmatpush.msra.mxu0 %v3235
    %3271 = vmatmul.f32.gmra.mxu0 %v3234
    %v3272 = vpop.f32.mrf.mxu0
    %v3273 = vadd.f32 %v3253, %v3272
    %3274 = vdwg.mxu0
    %v3275 = vmax.f32 %v3273, 0.0
    %v3276 = vld [vmem:[%s12] sm:$0xff]
    %v3277 = vld [vmem:[%s12 + $0x8] sm:$0xff]
    %v3278 = vld [vmem:[%s12 + $0x10] sm:$0xff]
    %v3279 = vld [vmem:[%s12 + $0x18] sm:$0xff]
    %v3280 = vld [vmem:[%s12 + $0x20] sm:$0xff]
    %v3281 = vld [vmem:[%s12 + $0x28] sm:$0xff]
    %v3282 = vld [vmem:[%s12 + $0x30] sm:$0xff]
    %v3283 = vld [vmem:[%s12 + $0x38] sm:$0xff]
    %v3284 = vld [vmem:[%s13] sm:$0x1]
    %v3286 = vperm.slane %v3284, 0
    %v3289 = vsel %vm208, %v3275, 0
    %3291 = vmatpush.msra.mxu0 0.0
    %3292 = vmatpush.msra.mxu0 0.0
    %3293 = vmatpush.msra.mxu0 0.0
    %3294 = vmatpush.msra.mxu0 0.0
    %3295 = vmatpush.msra.mxu0 0.0
    %3296 = vmatpush.msra.mxu0 0.0
    %3297 = vmatpush.msra.mxu0 0.0
    %3298 = vmatpush.msra.mxu0 0.0
    %3299 = vmatpush.msra.mxu0 %v3283
    %3300 = vmatpush.msra.mxu0 %v3282
    %3301 = vmatpush.msra.mxu0 %v3281
    %3302 = vmatpush.msra.mxu0 %v3280
    %3303 = vmatpush.msra.mxu0 %v3279
    %3304 = vmatpush.msra.mxu0 %v3278
    %3305 = vmatpush.msra.mxu0 %v3277
    %3306 = vmatpush.msra.mxu0 %v3276
    %3307 = vmatmul.f32.gmra.mxu0 %v3289
    %v3308 = vpop.f32.mrf.mxu0
    %v3309 = vadd.f32 %v3286, %v3308
    %3310 = vdwg.mxu0
    %vm3311 = vcmask 517120
    %3312 = vst.msk [vmem:[#allocation6] sm:$0x3] %vm3311, %v3275
    %vm3313 = vcmask 58368
    %3314 = vst.msk [vmem:[#allocation4] sm:$0x3] %vm3313, %v3309
    // Predicated region
    $region58: #{lstm_classifier_forward.1} parent=1 // pred_check
      _
    $region59: #{lstm_classifier_forward.1} parent=1 // pred_check_branch
      %3316 = sbr.rel (0) target = $region61
    $region60: #{lstm_classifier_forward.1} parent=1 // pred_region
      %3318 = vsyncadd [#allocation5], 0
      %s3320 = sshll.u32 [#allocation4], 4
      %s3321 = int_to_ptr.vmem [resolvable:$true] %s3320
      %s3322 = sshll.u32 %s14, 4
      %s3323 = int_to_ptr.hbm [resolvable:$true] %s3322
      %3325 = dma.vmem_to_hbm [thread:$0]  %s3321, 32, %s3323, [#allocation5]
    $region61: #{lstm_classifier_forward.1} parent=1 // pred_fallthru
      _
    // Predicated region
    $region62: #{lstm_classifier_forward.1} parent=1 // pred_check
      _
    $region63: #{lstm_classifier_forward.1} parent=1 // pred_check_branch
      %3327 = sbr.rel (0) target = $region65
    $region64: #{lstm_classifier_forward.1} parent=1 // pred_region
      %3329 = vsyncadd [#allocation7], 0
      %s3331 = sshll.u32 [#allocation6], 4
      %s3332 = int_to_ptr.vmem [resolvable:$true] %s3331
      %s3333 = sshll.u32 %s15, 4
      %s3334 = int_to_ptr.hbm [resolvable:$true] %s3333
      %3336 = dma.vmem_to_hbm [thread:$0]  %s3332, 32, %s3334, [#allocation7]
    $region65: #{lstm_classifier_forward.1} parent=1 // pred_fallthru
      _
    // Predicated region
    $region66: #{lstm_classifier_forward.1} parent=1 // pred_check
      _
    $region67: #{lstm_classifier_forward.1} parent=1 // pred_check_branch
      %3338 = sbr.rel (0) target = $region69
    $region68: #{lstm_classifier_forward.1} parent=1 // pred_region
      %3340 = dma.done [#allocation5], 32
    $region69: #{lstm_classifier_forward.1} parent=1 // pred_fallthru
      _
    // Predicated region
    $region70: #{lstm_classifier_forward.1} parent=1 // pred_check
      _
    $region71: #{lstm_classifier_forward.1} parent=1 // pred_check_branch
      %3342 = sbr.rel (0) target = $region73
    $region72: #{lstm_classifier_forward.1} parent=1 // pred_region
      %3344 = dma.done [#allocation7], 32
    $region73: #{lstm_classifier_forward.1} parent=1 // pred_fallthru
      _
    %3345 = vsyncpa [#allocation5], 1
    %3346 = vsyncpa [#allocation7], 1

</llo_original>
